<compile_context>
chip_gen: v6e
topology: v6e:2x2x1
jax: 0.10.0
libtpu: 0.0.40
codegen_flags: <defaults>
</compile_context>

<pallas_src>
import jax
import jax.numpy as jnp
from jax.experimental import pallas as pl
from jax.experimental.pallas import tpu as pltpu

# ----------------------- scaled-down ViT configuration -----------------------
IMG = 16            # real VC-1: 224
PATCH = 8           # real VC-1: 16
IN_CH = 3
EMBED = 64          # real VC-1: 768
DEPTH = 2           # real VC-1: 12
HEADS = 4           # real VC-1: 12
HEAD_DIM = EMBED // HEADS
MLP_HIDDEN = 4 * EMBED
N_PATCH = (IMG // PATCH) ** 2
SEQ = N_PATCH + 1   # + CLS token
PPC = PATCH * PATCH * IN_CH
LN_EPS = 1e-6

# MXU operand dtype: bf16 operands + f32 accumulation on all generations.
MXU_DTYPE = jnp.bfloat16

IMAGENET_MEAN = jnp.array([0.485, 0.456, 0.406], jnp.float32)
IMAGENET_STD = jnp.array([0.229, 0.224, 0.225], jnp.float32)


# --------------------------------- kernel ------------------------------------
def _vit_encoder_kernel(patches_ref, pw_ref, pb_ref, cls_ref, pos_ref,
                        ln1g_ref, ln1b_ref, qkvw_ref, qkvb_ref,
                        projw_ref, projb_ref, ln2g_ref, ln2b_ref,
                        fc1w_ref, fc1b_ref, fc2w_ref, fc2b_ref,
                        lnfg_ref, lnfb_ref, out_ref, x_ref):
    """One batch element per grid step; whole encoder fused, state stays in VMEM."""
    scale = 1.0 / (HEAD_DIM ** 0.5)

    def mm(a, b):
        # bf16 operands at the MXU boundary, f32 accumulation.
        return jnp.dot(a.astype(MXU_DTYPE), b.astype(MXU_DTYPE),
                       preferred_element_type=jnp.float32)

    def ln(v, g, b):
        mu = jnp.mean(v, axis=-1, keepdims=True)
        var = jnp.mean(jnp.square(v - mu), axis=-1, keepdims=True)
        return (v - mu) * jax.lax.rsqrt(var + LN_EPS) * g + b

    # ---- patch embedding (ImageNet mean/std already folded into pw/pb) ----
    tok = mm(patches_ref[0], pw_ref[...]) + pb_ref[...]          # (N_PATCH, EMBED)

    # ---- assemble [CLS] + patch tokens, add positional embedding ----
    x_ref[0:1, :] = cls_ref[...]
    x_ref[1:SEQ, :] = tok
    x = x_ref[...] + pos_ref[...]                                # (SEQ, EMBED) f32

    for d in range(DEPTH):
        # ---- multi-head self-attention (all heads in this grid step) ----
        h = ln(x, ln1g_ref[d], ln1b_ref[d])
        qkv = mm(h, qkvw_ref[d]) + qkvb_ref[d]                   # (SEQ, 3*EMBED)
        attn = jnp.zeros((SEQ, EMBED), jnp.float32)
        for hh in range(HEADS):
            lo = hh * HEAD_DIM
            qh = qkv[:, lo:lo + HEAD_DIM] * scale                # scale folded into q
            kh = qkv[:, EMBED + lo:EMBED + lo + HEAD_DIM]
            vh = qkv[:, 2 * EMBED + lo:2 * EMBED + lo + HEAD_DIM]
            s = jax.lax.dot_general(
                qh.astype(MXU_DTYPE), kh.astype(MXU_DTYPE),
                (((1,), (1,)), ((), ())),
                preferred_element_type=jnp.float32)              # (SEQ, SEQ)
            s = s - jnp.max(s, axis=-1, keepdims=True)
            e = jnp.exp(s)
            p = e * pl.reciprocal(jnp.sum(e, axis=-1, keepdims=True), approx=True)
            oh = mm(p, vh)                                       # (SEQ, HEAD_DIM)
            # output projection folded into the per-head loop
            attn = attn + mm(oh, projw_ref[d, lo:lo + HEAD_DIM, :])
        x = x + attn + projb_ref[d]

        # ---- MLP ----
        h2 = ln(x, ln2g_ref[d], ln2b_ref[d])
        m = mm(h2, fc1w_ref[d]) + fc1b_ref[d]
        # TODO(synk): timm ViT uses exact (erf) GELU; tanh approximation used
        # here for Mosaic-safe (EUP) lowering.
        m = jax.nn.gelu(m, approximate=True)
        x = x + mm(m, fc2w_ref[d]) + fc2b_ref[d]

    # final LayerNorm applied only to the CLS row (the module's output token)
    out_ref[0] = ln(x[0:1, :], lnfg_ref[...], lnfb_ref[...])


# ------------------------------ parameter init --------------------------------
def init_params(key):
    keys = iter(jax.random.split(key, 8))

    def nrm(shape, scale=0.02):
        return scale * jax.random.normal(next(keys), shape, jnp.float32)

    return {
        # patch-embed conv weight (D, C, P, P) flattened to (P*P*C, D) matching
        # our (P, P, C)-ordered patch flattening (weights are synthetic).
        "patch_w": nrm((PPC, EMBED)),
        "patch_b": jnp.zeros((EMBED,), jnp.float32),
        "cls_token": nrm((1, EMBED)),
        "pos_embed": nrm((SEQ, EMBED)),
        # per-block params stacked along a leading DEPTH axis (loaded once into
        # VMEM, indexed with static depth inside the fused kernel)
        "ln1_g": jnp.ones((DEPTH, 1, EMBED), jnp.float32),
        "ln1_b": jnp.zeros((DEPTH, 1, EMBED), jnp.float32),
        "qkv_w": nrm((DEPTH, EMBED, 3 * EMBED)),
        "qkv_b": jnp.zeros((DEPTH, 1, 3 * EMBED), jnp.float32),
        "proj_w": nrm((DEPTH, EMBED, EMBED)),
        "proj_b": jnp.zeros((DEPTH, 1, EMBED), jnp.float32),
        "ln2_g": jnp.ones((DEPTH, 1, EMBED), jnp.float32),
        "ln2_b": jnp.zeros((DEPTH, 1, EMBED), jnp.float32),
        "fc1_w": nrm((DEPTH, EMBED, MLP_HIDDEN)),
        "fc1_b": jnp.zeros((DEPTH, 1, MLP_HIDDEN), jnp.float32),
        "fc2_w": nrm((DEPTH, MLP_HIDDEN, EMBED)),
        "fc2_b": jnp.zeros((DEPTH, 1, EMBED), jnp.float32),
        "ln_f_g": jnp.ones((1, EMBED), jnp.float32),
        "ln_f_b": jnp.zeros((1, EMBED), jnp.float32),
    }


# --------------------------------- forward ------------------------------------
def _const_spec(a):
    """Full-array block whose index never changes -> loaded into VMEM once."""
    if a.ndim == 2:
        return pl.BlockSpec(a.shape, lambda b: (0, 0))
    return pl.BlockSpec(a.shape, lambda b: (0, 0, 0))


def vc1_encoder_forward(rgb, params):
    """rgb: (B, H, W, 3) NHWC, uint8 (or float already in [0,1]). Returns (B, EMBED)."""
    B, H, W, C = rgb.shape
    # "if rgb.dtype == torch.uint8: rgb = rgb.float() / 255.0"
    if rgb.dtype == jnp.uint8:
        x = rgb.astype(jnp.float32) / 255.0
    else:
        x = rgb.astype(jnp.float32)
    # TODO(synk): real VC-1 model_transforms bilinearly resize to 224x224
    # (image_resize / torchvision Resize); skipped for small synthetic shapes.

    # patch extraction: Conv2d(k=P, s=P) == flatten patches + matmul (in-kernel)
    gh, gw = H // PATCH, W // PATCH
    assert gh * gw == N_PATCH
    patches = x.reshape(B, gh, PATCH, gw, PATCH, C).transpose(0, 1, 3, 2, 4, 5)
    patches = patches.reshape(B, N_PATCH, PPC)

    # Fold the ImageNet per-channel affine ((x - mean) / std) into the
    # patch-embed weights/bias: no standalone normalization kernel needed.
    inv_std = 1.0 / IMAGENET_STD
    scale_vec = jnp.tile(inv_std, PATCH * PATCH)                  # (PPC,) channel-fastest
    shift_vec = jnp.tile(IMAGENET_MEAN * inv_std, PATCH * PATCH)  # (PPC,)
    pw = (params["patch_w"] * scale_vec[:, None]).astype(MXU_DTYPE)
    pb = (params["patch_b"] - shift_vec @ params["patch_w"]).reshape(1, EMBED)

    args = (
        patches, pw, pb,
        params["cls_token"], params["pos_embed"],
        params["ln1_g"], params["ln1_b"],
        params["qkv_w"].astype(MXU_DTYPE), params["qkv_b"],
        params["proj_w"].astype(MXU_DTYPE), params["proj_b"],
        params["ln2_g"], params["ln2_b"],
        params["fc1_w"].astype(MXU_DTYPE), params["fc1_b"],
        params["fc2_w"].astype(MXU_DTYPE), params["fc2_b"],
        params["ln_f_g"], params["ln_f_b"],
    )

    in_specs = [pl.BlockSpec((1, N_PATCH, PPC), lambda b: (b, 0, 0))]
    in_specs += [_const_spec(a) for a in args[1:]]

    out = pl.pallas_call(
        _vit_encoder_kernel,
        out_shape=jax.ShapeDtypeStruct((B, 1, EMBED), jnp.float32),
        grid=(B,),
        in_specs=in_specs,
        out_specs=pl.BlockSpec((1, 1, EMBED), lambda b: (b, 0, 0)),
        scratch_shapes=[pltpu.VMEM((SEQ, EMBED), jnp.float32)],
        compiler_params=pltpu.CompilerParams(dimension_semantics=("parallel",)),
    )(*args)
    return out[:, 0, :]                                           # (B, EMBED)


# ----------------------------------- main --------------------------------------
if __name__ == "__main__":
    key = jax.random.PRNGKey(0)
    pkey, xkey = jax.random.split(key)
    params = init_params(pkey)

    # synthetic uint8 RGB observation, NHWC, small shape
    rgb = jax.random.randint(xkey, (2, IMG, IMG, 3), 0, 256,
                             dtype=jnp.int32).astype(jnp.uint8)

    fwd = jax.jit(vc1_encoder_forward)
    out = fwd(rgb, params)
    out = jax.block_until_ready(out)
    assert out.shape == (2, EMBED), out.shape
    assert out.dtype == jnp.float32
    print("KERNEL_OK")
</pallas_src>

<mosaic_0001>
module attributes {stable_mosaic.version = 11 : i64} {
  func.func @_vit_encoder_kernel(%arg0: i32, %arg1: memref<1x4x192xf32, #tpu.memory_space<vmem>>, %arg2: memref<192x64xbf16, #tpu.memory_space<vmem>>, %arg3: memref<1x64xf32, #tpu.memory_space<vmem>>, %arg4: memref<1x64xf32, #tpu.memory_space<vmem>>, %arg5: memref<5x64xf32, #tpu.memory_space<vmem>>, %arg6: memref<2x1x64xf32, #tpu.memory_space<vmem>>, %arg7: memref<2x1x64xf32, #tpu.memory_space<vmem>>, %arg8: memref<2x64x192xbf16, #tpu.memory_space<vmem>>, %arg9: memref<2x1x192xf32, #tpu.memory_space<vmem>>, %arg10: memref<2x64x64xbf16, #tpu.memory_space<vmem>>, %arg11: memref<2x1x64xf32, #tpu.memory_space<vmem>>, %arg12: memref<2x1x64xf32, #tpu.memory_space<vmem>>, %arg13: memref<2x1x64xf32, #tpu.memory_space<vmem>>, %arg14: memref<2x64x256xbf16, #tpu.memory_space<vmem>>, %arg15: memref<2x1x256xf32, #tpu.memory_space<vmem>>, %arg16: memref<2x256x64xbf16, #tpu.memory_space<vmem>>, %arg17: memref<2x1x64xf32, #tpu.memory_space<vmem>>, %arg18: memref<1x64xf32, #tpu.memory_space<vmem>>, %arg19: memref<1x64xf32, #tpu.memory_space<vmem>>, %arg20: memref<1x1x64xf32, #tpu.memory_space<vmem>>, %arg21: memref<5x64xf32, #tpu.memory_space<vmem>>) attributes {dimension_semantics = [#tpu.dimension_semantics<parallel>], iteration_bounds = array<i64: 2>, scalar_prefetch = 0 : i64, scratch_operands = 1 : i64, tpu.core_type = #tpu.core_type<tc>, window_params = [{transform_indices = @transform_0, window_bounds = array<i64: 1, 4, 192>}, {pipeline_mode = #tpu.pipeline_mode<synchronous>, transform_indices = @transform_1, window_bounds = array<i64: 192, 64>}, {pipeline_mode = #tpu.pipeline_mode<synchronous>, transform_indices = @transform_2, window_bounds = array<i64: 1, 64>}, {pipeline_mode = #tpu.pipeline_mode<synchronous>, transform_indices = @transform_3, window_bounds = array<i64: 1, 64>}, {pipeline_mode = #tpu.pipeline_mode<synchronous>, transform_indices = @transform_4, window_bounds = array<i64: 5, 64>}, {pipeline_mode = #tpu.pipeline_mode<synchronous>, transform_indices = @transform_5, window_bounds = array<i64: 2, 1, 64>}, {pipeline_mode = #tpu.pipeline_mode<synchronous>, transform_indices = @transform_6, window_bounds = array<i64: 2, 1, 64>}, {pipeline_mode = #tpu.pipeline_mode<synchronous>, transform_indices = @transform_7, window_bounds = array<i64: 2, 64, 192>}, {pipeline_mode = #tpu.pipeline_mode<synchronous>, transform_indices = @transform_8, window_bounds = array<i64: 2, 1, 192>}, {pipeline_mode = #tpu.pipeline_mode<synchronous>, transform_indices = @transform_9, window_bounds = array<i64: 2, 64, 64>}, {pipeline_mode = #tpu.pipeline_mode<synchronous>, transform_indices = @transform_10, window_bounds = array<i64: 2, 1, 64>}, {pipeline_mode = #tpu.pipeline_mode<synchronous>, transform_indices = @transform_11, window_bounds = array<i64: 2, 1, 64>}, {pipeline_mode = #tpu.pipeline_mode<synchronous>, transform_indices = @transform_12, window_bounds = array<i64: 2, 1, 64>}, {pipeline_mode = #tpu.pipeline_mode<synchronous>, transform_indices = @transform_13, window_bounds = array<i64: 2, 64, 256>}, {pipeline_mode = #tpu.pipeline_mode<synchronous>, transform_indices = @transform_14, window_bounds = array<i64: 2, 1, 256>}, {pipeline_mode = #tpu.pipeline_mode<synchronous>, transform_indices = @transform_15, window_bounds = array<i64: 2, 256, 64>}, {pipeline_mode = #tpu.pipeline_mode<synchronous>, transform_indices = @transform_16, window_bounds = array<i64: 2, 1, 64>}, {pipeline_mode = #tpu.pipeline_mode<synchronous>, transform_indices = @transform_17, window_bounds = array<i64: 1, 64>}, {pipeline_mode = #tpu.pipeline_mode<synchronous>, transform_indices = @transform_18, window_bounds = array<i64: 1, 64>}, {transform_indices = @transform_19, window_bounds = array<i64: 1, 1, 64>}]} {
    %c0 = arith.constant 0 : index
    %c0_0 = arith.constant 0 : index
    %c0_1 = arith.constant 0 : index
    %0 = vector.load %arg1[%c0, %c0_0, %c0_1] : memref<1x4x192xf32, #tpu.memory_space<vmem>>, vector<1x4x192xf32>
    %1 = vector.shape_cast %0 : vector<1x4x192xf32> to vector<4x192xf32>
    %c0_2 = arith.constant 0 : index
    %c0_3 = arith.constant 0 : index
    %2 = vector.load %arg2[%c0_2, %c0_3] : memref<192x64xbf16, #tpu.memory_space<vmem>>, vector<192x64xbf16>
    %3 = arith.truncf %1 : vector<4x192xf32> to vector<4x192xbf16>
    %cst = arith.constant dense<0.000000e+00> : vector<4x64xf32>
    %4 = tpu.matmul %3, %2, %cst {dimension_numbers = #tpu.dot_dimension_numbers<[1], [0], [0], [1], [0, 0, 1, 1], [], []>} : vector<4x192xbf16>, vector<192x64xbf16>, vector<4x64xf32> -> vector<4x64xf32>
    %c0_4 = arith.constant 0 : index
    %c0_5 = arith.constant 0 : index
    %5 = vector.load %arg3[%c0_4, %c0_5] : memref<1x64xf32, #tpu.memory_space<vmem>>, vector<1x64xf32>
    %6 = vector.broadcast %5 : vector<1x64xf32> to vector<4x64xf32>
    %7 = arith.addf %4, %6 : vector<4x64xf32>
    %c0_6 = arith.constant 0 : index
    %c0_7 = arith.constant 0 : index
    %8 = vector.load %arg4[%c0_6, %c0_7] : memref<1x64xf32, #tpu.memory_space<vmem>>, vector<1x64xf32>
    %c0_8 = arith.constant 0 : index
    %c0_9 = arith.constant 0 : index
    %9 = vector.load %arg21[%c0_8, %c0_9] : memref<5x64xf32, #tpu.memory_space<vmem>>, vector<1x64xf32>
    tpu.vector_store %arg21[%c0_8, %c0_9], %8 {strides = array<i32>} : memref<5x64xf32, #tpu.memory_space<vmem>>, vector<1x64xf32>,
    %c1 = arith.constant 1 : index
    %c0_10 = arith.constant 0 : index
    %10 = vector.load %arg21[%c1, %c0_10] : memref<5x64xf32, #tpu.memory_space<vmem>>, vector<4x64xf32>
    tpu.vector_store %arg21[%c1, %c0_10], %7 {strides = array<i32>} : memref<5x64xf32, #tpu.memory_space<vmem>>, vector<4x64xf32>,
    %c0_11 = arith.constant 0 : index
    %c0_12 = arith.constant 0 : index
    %11 = vector.load %arg21[%c0_11, %c0_12] : memref<5x64xf32, #tpu.memory_space<vmem>>, vector<5x64xf32>
    %c0_13 = arith.constant 0 : index
    %c0_14 = arith.constant 0 : index
    %12 = vector.load %arg5[%c0_13, %c0_14] : memref<5x64xf32, #tpu.memory_space<vmem>>, vector<5x64xf32>
    %13 = arith.addf %11, %12 : vector<5x64xf32>
    %c0_15 = arith.constant 0 : index
    %c0_16 = arith.constant 0 : index
    %c0_17 = arith.constant 0 : index
    %14 = vector.load %arg6[%c0_15, %c0_16, %c0_17] : memref<2x1x64xf32, #tpu.memory_space<vmem>>, vector<1x1x64xf32>
    %15 = vector.shape_cast %14 : vector<1x1x64xf32> to vector<1x64xf32>
    %c0_18 = arith.constant 0 : index
    %c0_19 = arith.constant 0 : index
    %c0_20 = arith.constant 0 : index
    %16 = vector.load %arg7[%c0_18, %c0_19, %c0_20] : memref<2x1x64xf32, #tpu.memory_space<vmem>>, vector<1x1x64xf32>
    %17 = vector.shape_cast %16 : vector<1x1x64xf32> to vector<1x64xf32>
    %cst_21 = arith.constant dense<0.000000e+00> : vector<5xf32>
    %18 = vector.multi_reduction <add>, %13, %cst_21 [1] : vector<5x64xf32> to vector<5xf32>
    %19 = vector.shape_cast %18 : vector<5xf32> to vector<5x1xf32>
    %cst_22 = arith.constant 6.400000e+01 : f32
    %20 = vector.broadcast %cst_22 : f32 to vector<5x1xf32>
    %21 = arith.divf %19, %20 : vector<5x1xf32>
    %22 = vector.broadcast %21 : vector<5x1xf32> to vector<5x64xf32>
    %23 = arith.subf %13, %22 : vector<5x64xf32>
    %24 = arith.mulf %23, %23 : vector<5x64xf32>
    %cst_23 = arith.constant dense<0.000000e+00> : vector<5xf32>
    %25 = vector.multi_reduction <add>, %24, %cst_23 [1] : vector<5x64xf32> to vector<5xf32>
    %26 = vector.shape_cast %25 : vector<5xf32> to vector<5x1xf32>
    %cst_24 = arith.constant 6.400000e+01 : f32
    %27 = vector.broadcast %cst_24 : f32 to vector<5x1xf32>
    %28 = arith.divf %26, %27 : vector<5x1xf32>
    %29 = vector.broadcast %21 : vector<5x1xf32> to vector<5x64xf32>
    %30 = arith.subf %13, %29 : vector<5x64xf32>
    %cst_25 = arith.constant 9.99999997E-7 : f32
    %31 = vector.broadcast %cst_25 : f32 to vector<5x1xf32>
    %32 = arith.addf %28, %31 : vector<5x1xf32>
    %33 = math.rsqrt %32 : vector<5x1xf32>
    %34 = vector.broadcast %33 : vector<5x1xf32> to vector<5x64xf32>
    %35 = arith.mulf %30, %34 : vector<5x64xf32>
    %36 = vector.broadcast %15 : vector<1x64xf32> to vector<5x64xf32>
    %37 = arith.mulf %35, %36 : vector<5x64xf32>
    %38 = vector.broadcast %17 : vector<1x64xf32> to vector<5x64xf32>
    %39 = arith.addf %37, %38 : vector<5x64xf32>
    %c0_26 = arith.constant 0 : index
    %c0_27 = arith.constant 0 : index
    %c0_28 = arith.constant 0 : index
    %40 = vector.load %arg8[%c0_26, %c0_27, %c0_28] : memref<2x64x192xbf16, #tpu.memory_space<vmem>>, vector<1x64x192xbf16>
    %41 = vector.shape_cast %40 : vector<1x64x192xbf16> to vector<64x192xbf16>
    %42 = arith.truncf %39 : vector<5x64xf32> to vector<5x64xbf16>
    %cst_29 = arith.constant dense<0.000000e+00> : vector<5x192xf32>
    %43 = tpu.matmul %42, %41, %cst_29 {dimension_numbers = #tpu.dot_dimension_numbers<[1], [0], [0], [1], [0, 0, 1, 1], [], []>} : vector<5x64xbf16>, vector<64x192xbf16>, vector<5x192xf32> -> vector<5x192xf32>
    %c0_30 = arith.constant 0 : index
    %c0_31 = arith.constant 0 : index
    %c0_32 = arith.constant 0 : index
    %44 = vector.load %arg9[%c0_30, %c0_31, %c0_32] : memref<2x1x192xf32, #tpu.memory_space<vmem>>, vector<1x1x192xf32>
    %45 = vector.shape_cast %44 : vector<1x1x192xf32> to vector<1x192xf32>
    %46 = vector.broadcast %45 : vector<1x192xf32> to vector<5x192xf32>
    %47 = arith.addf %43, %46 : vector<5x192xf32>
    %cst_33 = arith.constant 0.000000e+00 : f32
    %48 = vector.broadcast %cst_33 : f32 to vector<5x64xf32>
    %49 = vector.extract_strided_slice %47 {offsets = [0, 0], sizes = [5, 16], strides = [1, 1]} : vector<5x192xf32> to vector<5x16xf32>
    %cst_34 = arith.constant 2.500000e-01 : f32
    %50 = vector.broadcast %cst_34 : f32 to vector<5x16xf32>
    %51 = arith.mulf %49, %50 : vector<5x16xf32>
    %52 = vector.extract_strided_slice %47 {offsets = [0, 64], sizes = [5, 16], strides = [1, 1]} : vector<5x192xf32> to vector<5x16xf32>
    %53 = vector.extract_strided_slice %47 {offsets = [0, 128], sizes = [5, 16], strides = [1, 1]} : vector<5x192xf32> to vector<5x16xf32>
    %54 = arith.truncf %51 : vector<5x16xf32> to vector<5x16xbf16>
    %55 = arith.truncf %52 : vector<5x16xf32> to vector<5x16xbf16>
    %cst_35 = arith.constant dense<0.000000e+00> : vector<5x5xf32>
    %56 = tpu.matmul %54, %55, %cst_35 {dimension_numbers = #tpu.dot_dimension_numbers<[1], [1], [0], [0], [0, 0, 1, 0], [], []>} : vector<5x16xbf16>, vector<5x16xbf16>, vector<5x5xf32> -> vector<5x5xf32>
    %cst_36 = arith.constant dense<0xFF800000> : vector<5xf32>
    %57 = vector.multi_reduction <maximumf>, %56, %cst_36 [1] : vector<5x5xf32> to vector<5xf32>
    %58 = vector.shape_cast %57 : vector<5xf32> to vector<5x1xf32>
    %59 = vector.broadcast %58 : vector<5x1xf32> to vector<5x5xf32>
    %60 = arith.subf %56, %59 : vector<5x5xf32>
    %61 = math.exp %60 : vector<5x5xf32>
    %cst_37 = arith.constant dense<0.000000e+00> : vector<5xf32>
    %62 = vector.multi_reduction <add>, %61, %cst_37 [1] : vector<5x5xf32> to vector<5xf32>
    %63 = vector.shape_cast %62 : vector<5xf32> to vector<5x1xf32>
    %64 = tpu.reciprocal %63 {approx = true} : vector<5x1xf32> -> vector<5x1xf32>
    %65 = vector.broadcast %64 : vector<5x1xf32> to vector<5x5xf32>
    %66 = arith.mulf %61, %65 : vector<5x5xf32>
    %67 = arith.truncf %66 : vector<5x5xf32> to vector<5x5xbf16>
    %68 = arith.truncf %53 : vector<5x16xf32> to vector<5x16xbf16>
    %cst_38 = arith.constant dense<0.000000e+00> : vector<5x16xf32>
    %69 = tpu.matmul %67, %68, %cst_38 {dimension_numbers = #tpu.dot_dimension_numbers<[1], [0], [0], [1], [0, 0, 1, 1], [], []>} : vector<5x5xbf16>, vector<5x16xbf16>, vector<5x16xf32> -> vector<5x16xf32>
    %c0_39 = arith.constant 0 : index
    %c0_40 = arith.constant 0 : index
    %c0_41 = arith.constant 0 : index
    %70 = vector.load %arg10[%c0_39, %c0_40, %c0_41] : memref<2x64x64xbf16, #tpu.memory_space<vmem>>, vector<1x16x64xbf16>
    %71 = vector.shape_cast %70 : vector<1x16x64xbf16> to vector<16x64xbf16>
    %72 = arith.truncf %69 : vector<5x16xf32> to vector<5x16xbf16>
    %cst_42 = arith.constant dense<0.000000e+00> : vector<5x64xf32>
    %73 = tpu.matmul %72, %71, %cst_42 {dimension_numbers = #tpu.dot_dimension_numbers<[1], [0], [0], [1], [0, 0, 1, 1], [], []>} : vector<5x16xbf16>, vector<16x64xbf16>, vector<5x64xf32> -> vector<5x64xf32>
    %74 = arith.addf %48, %73 : vector<5x64xf32>
    %75 = vector.extract_strided_slice %47 {offsets = [0, 16], sizes = [5, 16], strides = [1, 1]} : vector<5x192xf32> to vector<5x16xf32>
    %cst_43 = arith.constant 2.500000e-01 : f32
    %76 = vector.broadcast %cst_43 : f32 to vector<5x16xf32>
    %77 = arith.mulf %75, %76 : vector<5x16xf32>
    %78 = vector.extract_strided_slice %47 {offsets = [0, 80], sizes = [5, 16], strides = [1, 1]} : vector<5x192xf32> to vector<5x16xf32>
    %79 = vector.extract_strided_slice %47 {offsets = [0, 144], sizes = [5, 16], strides = [1, 1]} : vector<5x192xf32> to vector<5x16xf32>
    %80 = arith.truncf %77 : vector<5x16xf32> to vector<5x16xbf16>
    %81 = arith.truncf %78 : vector<5x16xf32> to vector<5x16xbf16>
    %cst_44 = arith.constant dense<0.000000e+00> : vector<5x5xf32>
    %82 = tpu.matmul %80, %81, %cst_44 {dimension_numbers = #tpu.dot_dimension_numbers<[1], [1], [0], [0], [0, 0, 1, 0], [], []>} : vector<5x16xbf16>, vector<5x16xbf16>, vector<5x5xf32> -> vector<5x5xf32>
    %cst_45 = arith.constant dense<0xFF800000> : vector<5xf32>
    %83 = vector.multi_reduction <maximumf>, %82, %cst_45 [1] : vector<5x5xf32> to vector<5xf32>
    %84 = vector.shape_cast %83 : vector<5xf32> to vector<5x1xf32>
    %85 = vector.broadcast %84 : vector<5x1xf32> to vector<5x5xf32>
    %86 = arith.subf %82, %85 : vector<5x5xf32>
    %87 = math.exp %86 : vector<5x5xf32>
    %cst_46 = arith.constant dense<0.000000e+00> : vector<5xf32>
    %88 = vector.multi_reduction <add>, %87, %cst_46 [1] : vector<5x5xf32> to vector<5xf32>
    %89 = vector.shape_cast %88 : vector<5xf32> to vector<5x1xf32>
    %90 = tpu.reciprocal %89 {approx = true} : vector<5x1xf32> -> vector<5x1xf32>
    %91 = vector.broadcast %90 : vector<5x1xf32> to vector<5x5xf32>
    %92 = arith.mulf %87, %91 : vector<5x5xf32>
    %93 = arith.truncf %92 : vector<5x5xf32> to vector<5x5xbf16>
    %94 = arith.truncf %79 : vector<5x16xf32> to vector<5x16xbf16>
    %cst_47 = arith.constant dense<0.000000e+00> : vector<5x16xf32>
    %95 = tpu.matmul %93, %94, %cst_47 {dimension_numbers = #tpu.dot_dimension_numbers<[1], [0], [0], [1], [0, 0, 1, 1], [], []>} : vector<5x5xbf16>, vector<5x16xbf16>, vector<5x16xf32> -> vector<5x16xf32>
    %c0_48 = arith.constant 0 : index
    %c16 = arith.constant 16 : index
    %c0_49 = arith.constant 0 : index
    %96 = vector.load %arg10[%c0_48, %c16, %c0_49] : memref<2x64x64xbf16, #tpu.memory_space<vmem>>, vector<1x16x64xbf16>
    %97 = vector.shape_cast %96 : vector<1x16x64xbf16> to vector<16x64xbf16>
    %98 = arith.truncf %95 : vector<5x16xf32> to vector<5x16xbf16>
    %cst_50 = arith.constant dense<0.000000e+00> : vector<5x64xf32>
    %99 = tpu.matmul %98, %97, %cst_50 {dimension_numbers = #tpu.dot_dimension_numbers<[1], [0], [0], [1], [0, 0, 1, 1], [], []>} : vector<5x16xbf16>, vector<16x64xbf16>, vector<5x64xf32> -> vector<5x64xf32>
    %100 = arith.addf %74, %99 : vector<5x64xf32>
    %101 = vector.extract_strided_slice %47 {offsets = [0, 32], sizes = [5, 16], strides = [1, 1]} : vector<5x192xf32> to vector<5x16xf32>
    %cst_51 = arith.constant 2.500000e-01 : f32
    %102 = vector.broadcast %cst_51 : f32 to vector<5x16xf32>
    %103 = arith.mulf %101, %102 : vector<5x16xf32>
    %104 = vector.extract_strided_slice %47 {offsets = [0, 96], sizes = [5, 16], strides = [1, 1]} : vector<5x192xf32> to vector<5x16xf32>
    %105 = vector.extract_strided_slice %47 {offsets = [0, 160], sizes = [5, 16], strides = [1, 1]} : vector<5x192xf32> to vector<5x16xf32>
    %106 = arith.truncf %103 : vector<5x16xf32> to vector<5x16xbf16>
    %107 = arith.truncf %104 : vector<5x16xf32> to vector<5x16xbf16>
    %cst_52 = arith.constant dense<0.000000e+00> : vector<5x5xf32>
    %108 = tpu.matmul %106, %107, %cst_52 {dimension_numbers = #tpu.dot_dimension_numbers<[1], [1], [0], [0], [0, 0, 1, 0], [], []>} : vector<5x16xbf16>, vector<5x16xbf16>, vector<5x5xf32> -> vector<5x5xf32>
    %cst_53 = arith.constant dense<0xFF800000> : vector<5xf32>
    %109 = vector.multi_reduction <maximumf>, %108, %cst_53 [1] : vector<5x5xf32> to vector<5xf32>
    %110 = vector.shape_cast %109 : vector<5xf32> to vector<5x1xf32>
    %111 = vector.broadcast %110 : vector<5x1xf32> to vector<5x5xf32>
    %112 = arith.subf %108, %111 : vector<5x5xf32>
    %113 = math.exp %112 : vector<5x5xf32>
    %cst_54 = arith.constant dense<0.000000e+00> : vector<5xf32>
    %114 = vector.multi_reduction <add>, %113, %cst_54 [1] : vector<5x5xf32> to vector<5xf32>
    %115 = vector.shape_cast %114 : vector<5xf32> to vector<5x1xf32>
    %116 = tpu.reciprocal %115 {approx = true} : vector<5x1xf32> -> vector<5x1xf32>
    %117 = vector.broadcast %116 : vector<5x1xf32> to vector<5x5xf32>
    %118 = arith.mulf %113, %117 : vector<5x5xf32>
    %119 = arith.truncf %118 : vector<5x5xf32> to vector<5x5xbf16>
    %120 = arith.truncf %105 : vector<5x16xf32> to vector<5x16xbf16>
    %cst_55 = arith.constant dense<0.000000e+00> : vector<5x16xf32>
    %121 = tpu.matmul %119, %120, %cst_55 {dimension_numbers = #tpu.dot_dimension_numbers<[1], [0], [0], [1], [0, 0, 1, 1], [], []>} : vector<5x5xbf16>, vector<5x16xbf16>, vector<5x16xf32> -> vector<5x16xf32>
    %c0_56 = arith.constant 0 : index
    %c32 = arith.constant 32 : index
    %c0_57 = arith.constant 0 : index
    %122 = vector.load %arg10[%c0_56, %c32, %c0_57] : memref<2x64x64xbf16, #tpu.memory_space<vmem>>, vector<1x16x64xbf16>
    %123 = vector.shape_cast %122 : vector<1x16x64xbf16> to vector<16x64xbf16>
    %124 = arith.truncf %121 : vector<5x16xf32> to vector<5x16xbf16>
    %cst_58 = arith.constant dense<0.000000e+00> : vector<5x64xf32>
    %125 = tpu.matmul %124, %123, %cst_58 {dimension_numbers = #tpu.dot_dimension_numbers<[1], [0], [0], [1], [0, 0, 1, 1], [], []>} : vector<5x16xbf16>, vector<16x64xbf16>, vector<5x64xf32> -> vector<5x64xf32>
    %126 = arith.addf %100, %125 : vector<5x64xf32>
    %127 = vector.extract_strided_slice %47 {offsets = [0, 48], sizes = [5, 16], strides = [1, 1]} : vector<5x192xf32> to vector<5x16xf32>
    %cst_59 = arith.constant 2.500000e-01 : f32
    %128 = vector.broadcast %cst_59 : f32 to vector<5x16xf32>
    %129 = arith.mulf %127, %128 : vector<5x16xf32>
    %130 = vector.extract_strided_slice %47 {offsets = [0, 112], sizes = [5, 16], strides = [1, 1]} : vector<5x192xf32> to vector<5x16xf32>
    %131 = vector.extract_strided_slice %47 {offsets = [0, 176], sizes = [5, 16], strides = [1, 1]} : vector<5x192xf32> to vector<5x16xf32>
    %132 = arith.truncf %129 : vector<5x16xf32> to vector<5x16xbf16>
    %133 = arith.truncf %130 : vector<5x16xf32> to vector<5x16xbf16>
    %cst_60 = arith.constant dense<0.000000e+00> : vector<5x5xf32>
    %134 = tpu.matmul %132, %133, %cst_60 {dimension_numbers = #tpu.dot_dimension_numbers<[1], [1], [0], [0], [0, 0, 1, 0], [], []>} : vector<5x16xbf16>, vector<5x16xbf16>, vector<5x5xf32> -> vector<5x5xf32>
    %cst_61 = arith.constant dense<0xFF800000> : vector<5xf32>
    %135 = vector.multi_reduction <maximumf>, %134, %cst_61 [1] : vector<5x5xf32> to vector<5xf32>
    %136 = vector.shape_cast %135 : vector<5xf32> to vector<5x1xf32>
    %137 = vector.broadcast %136 : vector<5x1xf32> to vector<5x5xf32>
    %138 = arith.subf %134, %137 : vector<5x5xf32>
    %139 = math.exp %138 : vector<5x5xf32>
    %cst_62 = arith.constant dense<0.000000e+00> : vector<5xf32>
    %140 = vector.multi_reduction <add>, %139, %cst_62 [1] : vector<5x5xf32> to vector<5xf32>
    %141 = vector.shape_cast %140 : vector<5xf32> to vector<5x1xf32>
    %142 = tpu.reciprocal %141 {approx = true} : vector<5x1xf32> -> vector<5x1xf32>
    %143 = vector.broadcast %142 : vector<5x1xf32> to vector<5x5xf32>
    %144 = arith.mulf %139, %143 : vector<5x5xf32>
    %145 = arith.truncf %144 : vector<5x5xf32> to vector<5x5xbf16>
    %146 = arith.truncf %131 : vector<5x16xf32> to vector<5x16xbf16>
    %cst_63 = arith.constant dense<0.000000e+00> : vector<5x16xf32>
    %147 = tpu.matmul %145, %146, %cst_63 {dimension_numbers = #tpu.dot_dimension_numbers<[1], [0], [0], [1], [0, 0, 1, 1], [], []>} : vector<5x5xbf16>, vector<5x16xbf16>, vector<5x16xf32> -> vector<5x16xf32>
    %c0_64 = arith.constant 0 : index
    %c48 = arith.constant 48 : index
    %c0_65 = arith.constant 0 : index
    %148 = vector.load %arg10[%c0_64, %c48, %c0_65] : memref<2x64x64xbf16, #tpu.memory_space<vmem>>, vector<1x16x64xbf16>
    %149 = vector.shape_cast %148 : vector<1x16x64xbf16> to vector<16x64xbf16>
    %150 = arith.truncf %147 : vector<5x16xf32> to vector<5x16xbf16>
    %cst_66 = arith.constant dense<0.000000e+00> : vector<5x64xf32>
    %151 = tpu.matmul %150, %149, %cst_66 {dimension_numbers = #tpu.dot_dimension_numbers<[1], [0], [0], [1], [0, 0, 1, 1], [], []>} : vector<5x16xbf16>, vector<16x64xbf16>, vector<5x64xf32> -> vector<5x64xf32>
    %152 = arith.addf %126, %151 : vector<5x64xf32>
    %153 = arith.addf %13, %152 : vector<5x64xf32>
    %c0_67 = arith.constant 0 : index
    %c0_68 = arith.constant 0 : index
    %c0_69 = arith.constant 0 : index
    %154 = vector.load %arg11[%c0_67, %c0_68, %c0_69] : memref<2x1x64xf32, #tpu.memory_space<vmem>>, vector<1x1x64xf32>
    %155 = vector.shape_cast %154 : vector<1x1x64xf32> to vector<1x64xf32>
    %156 = vector.broadcast %155 : vector<1x64xf32> to vector<5x64xf32>
    %157 = arith.addf %153, %156 : vector<5x64xf32>
    %c0_70 = arith.constant 0 : index
    %c0_71 = arith.constant 0 : index
    %c0_72 = arith.constant 0 : index
    %158 = vector.load %arg12[%c0_70, %c0_71, %c0_72] : memref<2x1x64xf32, #tpu.memory_space<vmem>>, vector<1x1x64xf32>
    %159 = vector.shape_cast %158 : vector<1x1x64xf32> to vector<1x64xf32>
    %c0_73 = arith.constant 0 : index
    %c0_74 = arith.constant 0 : index
    %c0_75 = arith.constant 0 : index
    %160 = vector.load %arg13[%c0_73, %c0_74, %c0_75] : memref<2x1x64xf32, #tpu.memory_space<vmem>>, vector<1x1x64xf32>
    %161 = vector.shape_cast %160 : vector<1x1x64xf32> to vector<1x64xf32>
    %cst_76 = arith.constant dense<0.000000e+00> : vector<5xf32>
    %162 = vector.multi_reduction <add>, %157, %cst_76 [1] : vector<5x64xf32> to vector<5xf32>
    %163 = vector.shape_cast %162 : vector<5xf32> to vector<5x1xf32>
    %cst_77 = arith.constant 6.400000e+01 : f32
    %164 = vector.broadcast %cst_77 : f32 to vector<5x1xf32>
    %165 = arith.divf %163, %164 : vector<5x1xf32>
    %166 = vector.broadcast %165 : vector<5x1xf32> to vector<5x64xf32>
    %167 = arith.subf %157, %166 : vector<5x64xf32>
    %168 = arith.mulf %167, %167 : vector<5x64xf32>
    %cst_78 = arith.constant dense<0.000000e+00> : vector<5xf32>
    %169 = vector.multi_reduction <add>, %168, %cst_78 [1] : vector<5x64xf32> to vector<5xf32>
    %170 = vector.shape_cast %169 : vector<5xf32> to vector<5x1xf32>
    %cst_79 = arith.constant 6.400000e+01 : f32
    %171 = vector.broadcast %cst_79 : f32 to vector<5x1xf32>
    %172 = arith.divf %170, %171 : vector<5x1xf32>
    %173 = vector.broadcast %165 : vector<5x1xf32> to vector<5x64xf32>
    %174 = arith.subf %157, %173 : vector<5x64xf32>
    %cst_80 = arith.constant 9.99999997E-7 : f32
    %175 = vector.broadcast %cst_80 : f32 to vector<5x1xf32>
    %176 = arith.addf %172, %175 : vector<5x1xf32>
    %177 = math.rsqrt %176 : vector<5x1xf32>
    %178 = vector.broadcast %177 : vector<5x1xf32> to vector<5x64xf32>
    %179 = arith.mulf %174, %178 : vector<5x64xf32>
    %180 = vector.broadcast %159 : vector<1x64xf32> to vector<5x64xf32>
    %181 = arith.mulf %179, %180 : vector<5x64xf32>
    %182 = vector.broadcast %161 : vector<1x64xf32> to vector<5x64xf32>
    %183 = arith.addf %181, %182 : vector<5x64xf32>
    %c0_81 = arith.constant 0 : index
    %c0_82 = arith.constant 0 : index
    %c0_83 = arith.constant 0 : index
    %184 = vector.load %arg14[%c0_81, %c0_82, %c0_83] : memref<2x64x256xbf16, #tpu.memory_space<vmem>>, vector<1x64x256xbf16>
    %185 = vector.shape_cast %184 : vector<1x64x256xbf16> to vector<64x256xbf16>
    %186 = arith.truncf %183 : vector<5x64xf32> to vector<5x64xbf16>
    %cst_84 = arith.constant dense<0.000000e+00> : vector<5x256xf32>
    %187 = tpu.matmul %186, %185, %cst_84 {dimension_numbers = #tpu.dot_dimension_numbers<[1], [0], [0], [1], [0, 0, 1, 1], [], []>} : vector<5x64xbf16>, vector<64x256xbf16>, vector<5x256xf32> -> vector<5x256xf32>
    %c0_85 = arith.constant 0 : index
    %c0_86 = arith.constant 0 : index
    %c0_87 = arith.constant 0 : index
    %188 = vector.load %arg15[%c0_85, %c0_86, %c0_87] : memref<2x1x256xf32, #tpu.memory_space<vmem>>, vector<1x1x256xf32>
    %189 = vector.shape_cast %188 : vector<1x1x256xf32> to vector<1x256xf32>
    %190 = vector.broadcast %189 : vector<1x256xf32> to vector<5x256xf32>
    %191 = arith.addf %187, %190 : vector<5x256xf32>
    %192 = arith.mulf %191, %191 : vector<5x256xf32>
    %193 = arith.mulf %191, %192 : vector<5x256xf32>
    %cst_88 = arith.constant 4.471500e-02 : f32
    %194 = vector.broadcast %cst_88 : f32 to vector<5x256xf32>
    %195 = arith.mulf %194, %193 : vector<5x256xf32>
    %196 = arith.addf %191, %195 : vector<5x256xf32>
    %cst_89 = arith.constant 0.797884583 : f32
    %197 = vector.broadcast %cst_89 : f32 to vector<5x256xf32>
    %198 = arith.mulf %197, %196 : vector<5x256xf32>
    %199 = math.tanh %198 : vector<5x256xf32>
    %cst_90 = arith.constant 1.000000e+00 : f32
    %200 = vector.broadcast %cst_90 : f32 to vector<5x256xf32>
    %201 = arith.addf %200, %199 : vector<5x256xf32>
    %cst_91 = arith.constant 5.000000e-01 : f32
    %202 = vector.broadcast %cst_91 : f32 to vector<5x256xf32>
    %203 = arith.mulf %202, %201 : vector<5x256xf32>
    %204 = arith.mulf %191, %203 : vector<5x256xf32>
    %c0_92 = arith.constant 0 : index
    %c0_93 = arith.constant 0 : index
    %c0_94 = arith.constant 0 : index
    %205 = vector.load %arg16[%c0_92, %c0_93, %c0_94] : memref<2x256x64xbf16, #tpu.memory_space<vmem>>, vector<1x256x64xbf16>
    %206 = vector.shape_cast %205 : vector<1x256x64xbf16> to vector<256x64xbf16>
    %207 = arith.truncf %204 : vector<5x256xf32> to vector<5x256xbf16>
    %cst_95 = arith.constant dense<0.000000e+00> : vector<5x64xf32>
    %208 = tpu.matmul %207, %206, %cst_95 {dimension_numbers = #tpu.dot_dimension_numbers<[1], [0], [0], [1], [0, 0, 1, 1], [], []>} : vector<5x256xbf16>, vector<256x64xbf16>, vector<5x64xf32> -> vector<5x64xf32>
    %209 = arith.addf %157, %208 : vector<5x64xf32>
    %c0_96 = arith.constant 0 : index
    %c0_97 = arith.constant 0 : index
    %c0_98 = arith.constant 0 : index
    %210 = vector.load %arg17[%c0_96, %c0_97, %c0_98] : memref<2x1x64xf32, #tpu.memory_space<vmem>>, vector<1x1x64xf32>
    %211 = vector.shape_cast %210 : vector<1x1x64xf32> to vector<1x64xf32>
    %212 = vector.broadcast %211 : vector<1x64xf32> to vector<5x64xf32>
    %213 = arith.addf %209, %212 : vector<5x64xf32>
    %c1_99 = arith.constant 1 : index
    %c0_100 = arith.constant 0 : index
    %c0_101 = arith.constant 0 : index
    %214 = vector.load %arg6[%c1_99, %c0_100, %c0_101] : memref<2x1x64xf32, #tpu.memory_space<vmem>>, vector<1x1x64xf32>
    %215 = vector.shape_cast %214 : vector<1x1x64xf32> to vector<1x64xf32>
    %c1_102 = arith.constant 1 : index
    %c0_103 = arith.constant 0 : index
    %c0_104 = arith.constant 0 : index
    %216 = vector.load %arg7[%c1_102, %c0_103, %c0_104] : memref<2x1x64xf32, #tpu.memory_space<vmem>>, vector<1x1x64xf32>
    %217 = vector.shape_cast %216 : vector<1x1x64xf32> to vector<1x64xf32>
    %cst_105 = arith.constant dense<0.000000e+00> : vector<5xf32>
    %218 = vector.multi_reduction <add>, %213, %cst_105 [1] : vector<5x64xf32> to vector<5xf32>
    %219 = vector.shape_cast %218 : vector<5xf32> to vector<5x1xf32>
    %cst_106 = arith.constant 6.400000e+01 : f32
    %220 = vector.broadcast %cst_106 : f32 to vector<5x1xf32>
    %221 = arith.divf %219, %220 : vector<5x1xf32>
    %222 = vector.broadcast %221 : vector<5x1xf32> to vector<5x64xf32>
    %223 = arith.subf %213, %222 : vector<5x64xf32>
    %224 = arith.mulf %223, %223 : vector<5x64xf32>
    %cst_107 = arith.constant dense<0.000000e+00> : vector<5xf32>
    %225 = vector.multi_reduction <add>, %224, %cst_107 [1] : vector<5x64xf32> to vector<5xf32>
    %226 = vector.shape_cast %225 : vector<5xf32> to vector<5x1xf32>
    %cst_108 = arith.constant 6.400000e+01 : f32
    %227 = vector.broadcast %cst_108 : f32 to vector<5x1xf32>
    %228 = arith.divf %226, %227 : vector<5x1xf32>
    %229 = vector.broadcast %221 : vector<5x1xf32> to vector<5x64xf32>
    %230 = arith.subf %213, %229 : vector<5x64xf32>
    %cst_109 = arith.constant 9.99999997E-7 : f32
    %231 = vector.broadcast %cst_109 : f32 to vector<5x1xf32>
    %232 = arith.addf %228, %231 : vector<5x1xf32>
    %233 = math.rsqrt %232 : vector<5x1xf32>
    %234 = vector.broadcast %233 : vector<5x1xf32> to vector<5x64xf32>
    %235 = arith.mulf %230, %234 : vector<5x64xf32>
    %236 = vector.broadcast %215 : vector<1x64xf32> to vector<5x64xf32>
    %237 = arith.mulf %235, %236 : vector<5x64xf32>
    %238 = vector.broadcast %217 : vector<1x64xf32> to vector<5x64xf32>
    %239 = arith.addf %237, %238 : vector<5x64xf32>
    %c1_110 = arith.constant 1 : index
    %c0_111 = arith.constant 0 : index
    %c0_112 = arith.constant 0 : index
    %240 = vector.load %arg8[%c1_110, %c0_111, %c0_112] : memref<2x64x192xbf16, #tpu.memory_space<vmem>>, vector<1x64x192xbf16>
    %241 = vector.shape_cast %240 : vector<1x64x192xbf16> to vector<64x192xbf16>
    %242 = arith.truncf %239 : vector<5x64xf32> to vector<5x64xbf16>
    %cst_113 = arith.constant dense<0.000000e+00> : vector<5x192xf32>
    %243 = tpu.matmul %242, %241, %cst_113 {dimension_numbers = #tpu.dot_dimension_numbers<[1], [0], [0], [1], [0, 0, 1, 1], [], []>} : vector<5x64xbf16>, vector<64x192xbf16>, vector<5x192xf32> -> vector<5x192xf32>
    %c1_114 = arith.constant 1 : index
    %c0_115 = arith.constant 0 : index
    %c0_116 = arith.constant 0 : index
    %244 = vector.load %arg9[%c1_114, %c0_115, %c0_116] : memref<2x1x192xf32, #tpu.memory_space<vmem>>, vector<1x1x192xf32>
    %245 = vector.shape_cast %244 : vector<1x1x192xf32> to vector<1x192xf32>
    %246 = vector.broadcast %245 : vector<1x192xf32> to vector<5x192xf32>
    %247 = arith.addf %243, %246 : vector<5x192xf32>
    %cst_117 = arith.constant 0.000000e+00 : f32
    %248 = vector.broadcast %cst_117 : f32 to vector<5x64xf32>
    %249 = vector.extract_strided_slice %247 {offsets = [0, 0], sizes = [5, 16], strides = [1, 1]} : vector<5x192xf32> to vector<5x16xf32>
    %cst_118 = arith.constant 2.500000e-01 : f32
    %250 = vector.broadcast %cst_118 : f32 to vector<5x16xf32>
    %251 = arith.mulf %249, %250 : vector<5x16xf32>
    %252 = vector.extract_strided_slice %247 {offsets = [0, 64], sizes = [5, 16], strides = [1, 1]} : vector<5x192xf32> to vector<5x16xf32>
    %253 = vector.extract_strided_slice %247 {offsets = [0, 128], sizes = [5, 16], strides = [1, 1]} : vector<5x192xf32> to vector<5x16xf32>
    %254 = arith.truncf %251 : vector<5x16xf32> to vector<5x16xbf16>
    %255 = arith.truncf %252 : vector<5x16xf32> to vector<5x16xbf16>
    %cst_119 = arith.constant dense<0.000000e+00> : vector<5x5xf32>
    %256 = tpu.matmul %254, %255, %cst_119 {dimension_numbers = #tpu.dot_dimension_numbers<[1], [1], [0], [0], [0, 0, 1, 0], [], []>} : vector<5x16xbf16>, vector<5x16xbf16>, vector<5x5xf32> -> vector<5x5xf32>
    %cst_120 = arith.constant dense<0xFF800000> : vector<5xf32>
    %257 = vector.multi_reduction <maximumf>, %256, %cst_120 [1] : vector<5x5xf32> to vector<5xf32>
    %258 = vector.shape_cast %257 : vector<5xf32> to vector<5x1xf32>
    %259 = vector.broadcast %258 : vector<5x1xf32> to vector<5x5xf32>
    %260 = arith.subf %256, %259 : vector<5x5xf32>
    %261 = math.exp %260 : vector<5x5xf32>
    %cst_121 = arith.constant dense<0.000000e+00> : vector<5xf32>
    %262 = vector.multi_reduction <add>, %261, %cst_121 [1] : vector<5x5xf32> to vector<5xf32>
    %263 = vector.shape_cast %262 : vector<5xf32> to vector<5x1xf32>
    %264 = tpu.reciprocal %263 {approx = true} : vector<5x1xf32> -> vector<5x1xf32>
    %265 = vector.broadcast %264 : vector<5x1xf32> to vector<5x5xf32>
    %266 = arith.mulf %261, %265 : vector<5x5xf32>
    %267 = arith.truncf %266 : vector<5x5xf32> to vector<5x5xbf16>
    %268 = arith.truncf %253 : vector<5x16xf32> to vector<5x16xbf16>
    %cst_122 = arith.constant dense<0.000000e+00> : vector<5x16xf32>
    %269 = tpu.matmul %267, %268, %cst_122 {dimension_numbers = #tpu.dot_dimension_numbers<[1], [0], [0], [1], [0, 0, 1, 1], [], []>} : vector<5x5xbf16>, vector<5x16xbf16>, vector<5x16xf32> -> vector<5x16xf32>
    %c1_123 = arith.constant 1 : index
    %c0_124 = arith.constant 0 : index
    %c0_125 = arith.constant 0 : index
    %270 = vector.load %arg10[%c1_123, %c0_124, %c0_125] : memref<2x64x64xbf16, #tpu.memory_space<vmem>>, vector<1x16x64xbf16>
    %271 = vector.shape_cast %270 : vector<1x16x64xbf16> to vector<16x64xbf16>
    %272 = arith.truncf %269 : vector<5x16xf32> to vector<5x16xbf16>
    %cst_126 = arith.constant dense<0.000000e+00> : vector<5x64xf32>
    %273 = tpu.matmul %272, %271, %cst_126 {dimension_numbers = #tpu.dot_dimension_numbers<[1], [0], [0], [1], [0, 0, 1, 1], [], []>} : vector<5x16xbf16>, vector<16x64xbf16>, vector<5x64xf32> -> vector<5x64xf32>
    %274 = arith.addf %248, %273 : vector<5x64xf32>
    %275 = vector.extract_strided_slice %247 {offsets = [0, 16], sizes = [5, 16], strides = [1, 1]} : vector<5x192xf32> to vector<5x16xf32>
    %cst_127 = arith.constant 2.500000e-01 : f32
    %276 = vector.broadcast %cst_127 : f32 to vector<5x16xf32>
    %277 = arith.mulf %275, %276 : vector<5x16xf32>
    %278 = vector.extract_strided_slice %247 {offsets = [0, 80], sizes = [5, 16], strides = [1, 1]} : vector<5x192xf32> to vector<5x16xf32>
    %279 = vector.extract_strided_slice %247 {offsets = [0, 144], sizes = [5, 16], strides = [1, 1]} : vector<5x192xf32> to vector<5x16xf32>
    %280 = arith.truncf %277 : vector<5x16xf32> to vector<5x16xbf16>
    %281 = arith.truncf %278 : vector<5x16xf32> to vector<5x16xbf16>
    %cst_128 = arith.constant dense<0.000000e+00> : vector<5x5xf32>
    %282 = tpu.matmul %280, %281, %cst_128 {dimension_numbers = #tpu.dot_dimension_numbers<[1], [1], [0], [0], [0, 0, 1, 0], [], []>} : vector<5x16xbf16>, vector<5x16xbf16>, vector<5x5xf32> -> vector<5x5xf32>
    %cst_129 = arith.constant dense<0xFF800000> : vector<5xf32>
    %283 = vector.multi_reduction <maximumf>, %282, %cst_129 [1] : vector<5x5xf32> to vector<5xf32>
    %284 = vector.shape_cast %283 : vector<5xf32> to vector<5x1xf32>
    %285 = vector.broadcast %284 : vector<5x1xf32> to vector<5x5xf32>
    %286 = arith.subf %282, %285 : vector<5x5xf32>
    %287 = math.exp %286 : vector<5x5xf32>
    %cst_130 = arith.constant dense<0.000000e+00> : vector<5xf32>
    %288 = vector.multi_reduction <add>, %287, %cst_130 [1] : vector<5x5xf32> to vector<5xf32>
    %289 = vector.shape_cast %288 : vector<5xf32> to vector<5x1xf32>
    %290 = tpu.reciprocal %289 {approx = true} : vector<5x1xf32> -> vector<5x1xf32>
    %291 = vector.broadcast %290 : vector<5x1xf32> to vector<5x5xf32>
    %292 = arith.mulf %287, %291 : vector<5x5xf32>
    %293 = arith.truncf %292 : vector<5x5xf32> to vector<5x5xbf16>
    %294 = arith.truncf %279 : vector<5x16xf32> to vector<5x16xbf16>
    %cst_131 = arith.constant dense<0.000000e+00> : vector<5x16xf32>
    %295 = tpu.matmul %293, %294, %cst_131 {dimension_numbers = #tpu.dot_dimension_numbers<[1], [0], [0], [1], [0, 0, 1, 1], [], []>} : vector<5x5xbf16>, vector<5x16xbf16>, vector<5x16xf32> -> vector<5x16xf32>
    %c1_132 = arith.constant 1 : index
    %c16_133 = arith.constant 16 : index
    %c0_134 = arith.constant 0 : index
    %296 = vector.load %arg10[%c1_132, %c16_133, %c0_134] : memref<2x64x64xbf16, #tpu.memory_space<vmem>>, vector<1x16x64xbf16>
    %297 = vector.shape_cast %296 : vector<1x16x64xbf16> to vector<16x64xbf16>
    %298 = arith.truncf %295 : vector<5x16xf32> to vector<5x16xbf16>
    %cst_135 = arith.constant dense<0.000000e+00> : vector<5x64xf32>
    %299 = tpu.matmul %298, %297, %cst_135 {dimension_numbers = #tpu.dot_dimension_numbers<[1], [0], [0], [1], [0, 0, 1, 1], [], []>} : vector<5x16xbf16>, vector<16x64xbf16>, vector<5x64xf32> -> vector<5x64xf32>
    %300 = arith.addf %274, %299 : vector<5x64xf32>
    %301 = vector.extract_strided_slice %247 {offsets = [0, 32], sizes = [5, 16], strides = [1, 1]} : vector<5x192xf32> to vector<5x16xf32>
    %cst_136 = arith.constant 2.500000e-01 : f32
    %302 = vector.broadcast %cst_136 : f32 to vector<5x16xf32>
    %303 = arith.mulf %301, %302 : vector<5x16xf32>
    %304 = vector.extract_strided_slice %247 {offsets = [0, 96], sizes = [5, 16], strides = [1, 1]} : vector<5x192xf32> to vector<5x16xf32>
    %305 = vector.extract_strided_slice %247 {offsets = [0, 160], sizes = [5, 16], strides = [1, 1]} : vector<5x192xf32> to vector<5x16xf32>
    %306 = arith.truncf %303 : vector<5x16xf32> to vector<5x16xbf16>
    %307 = arith.truncf %304 : vector<5x16xf32> to vector<5x16xbf16>
    %cst_137 = arith.constant dense<0.000000e+00> : vector<5x5xf32>
    %308 = tpu.matmul %306, %307, %cst_137 {dimension_numbers = #tpu.dot_dimension_numbers<[1], [1], [0], [0], [0, 0, 1, 0], [], []>} : vector<5x16xbf16>, vector<5x16xbf16>, vector<5x5xf32> -> vector<5x5xf32>
    %cst_138 = arith.constant dense<0xFF800000> : vector<5xf32>
    %309 = vector.multi_reduction <maximumf>, %308, %cst_138 [1] : vector<5x5xf32> to vector<5xf32>
    %310 = vector.shape_cast %309 : vector<5xf32> to vector<5x1xf32>
    %311 = vector.broadcast %310 : vector<5x1xf32> to vector<5x5xf32>
    %312 = arith.subf %308, %311 : vector<5x5xf32>
    %313 = math.exp %312 : vector<5x5xf32>
    %cst_139 = arith.constant dense<0.000000e+00> : vector<5xf32>
    %314 = vector.multi_reduction <add>, %313, %cst_139 [1] : vector<5x5xf32> to vector<5xf32>
    %315 = vector.shape_cast %314 : vector<5xf32> to vector<5x1xf32>
    %316 = tpu.reciprocal %315 {approx = true} : vector<5x1xf32> -> vector<5x1xf32>
    %317 = vector.broadcast %316 : vector<5x1xf32> to vector<5x5xf32>
    %318 = arith.mulf %313, %317 : vector<5x5xf32>
    %319 = arith.truncf %318 : vector<5x5xf32> to vector<5x5xbf16>
    %320 = arith.truncf %305 : vector<5x16xf32> to vector<5x16xbf16>
    %cst_140 = arith.constant dense<0.000000e+00> : vector<5x16xf32>
    %321 = tpu.matmul %319, %320, %cst_140 {dimension_numbers = #tpu.dot_dimension_numbers<[1], [0], [0], [1], [0, 0, 1, 1], [], []>} : vector<5x5xbf16>, vector<5x16xbf16>, vector<5x16xf32> -> vector<5x16xf32>
    %c1_141 = arith.constant 1 : index
    %c32_142 = arith.constant 32 : index
    %c0_143 = arith.constant 0 : index
    %322 = vector.load %arg10[%c1_141, %c32_142, %c0_143] : memref<2x64x64xbf16, #tpu.memory_space<vmem>>, vector<1x16x64xbf16>
    %323 = vector.shape_cast %322 : vector<1x16x64xbf16> to vector<16x64xbf16>
    %324 = arith.truncf %321 : vector<5x16xf32> to vector<5x16xbf16>
    %cst_144 = arith.constant dense<0.000000e+00> : vector<5x64xf32>
    %325 = tpu.matmul %324, %323, %cst_144 {dimension_numbers = #tpu.dot_dimension_numbers<[1], [0], [0], [1], [0, 0, 1, 1], [], []>} : vector<5x16xbf16>, vector<16x64xbf16>, vector<5x64xf32> -> vector<5x64xf32>
    %326 = arith.addf %300, %325 : vector<5x64xf32>
    %327 = vector.extract_strided_slice %247 {offsets = [0, 48], sizes = [5, 16], strides = [1, 1]} : vector<5x192xf32> to vector<5x16xf32>
    %cst_145 = arith.constant 2.500000e-01 : f32
    %328 = vector.broadcast %cst_145 : f32 to vector<5x16xf32>
    %329 = arith.mulf %327, %328 : vector<5x16xf32>
    %330 = vector.extract_strided_slice %247 {offsets = [0, 112], sizes = [5, 16], strides = [1, 1]} : vector<5x192xf32> to vector<5x16xf32>
    %331 = vector.extract_strided_slice %247 {offsets = [0, 176], sizes = [5, 16], strides = [1, 1]} : vector<5x192xf32> to vector<5x16xf32>
    %332 = arith.truncf %329 : vector<5x16xf32> to vector<5x16xbf16>
    %333 = arith.truncf %330 : vector<5x16xf32> to vector<5x16xbf16>
    %cst_146 = arith.constant dense<0.000000e+00> : vector<5x5xf32>
    %334 = tpu.matmul %332, %333, %cst_146 {dimension_numbers = #tpu.dot_dimension_numbers<[1], [1], [0], [0], [0, 0, 1, 0], [], []>} : vector<5x16xbf16>, vector<5x16xbf16>, vector<5x5xf32> -> vector<5x5xf32>
    %cst_147 = arith.constant dense<0xFF800000> : vector<5xf32>
    %335 = vector.multi_reduction <maximumf>, %334, %cst_147 [1] : vector<5x5xf32> to vector<5xf32>
    %336 = vector.shape_cast %335 : vector<5xf32> to vector<5x1xf32>
    %337 = vector.broadcast %336 : vector<5x1xf32> to vector<5x5xf32>
    %338 = arith.subf %334, %337 : vector<5x5xf32>
    %339 = math.exp %338 : vector<5x5xf32>
    %cst_148 = arith.constant dense<0.000000e+00> : vector<5xf32>
    %340 = vector.multi_reduction <add>, %339, %cst_148 [1] : vector<5x5xf32> to vector<5xf32>
    %341 = vector.shape_cast %340 : vector<5xf32> to vector<5x1xf32>
    %342 = tpu.reciprocal %341 {approx = true} : vector<5x1xf32> -> vector<5x1xf32>
    %343 = vector.broadcast %342 : vector<5x1xf32> to vector<5x5xf32>
    %344 = arith.mulf %339, %343 : vector<5x5xf32>
    %345 = arith.truncf %344 : vector<5x5xf32> to vector<5x5xbf16>
    %346 = arith.truncf %331 : vector<5x16xf32> to vector<5x16xbf16>
    %cst_149 = arith.constant dense<0.000000e+00> : vector<5x16xf32>
    %347 = tpu.matmul %345, %346, %cst_149 {dimension_numbers = #tpu.dot_dimension_numbers<[1], [0], [0], [1], [0, 0, 1, 1], [], []>} : vector<5x5xbf16>, vector<5x16xbf16>, vector<5x16xf32> -> vector<5x16xf32>
    %c1_150 = arith.constant 1 : index
    %c48_151 = arith.constant 48 : index
    %c0_152 = arith.constant 0 : index
    %348 = vector.load %arg10[%c1_150, %c48_151, %c0_152] : memref<2x64x64xbf16, #tpu.memory_space<vmem>>, vector<1x16x64xbf16>
    %349 = vector.shape_cast %348 : vector<1x16x64xbf16> to vector<16x64xbf16>
    %350 = arith.truncf %347 : vector<5x16xf32> to vector<5x16xbf16>
    %cst_153 = arith.constant dense<0.000000e+00> : vector<5x64xf32>
    %351 = tpu.matmul %350, %349, %cst_153 {dimension_numbers = #tpu.dot_dimension_numbers<[1], [0], [0], [1], [0, 0, 1, 1], [], []>} : vector<5x16xbf16>, vector<16x64xbf16>, vector<5x64xf32> -> vector<5x64xf32>
    %352 = arith.addf %326, %351 : vector<5x64xf32>
    %353 = arith.addf %213, %352 : vector<5x64xf32>
    %c1_154 = arith.constant 1 : index
    %c0_155 = arith.constant 0 : index
    %c0_156 = arith.constant 0 : index
    %354 = vector.load %arg11[%c1_154, %c0_155, %c0_156] : memref<2x1x64xf32, #tpu.memory_space<vmem>>, vector<1x1x64xf32>
    %355 = vector.shape_cast %354 : vector<1x1x64xf32> to vector<1x64xf32>
    %356 = vector.broadcast %355 : vector<1x64xf32> to vector<5x64xf32>
    %357 = arith.addf %353, %356 : vector<5x64xf32>
    %c1_157 = arith.constant 1 : index
    %c0_158 = arith.constant 0 : index
    %c0_159 = arith.constant 0 : index
    %358 = vector.load %arg12[%c1_157, %c0_158, %c0_159] : memref<2x1x64xf32, #tpu.memory_space<vmem>>, vector<1x1x64xf32>
    %359 = vector.shape_cast %358 : vector<1x1x64xf32> to vector<1x64xf32>
    %c1_160 = arith.constant 1 : index
    %c0_161 = arith.constant 0 : index
    %c0_162 = arith.constant 0 : index
    %360 = vector.load %arg13[%c1_160, %c0_161, %c0_162] : memref<2x1x64xf32, #tpu.memory_space<vmem>>, vector<1x1x64xf32>
    %361 = vector.shape_cast %360 : vector<1x1x64xf32> to vector<1x64xf32>
    %cst_163 = arith.constant dense<0.000000e+00> : vector<5xf32>
    %362 = vector.multi_reduction <add>, %357, %cst_163 [1] : vector<5x64xf32> to vector<5xf32>
    %363 = vector.shape_cast %362 : vector<5xf32> to vector<5x1xf32>
    %cst_164 = arith.constant 6.400000e+01 : f32
    %364 = vector.broadcast %cst_164 : f32 to vector<5x1xf32>
    %365 = arith.divf %363, %364 : vector<5x1xf32>
    %366 = vector.broadcast %365 : vector<5x1xf32> to vector<5x64xf32>
    %367 = arith.subf %357, %366 : vector<5x64xf32>
    %368 = arith.mulf %367, %367 : vector<5x64xf32>
    %cst_165 = arith.constant dense<0.000000e+00> : vector<5xf32>
    %369 = vector.multi_reduction <add>, %368, %cst_165 [1] : vector<5x64xf32> to vector<5xf32>
    %370 = vector.shape_cast %369 : vector<5xf32> to vector<5x1xf32>
    %cst_166 = arith.constant 6.400000e+01 : f32
    %371 = vector.broadcast %cst_166 : f32 to vector<5x1xf32>
    %372 = arith.divf %370, %371 : vector<5x1xf32>
    %373 = vector.broadcast %365 : vector<5x1xf32> to vector<5x64xf32>
    %374 = arith.subf %357, %373 : vector<5x64xf32>
    %cst_167 = arith.constant 9.99999997E-7 : f32
    %375 = vector.broadcast %cst_167 : f32 to vector<5x1xf32>
    %376 = arith.addf %372, %375 : vector<5x1xf32>
    %377 = math.rsqrt %376 : vector<5x1xf32>
    %378 = vector.broadcast %377 : vector<5x1xf32> to vector<5x64xf32>
    %379 = arith.mulf %374, %378 : vector<5x64xf32>
    %380 = vector.broadcast %359 : vector<1x64xf32> to vector<5x64xf32>
    %381 = arith.mulf %379, %380 : vector<5x64xf32>
    %382 = vector.broadcast %361 : vector<1x64xf32> to vector<5x64xf32>
    %383 = arith.addf %381, %382 : vector<5x64xf32>
    %c1_168 = arith.constant 1 : index
    %c0_169 = arith.constant 0 : index
    %c0_170 = arith.constant 0 : index
    %384 = vector.load %arg14[%c1_168, %c0_169, %c0_170] : memref<2x64x256xbf16, #tpu.memory_space<vmem>>, vector<1x64x256xbf16>
    %385 = vector.shape_cast %384 : vector<1x64x256xbf16> to vector<64x256xbf16>
    %386 = arith.truncf %383 : vector<5x64xf32> to vector<5x64xbf16>
    %cst_171 = arith.constant dense<0.000000e+00> : vector<5x256xf32>
    %387 = tpu.matmul %386, %385, %cst_171 {dimension_numbers = #tpu.dot_dimension_numbers<[1], [0], [0], [1], [0, 0, 1, 1], [], []>} : vector<5x64xbf16>, vector<64x256xbf16>, vector<5x256xf32> -> vector<5x256xf32>
    %c1_172 = arith.constant 1 : index
    %c0_173 = arith.constant 0 : index
    %c0_174 = arith.constant 0 : index
    %388 = vector.load %arg15[%c1_172, %c0_173, %c0_174] : memref<2x1x256xf32, #tpu.memory_space<vmem>>, vector<1x1x256xf32>
    %389 = vector.shape_cast %388 : vector<1x1x256xf32> to vector<1x256xf32>
    %390 = vector.broadcast %389 : vector<1x256xf32> to vector<5x256xf32>
    %391 = arith.addf %387, %390 : vector<5x256xf32>
    %392 = arith.mulf %391, %391 : vector<5x256xf32>
    %393 = arith.mulf %391, %392 : vector<5x256xf32>
    %cst_175 = arith.constant 4.471500e-02 : f32
    %394 = vector.broadcast %cst_175 : f32 to vector<5x256xf32>
    %395 = arith.mulf %394, %393 : vector<5x256xf32>
    %396 = arith.addf %391, %395 : vector<5x256xf32>
    %cst_176 = arith.constant 0.797884583 : f32
    %397 = vector.broadcast %cst_176 : f32 to vector<5x256xf32>
    %398 = arith.mulf %397, %396 : vector<5x256xf32>
    %399 = math.tanh %398 : vector<5x256xf32>
    %cst_177 = arith.constant 1.000000e+00 : f32
    %400 = vector.broadcast %cst_177 : f32 to vector<5x256xf32>
    %401 = arith.addf %400, %399 : vector<5x256xf32>
    %cst_178 = arith.constant 5.000000e-01 : f32
    %402 = vector.broadcast %cst_178 : f32 to vector<5x256xf32>
    %403 = arith.mulf %402, %401 : vector<5x256xf32>
    %404 = arith.mulf %391, %403 : vector<5x256xf32>
    %c1_179 = arith.constant 1 : index
    %c0_180 = arith.constant 0 : index
    %c0_181 = arith.constant 0 : index
    %405 = vector.load %arg16[%c1_179, %c0_180, %c0_181] : memref<2x256x64xbf16, #tpu.memory_space<vmem>>, vector<1x256x64xbf16>
    %406 = vector.shape_cast %405 : vector<1x256x64xbf16> to vector<256x64xbf16>
    %407 = arith.truncf %404 : vector<5x256xf32> to vector<5x256xbf16>
    %cst_182 = arith.constant dense<0.000000e+00> : vector<5x64xf32>
    %408 = tpu.matmul %407, %406, %cst_182 {dimension_numbers = #tpu.dot_dimension_numbers<[1], [0], [0], [1], [0, 0, 1, 1], [], []>} : vector<5x256xbf16>, vector<256x64xbf16>, vector<5x64xf32> -> vector<5x64xf32>
    %409 = arith.addf %357, %408 : vector<5x64xf32>
    %c1_183 = arith.constant 1 : index
    %c0_184 = arith.constant 0 : index
    %c0_185 = arith.constant 0 : index
    %410 = vector.load %arg17[%c1_183, %c0_184, %c0_185] : memref<2x1x64xf32, #tpu.memory_space<vmem>>, vector<1x1x64xf32>
    %411 = vector.shape_cast %410 : vector<1x1x64xf32> to vector<1x64xf32>
    %412 = vector.broadcast %411 : vector<1x64xf32> to vector<5x64xf32>
    %413 = arith.addf %409, %412 : vector<5x64xf32>
    %414 = vector.extract_strided_slice %413 {offsets = [0, 0], sizes = [1, 64], strides = [1, 1]} : vector<5x64xf32> to vector<1x64xf32>
    %c0_186 = arith.constant 0 : index
    %c0_187 = arith.constant 0 : index
    %415 = vector.load %arg18[%c0_186, %c0_187] : memref<1x64xf32, #tpu.memory_space<vmem>>, vector<1x64xf32>
    %c0_188 = arith.constant 0 : index
    %c0_189 = arith.constant 0 : index
    %416 = vector.load %arg19[%c0_188, %c0_189] : memref<1x64xf32, #tpu.memory_space<vmem>>, vector<1x64xf32>
    %cst_190 = arith.constant dense<0.000000e+00> : vector<1xf32>
    %417 = vector.multi_reduction <add>, %414, %cst_190 [1] : vector<1x64xf32> to vector<1xf32>
    %418 = vector.shape_cast %417 : vector<1xf32> to vector<1x1xf32>
    %cst_191 = arith.constant 6.400000e+01 : f32
    %419 = vector.broadcast %cst_191 : f32 to vector<1x1xf32>
    %420 = arith.divf %418, %419 : vector<1x1xf32>
    %421 = vector.broadcast %420 : vector<1x1xf32> to vector<1x64xf32>
    %422 = arith.subf %414, %421 : vector<1x64xf32>
    %423 = arith.mulf %422, %422 : vector<1x64xf32>
    %cst_192 = arith.constant dense<0.000000e+00> : vector<1xf32>
    %424 = vector.multi_reduction <add>, %423, %cst_192 [1] : vector<1x64xf32> to vector<1xf32>
    %425 = vector.shape_cast %424 : vector<1xf32> to vector<1x1xf32>
    %cst_193 = arith.constant 6.400000e+01 : f32
    %426 = vector.broadcast %cst_193 : f32 to vector<1x1xf32>
    %427 = arith.divf %425, %426 : vector<1x1xf32>
    %428 = vector.broadcast %420 : vector<1x1xf32> to vector<1x64xf32>
    %429 = arith.subf %414, %428 : vector<1x64xf32>
    %cst_194 = arith.constant 9.99999997E-7 : f32
    %430 = vector.broadcast %cst_194 : f32 to vector<1x1xf32>
    %431 = arith.addf %427, %430 : vector<1x1xf32>
    %432 = math.rsqrt %431 : vector<1x1xf32>
    %433 = vector.broadcast %432 : vector<1x1xf32> to vector<1x64xf32>
    %434 = arith.mulf %429, %433 : vector<1x64xf32>
    %435 = arith.mulf %434, %415 : vector<1x64xf32>
    %436 = arith.addf %435, %416 : vector<1x64xf32>
    %c0_195 = arith.constant 0 : index
    %c0_196 = arith.constant 0 : index
    %c0_197 = arith.constant 0 : index
    %437 = vector.load %arg20[%c0_195, %c0_196, %c0_197] : memref<1x1x64xf32, #tpu.memory_space<vmem>>, vector<1x1x64xf32>
    %438 = vector.shape_cast %437 : vector<1x1x64xf32> to vector<1x64xf32>
    %439 = vector.shape_cast %436 : vector<1x64xf32> to vector<1x1x64xf32>
    tpu.vector_store %arg20[%c0_195, %c0_196, %c0_197], %439 {strides = array<i32>} : memref<1x1x64xf32, #tpu.memory_space<vmem>>, vector<1x1x64xf32>,
    return
  }
  func.func @transform_0(%arg0: i32) -> (i32, i32, i32) {
    %c0_i32 = arith.constant 0 : i32
    %c0_i32_0 = arith.constant 0 : i32
    %c0_i32_1 = arith.constant 0 : i32
    return %arg0, %c0_i32, %c0_i32_0 : i32, i32, i32
  }
  func.func @transform_1(%arg0: i32) -> (i32, i32) {
    %c0_i32 = arith.constant 0 : i32
    %c0_i32_0 = arith.constant 0 : i32
    %c0_i32_1 = arith.constant 0 : i32
    return %c0_i32, %c0_i32_0 : i32, i32
  }
  func.func @transform_2(%arg0: i32) -> (i32, i32) {
    %c0_i32 = arith.constant 0 : i32
    %c0_i32_0 = arith.constant 0 : i32
    %c0_i32_1 = arith.constant 0 : i32
    return %c0_i32, %c0_i32_0 : i32, i32
  }
  func.func @transform_3(%arg0: i32) -> (i32, i32) {
    %c0_i32 = arith.constant 0 : i32
    %c0_i32_0 = arith.constant 0 : i32
    %c0_i32_1 = arith.constant 0 : i32
    return %c0_i32, %c0_i32_0 : i32, i32
  }
  func.func @transform_4(%arg0: i32) -> (i32, i32) {
    %c0_i32 = arith.constant 0 : i32
    %c0_i32_0 = arith.constant 0 : i32
    %c0_i32_1 = arith.constant 0 : i32
    return %c0_i32, %c0_i32_0 : i32, i32
  }
  func.func @transform_5(%arg0: i32) -> (i32, i32, i32) {
    %c0_i32 = arith.constant 0 : i32
    %c0_i32_0 = arith.constant 0 : i32
    %c0_i32_1 = arith.constant 0 : i32
    %c0_i32_2 = arith.constant 0 : i32
    return %c0_i32, %c0_i32_0, %c0_i32_1 : i32, i32, i32
  }
  func.func @transform_6(%arg0: i32) -> (i32, i32, i32) {
    %c0_i32 = arith.constant 0 : i32
    %c0_i32_0 = arith.constant 0 : i32
    %c0_i32_1 = arith.constant 0 : i32
    %c0_i32_2 = arith.constant 0 : i32
    return %c0_i32, %c0_i32_0, %c0_i32_1 : i32, i32, i32
  }
  func.func @transform_7(%arg0: i32) -> (i32, i32, i32) {
    %c0_i32 = arith.constant 0 : i32
    %c0_i32_0 = arith.constant 0 : i32
    %c0_i32_1 = arith.constant 0 : i32
    %c0_i32_2 = arith.constant 0 : i32
    return %c0_i32, %c0_i32_0, %c0_i32_1 : i32, i32, i32
  }
  func.func @transform_8(%arg0: i32) -> (i32, i32, i32) {
    %c0_i32 = arith.constant 0 : i32
    %c0_i32_0 = arith.constant 0 : i32
    %c0_i32_1 = arith.constant 0 : i32
    %c0_i32_2 = arith.constant 0 : i32
    return %c0_i32, %c0_i32_0, %c0_i32_1 : i32, i32, i32
  }
  func.func @transform_9(%arg0: i32) -> (i32, i32, i32) {
    %c0_i32 = arith.constant 0 : i32
    %c0_i32_0 = arith.constant 0 : i32
    %c0_i32_1 = arith.constant 0 : i32
    %c0_i32_2 = arith.constant 0 : i32
    return %c0_i32, %c0_i32_0, %c0_i32_1 : i32, i32, i32
  }
  func.func @transform_10(%arg0: i32) -> (i32, i32, i32) {
    %c0_i32 = arith.constant 0 : i32
    %c0_i32_0 = arith.constant 0 : i32
    %c0_i32_1 = arith.constant 0 : i32
    %c0_i32_2 = arith.constant 0 : i32
    return %c0_i32, %c0_i32_0, %c0_i32_1 : i32, i32, i32
  }
  func.func @transform_11(%arg0: i32) -> (i32, i32, i32) {
    %c0_i32 = arith.constant 0 : i32
    %c0_i32_0 = arith.constant 0 : i32
    %c0_i32_1 = arith.constant 0 : i32
    %c0_i32_2 = arith.constant 0 : i32
    return %c0_i32, %c0_i32_0, %c0_i32_1 : i32, i32, i32
  }
  func.func @transform_12(%arg0: i32) -> (i32, i32, i32) {
    %c0_i32 = arith.constant 0 : i32
    %c0_i32_0 = arith.constant 0 : i32
    %c0_i32_1 = arith.constant 0 : i32
    %c0_i32_2 = arith.constant 0 : i32
    return %c0_i32, %c0_i32_0, %c0_i32_1 : i32, i32, i32
  }
  func.func @transform_13(%arg0: i32) -> (i32, i32, i32) {
    %c0_i32 = arith.constant 0 : i32
    %c0_i32_0 = arith.constant 0 : i32
    %c0_i32_1 = arith.constant 0 : i32
    %c0_i32_2 = arith.constant 0 : i32
    return %c0_i32, %c0_i32_0, %c0_i32_1 : i32, i32, i32
  }
  func.func @transform_14(%arg0: i32) -> (i32, i32, i32) {
    %c0_i32 = arith.constant 0 : i32
    %c0_i32_0 = arith.constant 0 : i32
    %c0_i32_1 = arith.constant 0 : i32
    %c0_i32_2 = arith.constant 0 : i32
    return %c0_i32, %c0_i32_0, %c0_i32_1 : i32, i32, i32
  }
  func.func @transform_15(%arg0: i32) -> (i32, i32, i32) {
    %c0_i32 = arith.constant 0 : i32
    %c0_i32_0 = arith.constant 0 : i32
    %c0_i32_1 = arith.constant 0 : i32
    %c0_i32_2 = arith.constant 0 : i32
    return %c0_i32, %c0_i32_0, %c0_i32_1 : i32, i32, i32
  }
  func.func @transform_16(%arg0: i32) -> (i32, i32, i32) {
    %c0_i32 = arith.constant 0 : i32
    %c0_i32_0 = arith.constant 0 : i32
    %c0_i32_1 = arith.constant 0 : i32
    %c0_i32_2 = arith.constant 0 : i32
    return %c0_i32, %c0_i32_0, %c0_i32_1 : i32, i32, i32
  }
  func.func @transform_17(%arg0: i32) -> (i32, i32) {
    %c0_i32 = arith.constant 0 : i32
    %c0_i32_0 = arith.constant 0 : i32
    %c0_i32_1 = arith.constant 0 : i32
    return %c0_i32, %c0_i32_0 : i32, i32
  }
  func.func @transform_18(%arg0: i32) -> (i32, i32) {
    %c0_i32 = arith.constant 0 : i32
    %c0_i32_0 = arith.constant 0 : i32
    %c0_i32_1 = arith.constant 0 : i32
    return %c0_i32, %c0_i32_0 : i32, i32
  }
  func.func @transform_19(%arg0: i32) -> (i32, i32, i32) {
    %c0_i32 = arith.constant 0 : i32
    %c0_i32_0 = arith.constant 0 : i32
    %c0_i32_1 = arith.constant 0 : i32
    return %arg0, %c0_i32, %c0_i32_0 : i32, i32, i32
  }
}

</mosaic_0001>

<llo_original>
// kernel: tile.10
$region0: #{tile.10}
  #allocation0 [shape = 's32[1]{0}', space=sflag, size = 0x4, scoped, tag = 'scoped memory for tile.10']
  %s0 = inlined_call_operand.vmem [shape: f32[3], index: 0, kind: input, shape index: {}]
  %s1 = inlined_call_operand.vmem [shape: f32[64,3], index: 1, kind: output, shape index: {}]
  // Predicated region
  $region2: #{tile.10} parent=0 // pred_check
    _
  $region3: #{tile.10} parent=0 // pred_check_branch
    %3 = sbr.rel (0) target = $region5
  $region4: #{tile.10} parent=0 // pred_region
    _
  $region5: #{tile.10} parent=0 // pred_fallthru
    _
  %v4 = vld [vmem:[%s0] ss:$0 sm:$0xff]
  %5 = vst [vmem:[%s1] sm:$0xff] %v4
  %s6 = scalar_lea.vmem %s1, 8
  %7 = vst [vmem:[%s6] sm:$0xff] %v4
  %s8 = scalar_lea.vmem %s1, 16
  %9 = vst [vmem:[%s8] sm:$0xff] %v4
  %s10 = scalar_lea.vmem %s1, 24
  %11 = vst [vmem:[%s10] sm:$0xff] %v4
  %s12 = scalar_lea.vmem %s1, 32
  %13 = vst [vmem:[%s12] sm:$0xff] %v4
  %s14 = scalar_lea.vmem %s1, 40
  %15 = vst [vmem:[%s14] sm:$0xff] %v4
  %s16 = scalar_lea.vmem %s1, 48
  %17 = vst [vmem:[%s16] sm:$0xff] %v4
  %s18 = scalar_lea.vmem %s1, 56
  %19 = vst [vmem:[%s18] sm:$0xff] %v4

// kernel: mul.5
$region0: #{mul.5}
  %s0 = inlined_call_operand.vmem [shape: f32[64,3], index: 0, kind: input, shape index: {}]
  %s1 = inlined_call_operand.vmem [shape: f32[192], index: 1, kind: output, shape index: {}]
  $region1: #{mul.5} parent=0
    #allocation0 [shape = 'u8[4096]{0}', space=vmem, size = 0x1000, scoped, tag = 'scoped mem for output reshape']
    %v2 = vld [vmem:[%s0] sm:$0x1]
    %vm3 = vcmask 23552
    %4 = vst.msk [vmem:[#allocation0] sm:$0x1] %vm3, %v2
    %s5 = scalar_lea.vmem %s0, 42
    %v6 = vld [vmem:[%s5] sm:$0x1]
    %s7 = scalar_lea.vmem %s0, 42
    %v8 = vld [vmem:[%s7] sm:$0x1]
    %vm9 = vcmask 15360
    %v10 = vsel %vm9, %v8, %v6
    %11 = vrot.lane.b32.xlu0 %v10, 126
    %v12 = vpop.permute.xlu0 %11
    %vm13 = vcmask 7168
    %s14 = scalar_lea.vmem [#allocation0], 1
    %15 = vst.msk [vmem:[%s14] sm:$0x1] %vm13, %v12
    %vm16 = vcmask 1048560
    %17 = vst.msk [vmem:[#allocation0] sm:$0x1] %vm16, %v12
    %s18 = scalar_lea.vmem %s0, 41
    %v19 = vld [vmem:[%s18] sm:$0x1]
    %20 = vrot.lane.b32.xlu0 %v19, 123
    %v21 = vpop.permute.xlu0 %20
    %vm22 = vcmask 1032152
    %23 = vst.msk [vmem:[#allocation0] sm:$0x1] %vm22, %v21
    %s24 = scalar_lea.vmem %s0, 40
    %v25 = vld [vmem:[%s24] sm:$0x1]
    %26 = vrot.lane.b32.xlu0 %v25, 120
    %v27 = vpop.permute.xlu0 %26
    %vm28 = vcmask 1007552
    %29 = vst.msk [vmem:[#allocation0] sm:$0x1] %vm28, %v27
    %s30 = scalar_lea.vmem %s0, 39
    %v31 = vld [vmem:[%s30] sm:$0x1]
    %32 = vrot.lane.b32.xlu0 %v31, 117
    %v33 = vpop.permute.xlu0 %32
    %vm34 = vcmask 982952
    %35 = vst.msk [vmem:[#allocation0] sm:$0x1] %vm34, %v33
    %s36 = scalar_lea.vmem %s0, 38
    %v37 = vld [vmem:[%s36] sm:$0x1]
    %38 = vrot.lane.b32.xlu0 %v37, 114
    %v39 = vpop.permute.xlu0 %38
    %vm40 = vcmask 958352
    %41 = vst.msk [vmem:[#allocation0] sm:$0x1] %vm40, %v39
    %s42 = scalar_lea.vmem %s0, 37
    %v43 = vld [vmem:[%s42] sm:$0x1]
    %44 = vrot.lane.b32.xlu0 %v43, 111
    %v45 = vpop.permute.xlu0 %44
    %vm46 = vcmask 933752
    %47 = vst.msk [vmem:[#allocation0] sm:$0x1] %vm46, %v45
    %s48 = scalar_lea.vmem %s0, 36
    %v49 = vld [vmem:[%s48] sm:$0x1]
    %50 = vrot.lane.b32.xlu0 %v49, 108
    %v51 = vpop.permute.xlu0 %50
    %vm52 = vcmask 909152
    %53 = vst.msk [vmem:[#allocation0] sm:$0x1] %vm52, %v51
    %s54 = scalar_lea.vmem %s0, 35
    %v55 = vld [vmem:[%s54] sm:$0x1]
    %56 = vrot.lane.b32.xlu0 %v55, 105
    %v57 = vpop.permute.xlu0 %56
    %vm58 = vcmask 884552
    %59 = vst.msk [vmem:[#allocation0] sm:$0x1] %vm58, %v57
    %s60 = scalar_lea.vmem %s0, 34
    %v61 = vld [vmem:[%s60] sm:$0x1]
    %62 = vrot.lane.b32.xlu0 %v61, 102
    %v63 = vpop.permute.xlu0 %62
    %vm64 = vcmask 859952
    %65 = vst.msk [vmem:[#allocation0] sm:$0x1] %vm64, %v63
    %s66 = scalar_lea.vmem %s0, 33
    %v67 = vld [vmem:[%s66] sm:$0x1]
    %68 = vrot.lane.b32.xlu0 %v67, 99
    %v69 = vpop.permute.xlu0 %68
    %vm70 = vcmask 835352
    %71 = vst.msk [vmem:[#allocation0] sm:$0x1] %vm70, %v69
    %s72 = scalar_lea.vmem %s0, 32
    %v73 = vld [vmem:[%s72] sm:$0x1]
    %74 = vrot.lane.b32.xlu0 %v73, 96
    %v75 = vpop.permute.xlu0 %74
    %vm76 = vcmask 810752
    %77 = vst.msk [vmem:[#allocation0] sm:$0x1] %vm76, %v75
    %s78 = scalar_lea.vmem %s0, 31
    %v79 = vld [vmem:[%s78] sm:$0x1]
    %80 = vrot.lane.b32.xlu0 %v79, 93
    %v81 = vpop.permute.xlu0 %80
    %vm82 = vcmask 786152
    %83 = vst.msk [vmem:[#allocation0] sm:$0x1] %vm82, %v81
    %s84 = scalar_lea.vmem %s0, 30
    %v85 = vld [vmem:[%s84] sm:$0x1]
    %86 = vrot.lane.b32.xlu0 %v85, 90
    %v87 = vpop.permute.xlu0 %86
    %vm88 = vcmask 761552
    %89 = vst.msk [vmem:[#allocation0] sm:$0x1] %vm88, %v87
    %s90 = scalar_lea.vmem %s0, 29
    %v91 = vld [vmem:[%s90] sm:$0x1]
    %92 = vrot.lane.b32.xlu0 %v91, 87
    %v93 = vpop.permute.xlu0 %92
    %vm94 = vcmask 736952
    %95 = vst.msk [vmem:[#allocation0] sm:$0x1] %vm94, %v93
    %s96 = scalar_lea.vmem %s0, 28
    %v97 = vld [vmem:[%s96] sm:$0x1]
    %98 = vrot.lane.b32.xlu0 %v97, 84
    %v99 = vpop.permute.xlu0 %98
    %vm100 = vcmask 712352
    %101 = vst.msk [vmem:[#allocation0] sm:$0x1] %vm100, %v99
    %s102 = scalar_lea.vmem %s0, 27
    %v103 = vld [vmem:[%s102] sm:$0x1]
    %104 = vrot.lane.b32.xlu0 %v103, 81
    %v105 = vpop.permute.xlu0 %104
    %vm106 = vcmask 687752
    %107 = vst.msk [vmem:[#allocation0] sm:$0x1] %vm106, %v105
    %s108 = scalar_lea.vmem %s0, 26
    %v109 = vld [vmem:[%s108] sm:$0x1]
    %110 = vrot.lane.b32.xlu0 %v109, 78
    %v111 = vpop.permute.xlu0 %110
    %vm112 = vcmask 663152
    %113 = vst.msk [vmem:[#allocation0] sm:$0x1] %vm112, %v111
    %s114 = scalar_lea.vmem %s0, 25
    %v115 = vld [vmem:[%s114] sm:$0x1]
    %116 = vrot.lane.b32.xlu0 %v115, 75
    %v117 = vpop.permute.xlu0 %116
    %vm118 = vcmask 638552
    %119 = vst.msk [vmem:[#allocation0] sm:$0x1] %vm118, %v117
    %s120 = scalar_lea.vmem %s0, 24
    %v121 = vld [vmem:[%s120] sm:$0x1]
    %122 = vrot.lane.b32.xlu0 %v121, 72
    %v123 = vpop.permute.xlu0 %122
    %vm124 = vcmask 613952
    %125 = vst.msk [vmem:[#allocation0] sm:$0x1] %vm124, %v123
    %s126 = scalar_lea.vmem %s0, 23
    %v127 = vld [vmem:[%s126] sm:$0x1]
    %128 = vrot.lane.b32.xlu0 %v127, 69
    %v129 = vpop.permute.xlu0 %128
    %vm130 = vcmask 589352
    %131 = vst.msk [vmem:[#allocation0] sm:$0x1] %vm130, %v129
    %s132 = scalar_lea.vmem %s0, 22
    %v133 = vld [vmem:[%s132] sm:$0x1]
    %134 = vrot.lane.b32.xlu0 %v133, 66
    %v135 = vpop.permute.xlu0 %134
    %vm136 = vcmask 564752
    %137 = vst.msk [vmem:[#allocation0] sm:$0x1] %vm136, %v135
    %s138 = scalar_lea.vmem %s0, 21
    %v139 = vld [vmem:[%s138] sm:$0x1]
    %140 = vrot.lane.b32.xlu0 %v139, 63
    %v141 = vpop.permute.xlu0 %140
    %vm142 = vcmask 540152
    %143 = vst.msk [vmem:[#allocation0] sm:$0x1] %vm142, %v141
    %s144 = scalar_lea.vmem %s0, 63
    %v145 = vld [vmem:[%s144] sm:$0x1]
    %146 = vrot.lane.b32.xlu0 %v145, 61
    %v147 = vpop.permute.xlu0 %146
    %vm148 = vcmask 523752
    %s149 = scalar_lea.vmem [#allocation0], 1
    %150 = vst.msk [vmem:[%s149] sm:$0x1] %vm148, %v147
    %s151 = scalar_lea.vmem %s0, 20
    %v152 = vld [vmem:[%s151] sm:$0x1]
    %153 = vrot.lane.b32.xlu0 %v152, 60
    %v154 = vpop.permute.xlu0 %153
    %vm155 = vcmask 515552
    %156 = vst.msk [vmem:[#allocation0] sm:$0x1] %vm155, %v154
    %s157 = scalar_lea.vmem %s0, 62
    %v158 = vld [vmem:[%s157] sm:$0x1]
    %159 = vrot.lane.b32.xlu0 %v158, 58
    %v160 = vpop.permute.xlu0 %159
    %vm161 = vcmask 499152
    %s162 = scalar_lea.vmem [#allocation0], 1
    %163 = vst.msk [vmem:[%s162] sm:$0x1] %vm161, %v160
    %s164 = scalar_lea.vmem %s0, 19
    %v165 = vld [vmem:[%s164] sm:$0x1]
    %166 = vrot.lane.b32.xlu0 %v165, 57
    %v167 = vpop.permute.xlu0 %166
    %vm168 = vcmask 490952
    %169 = vst.msk [vmem:[#allocation0] sm:$0x1] %vm168, %v167
    %s170 = scalar_lea.vmem %s0, 61
    %v171 = vld [vmem:[%s170] sm:$0x1]
    %172 = vrot.lane.b32.xlu0 %v171, 55
    %v173 = vpop.permute.xlu0 %172
    %vm174 = vcmask 474552
    %s175 = scalar_lea.vmem [#allocation0], 1
    %176 = vst.msk [vmem:[%s175] sm:$0x1] %vm174, %v173
    %s177 = scalar_lea.vmem %s0, 18
    %v178 = vld [vmem:[%s177] sm:$0x1]
    %179 = vrot.lane.b32.xlu0 %v178, 54
    %v180 = vpop.permute.xlu0 %179
    %vm181 = vcmask 466352
    %182 = vst.msk [vmem:[#allocation0] sm:$0x1] %vm181, %v180
    %s183 = scalar_lea.vmem %s0, 60
    %v184 = vld [vmem:[%s183] sm:$0x1]
    %185 = vrot.lane.b32.xlu0 %v184, 52
    %v186 = vpop.permute.xlu0 %185
    %vm187 = vcmask 449952
    %s188 = scalar_lea.vmem [#allocation0], 1
    %189 = vst.msk [vmem:[%s188] sm:$0x1] %vm187, %v186
    %s190 = scalar_lea.vmem %s0, 17
    %v191 = vld [vmem:[%s190] sm:$0x1]
    %192 = vrot.lane.b32.xlu0 %v191, 51
    %v193 = vpop.permute.xlu0 %192
    %vm194 = vcmask 441752
    %195 = vst.msk [vmem:[#allocation0] sm:$0x1] %vm194, %v193
    %s196 = scalar_lea.vmem %s0, 59
    %v197 = vld [vmem:[%s196] sm:$0x1]
    %198 = vrot.lane.b32.xlu0 %v197, 49
    %v199 = vpop.permute.xlu0 %198
    %vm200 = vcmask 425352
    %s201 = scalar_lea.vmem [#allocation0], 1
    %202 = vst.msk [vmem:[%s201] sm:$0x1] %vm200, %v199
    %s203 = scalar_lea.vmem %s0, 16
    %v204 = vld [vmem:[%s203] sm:$0x1]
    %205 = vrot.lane.b32.xlu0 %v204, 48
    %v206 = vpop.permute.xlu0 %205
    %vm207 = vcmask 417152
    %208 = vst.msk [vmem:[#allocation0] sm:$0x1] %vm207, %v206
    %s209 = scalar_lea.vmem %s0, 58
    %v210 = vld [vmem:[%s209] sm:$0x1]
    %211 = vrot.lane.b32.xlu0 %v210, 46
    %v212 = vpop.permute.xlu0 %211
    %vm213 = vcmask 400752
    %s214 = scalar_lea.vmem [#allocation0], 1
    %215 = vst.msk [vmem:[%s214] sm:$0x1] %vm213, %v212
    %s216 = scalar_lea.vmem %s0, 15
    %v217 = vld [vmem:[%s216] sm:$0x1]
    %218 = vrot.lane.b32.xlu0 %v217, 45
    %v219 = vpop.permute.xlu0 %218
    %vm220 = vcmask 392552
    %221 = vst.msk [vmem:[#allocation0] sm:$0x1] %vm220, %v219
    %s222 = scalar_lea.vmem %s0, 57
    %v223 = vld [vmem:[%s222] sm:$0x1]
    %224 = vrot.lane.b32.xlu0 %v223, 43
    %v225 = vpop.permute.xlu0 %224
    %vm226 = vcmask 376152
    %s227 = scalar_lea.vmem [#allocation0], 1
    %228 = vst.msk [vmem:[%s227] sm:$0x1] %vm226, %v225
    %s229 = scalar_lea.vmem %s0, 14
    %v230 = vld [vmem:[%s229] sm:$0x1]
    %231 = vrot.lane.b32.xlu0 %v230, 42
    %v232 = vpop.permute.xlu0 %231
    %vm233 = vcmask 367952
    %234 = vst.msk [vmem:[#allocation0] sm:$0x1] %vm233, %v232
    %s235 = scalar_lea.vmem %s0, 56
    %v236 = vld [vmem:[%s235] sm:$0x1]
    %237 = vrot.lane.b32.xlu0 %v236, 40
    %v238 = vpop.permute.xlu0 %237
    %vm239 = vcmask 351552
    %s240 = scalar_lea.vmem [#allocation0], 1
    %241 = vst.msk [vmem:[%s240] sm:$0x1] %vm239, %v238
    %s242 = scalar_lea.vmem %s0, 13
    %v243 = vld [vmem:[%s242] sm:$0x1]
    %244 = vrot.lane.b32.xlu0 %v243, 39
    %v245 = vpop.permute.xlu0 %244
    %vm246 = vcmask 343352
    %247 = vst.msk [vmem:[#allocation0] sm:$0x1] %vm246, %v245
    %s248 = scalar_lea.vmem %s0, 55
    %v249 = vld [vmem:[%s248] sm:$0x1]
    %250 = vrot.lane.b32.xlu0 %v249, 37
    %v251 = vpop.permute.xlu0 %250
    %vm252 = vcmask 326952
    %s253 = scalar_lea.vmem [#allocation0], 1
    %254 = vst.msk [vmem:[%s253] sm:$0x1] %vm252, %v251
    %s255 = scalar_lea.vmem %s0, 12
    %v256 = vld [vmem:[%s255] sm:$0x1]
    %257 = vrot.lane.b32.xlu0 %v256, 36
    %v258 = vpop.permute.xlu0 %257
    %vm259 = vcmask 318752
    %260 = vst.msk [vmem:[#allocation0] sm:$0x1] %vm259, %v258
    %s261 = scalar_lea.vmem %s0, 54
    %v262 = vld [vmem:[%s261] sm:$0x1]
    %263 = vrot.lane.b32.xlu0 %v262, 34
    %v264 = vpop.permute.xlu0 %263
    %vm265 = vcmask 302352
    %s266 = scalar_lea.vmem [#allocation0], 1
    %267 = vst.msk [vmem:[%s266] sm:$0x1] %vm265, %v264
    %s268 = scalar_lea.vmem %s0, 11
    %v269 = vld [vmem:[%s268] sm:$0x1]
    %270 = vrot.lane.b32.xlu0 %v269, 33
    %v271 = vpop.permute.xlu0 %270
    %vm272 = vcmask 294152
    %273 = vst.msk [vmem:[#allocation0] sm:$0x1] %vm272, %v271
    %s274 = scalar_lea.vmem %s0, 53
    %v275 = vld [vmem:[%s274] sm:$0x1]
    %276 = vrot.lane.b32.xlu0 %v275, 31
    %v277 = vpop.permute.xlu0 %276
    %vm278 = vcmask 277752
    %s279 = scalar_lea.vmem [#allocation0], 1
    %280 = vst.msk [vmem:[%s279] sm:$0x1] %vm278, %v277
    %s281 = scalar_lea.vmem %s0, 10
    %v282 = vld [vmem:[%s281] sm:$0x1]
    %283 = vrot.lane.b32.xlu0 %v282, 30
    %v284 = vpop.permute.xlu0 %283
    %vm285 = vcmask 269552
    %286 = vst.msk [vmem:[#allocation0] sm:$0x1] %vm285, %v284
    %s287 = scalar_lea.vmem %s0, 52
    %v288 = vld [vmem:[%s287] sm:$0x1]
    %289 = vrot.lane.b32.xlu0 %v288, 28
    %v290 = vpop.permute.xlu0 %289
    %vm291 = vcmask 253152
    %s292 = scalar_lea.vmem [#allocation0], 1
    %293 = vst.msk [vmem:[%s292] sm:$0x1] %vm291, %v290
    %s294 = scalar_lea.vmem %s0, 9
    %v295 = vld [vmem:[%s294] sm:$0x1]
    %296 = vrot.lane.b32.xlu0 %v295, 27
    %v297 = vpop.permute.xlu0 %296
    %vm298 = vcmask 244952
    %299 = vst.msk [vmem:[#allocation0] sm:$0x1] %vm298, %v297
    %s300 = scalar_lea.vmem %s0, 51
    %v301 = vld [vmem:[%s300] sm:$0x1]
    %302 = vrot.lane.b32.xlu0 %v301, 25
    %v303 = vpop.permute.xlu0 %302
    %vm304 = vcmask 228552
    %s305 = scalar_lea.vmem [#allocation0], 1
    %306 = vst.msk [vmem:[%s305] sm:$0x1] %vm304, %v303
    %s307 = scalar_lea.vmem %s0, 8
    %v308 = vld [vmem:[%s307] sm:$0x1]
    %309 = vrot.lane.b32.xlu0 %v308, 24
    %v310 = vpop.permute.xlu0 %309
    %vm311 = vcmask 220352
    %312 = vst.msk [vmem:[#allocation0] sm:$0x1] %vm311, %v310
    %s313 = scalar_lea.vmem %s0, 50
    %v314 = vld [vmem:[%s313] sm:$0x1]
    %315 = vrot.lane.b32.xlu0 %v314, 22
    %v316 = vpop.permute.xlu0 %315
    %vm317 = vcmask 203952
    %s318 = scalar_lea.vmem [#allocation0], 1
    %319 = vst.msk [vmem:[%s318] sm:$0x1] %vm317, %v316
    %s320 = scalar_lea.vmem %s0, 7
    %v321 = vld [vmem:[%s320] sm:$0x1]
    %322 = vrot.lane.b32.xlu0 %v321, 21
    %v323 = vpop.permute.xlu0 %322
    %vm324 = vcmask 195752
    %325 = vst.msk [vmem:[#allocation0] sm:$0x1] %vm324, %v323
    %s326 = scalar_lea.vmem %s0, 49
    %v327 = vld [vmem:[%s326] sm:$0x1]
    %328 = vrot.lane.b32.xlu0 %v327, 19
    %v329 = vpop.permute.xlu0 %328
    %vm330 = vcmask 179352
    %s331 = scalar_lea.vmem [#allocation0], 1
    %332 = vst.msk [vmem:[%s331] sm:$0x1] %vm330, %v329
    %s333 = scalar_lea.vmem %s0, 6
    %v334 = vld [vmem:[%s333] sm:$0x1]
    %335 = vrot.lane.b32.xlu0 %v334, 18
    %v336 = vpop.permute.xlu0 %335
    %vm337 = vcmask 171152
    %338 = vst.msk [vmem:[#allocation0] sm:$0x1] %vm337, %v336
    %s339 = scalar_lea.vmem %s0, 48
    %v340 = vld [vmem:[%s339] sm:$0x1]
    %341 = vrot.lane.b32.xlu0 %v340, 16
    %v342 = vpop.permute.xlu0 %341
    %vm343 = vcmask 154752
    %s344 = scalar_lea.vmem [#allocation0], 1
    %345 = vst.msk [vmem:[%s344] sm:$0x1] %vm343, %v342
    %s346 = scalar_lea.vmem %s0, 5
    %v347 = vld [vmem:[%s346] sm:$0x1]
    %348 = vrot.lane.b32.xlu0 %v347, 15
    %v349 = vpop.permute.xlu0 %348
    %vm350 = vcmask 146552
    %351 = vst.msk [vmem:[#allocation0] sm:$0x1] %vm350, %v349
    %s352 = scalar_lea.vmem %s0, 47
    %v353 = vld [vmem:[%s352] sm:$0x1]
    %354 = vrot.lane.b32.xlu0 %v353, 13
    %v355 = vpop.permute.xlu0 %354
    %vm356 = vcmask 130152
    %s357 = scalar_lea.vmem [#allocation0], 1
    %358 = vst.msk [vmem:[%s357] sm:$0x1] %vm356, %v355
    %s359 = scalar_lea.vmem %s0, 4
    %v360 = vld [vmem:[%s359] sm:$0x1]
    %361 = vrot.lane.b32.xlu0 %v360, 12
    %v362 = vpop.permute.xlu0 %361
    %vm363 = vcmask 121952
    %364 = vst.msk [vmem:[#allocation0] sm:$0x1] %vm363, %v362
    %s365 = scalar_lea.vmem %s0, 46
    %v366 = vld [vmem:[%s365] sm:$0x1]
    %367 = vrot.lane.b32.xlu0 %v366, 10
    %v368 = vpop.permute.xlu0 %367
    %vm369 = vcmask 105552
    %s370 = scalar_lea.vmem [#allocation0], 1
    %371 = vst.msk [vmem:[%s370] sm:$0x1] %vm369, %v368
    %s372 = scalar_lea.vmem %s0, 3
    %v373 = vld [vmem:[%s372] sm:$0x1]
    %374 = vrot.lane.b32.xlu0 %v373, 9
    %v375 = vpop.permute.xlu0 %374
    %vm376 = vcmask 97352
    %377 = vst.msk [vmem:[#allocation0] sm:$0x1] %vm376, %v375
    %s378 = scalar_lea.vmem %s0, 45
    %v379 = vld [vmem:[%s378] sm:$0x1]
    %380 = vrot.lane.b32.xlu0 %v379, 7
    %v381 = vpop.permute.xlu0 %380
    %vm382 = vcmask 80952
    %s383 = scalar_lea.vmem [#allocation0], 1
    %384 = vst.msk [vmem:[%s383] sm:$0x1] %vm382, %v381
    %s385 = scalar_lea.vmem %s0, 2
    %v386 = vld [vmem:[%s385] sm:$0x1]
    %387 = vrot.lane.b32.xlu0 %v386, 6
    %v388 = vpop.permute.xlu0 %387
    %vm389 = vcmask 72752
    %390 = vst.msk [vmem:[#allocation0] sm:$0x1] %vm389, %v388
    %s391 = scalar_lea.vmem %s0, 44
    %v392 = vld [vmem:[%s391] sm:$0x1]
    %393 = vrot.lane.b32.xlu0 %v392, 4
    %v394 = vpop.permute.xlu0 %393
    %vm395 = vcmask 56352
    %s396 = scalar_lea.vmem [#allocation0], 1
    %397 = vst.msk [vmem:[%s396] sm:$0x1] %vm395, %v394
    %s398 = scalar_lea.vmem %s0, 1
    %v399 = vld [vmem:[%s398] sm:$0x1]
    %400 = vrot.lane.b32.xlu0 %v399, 3
    %v401 = vpop.permute.xlu0 %400
    %vm402 = vcmask 48152
    %403 = vst.msk [vmem:[#allocation0] sm:$0x1] %vm402, %v401
    %s404 = scalar_lea.vmem %s0, 43
    %v405 = vld [vmem:[%s404] sm:$0x1]
    %406 = vrot.lane.b32.xlu0 %v405, 1
    %v407 = vpop.permute.xlu0 %406
    %vm408 = vcmask 31752
    %s409 = scalar_lea.vmem [#allocation0], 1
    %410 = vst.msk [vmem:[%s409] sm:$0x1] %vm408, %v407
    %s412 = sshll.u32 1, 2
    %s413 = ssub.s32 %s412, 1
    %v415 = vld [vmem:[#allocation0] sm:%s413]
    %s416 = sshll.u32 1, 2
    %s417 = ssub.s32 %s416, 1
    %418 = vst [vmem:[%s1] sm:%s417] %v415

// kernel: vc1_encoder_forward.1
$region0: #{vc1_encoder_forward.1}
  #allocation0 [shape = 'u32[]', space=smem, size = 0x4, offset = 0x4, fixed_abs, tag = 'smem constant byte address 0x4 - core index']
  #allocation1 [shape = 'u32[144,128]{1,0:T(1,128)}', space=vmem, size = 0x12000, scoped, tag = 'internal scratch']
  #allocation2 [shape = 'f32[5,64]{1,0:T(8,128)}', space=vmem, size = 0x1000, scoped, tag = 'scratch operand']
  %s0 = inlined_call_operand.vmem [shape: f32[2,4,192], index: 0, kind: input, shape index: {}]
  %s1 = inlined_call_operand.vmem [shape: bf16[192,64], index: 1, kind: input, shape index: {}]
  %s2 = inlined_call_operand.vmem [shape: f32[1,64], index: 2, kind: input, shape index: {}]
  %s3 = inlined_call_operand.vmem [shape: f32[1,64], index: 3, kind: input, shape index: {}]
  %s4 = inlined_call_operand.vmem [shape: f32[5,64], index: 4, kind: input, shape index: {}]
  %s5 = inlined_call_operand.vmem [shape: f32[2,1,64], index: 5, kind: input, shape index: {}]
  %s6 = inlined_call_operand.vmem [shape: f32[2,1,64], index: 6, kind: input, shape index: {}]
  %s7 = inlined_call_operand.vmem [shape: bf16[2,64,192], index: 7, kind: input, shape index: {}]
  %s8 = inlined_call_operand.vmem [shape: f32[2,1,192], index: 8, kind: input, shape index: {}]
  %s9 = inlined_call_operand.vmem [shape: bf16[2,64,64], index: 9, kind: input, shape index: {}]
  %s10 = inlined_call_operand.vmem [shape: f32[2,1,64], index: 10, kind: input, shape index: {}]
  %s11 = inlined_call_operand.vmem [shape: f32[2,1,64], index: 11, kind: input, shape index: {}]
  %s12 = inlined_call_operand.vmem [shape: f32[2,1,64], index: 12, kind: input, shape index: {}]
  %s13 = inlined_call_operand.vmem [shape: bf16[2,64,256], index: 13, kind: input, shape index: {}]
  %s14 = inlined_call_operand.vmem [shape: f32[2,1,256], index: 14, kind: input, shape index: {}]
  %s15 = inlined_call_operand.vmem [shape: bf16[2,256,64], index: 15, kind: input, shape index: {}]
  %s16 = inlined_call_operand.vmem [shape: f32[2,1,64], index: 16, kind: input, shape index: {}]
  %s17 = inlined_call_operand.vmem [shape: f32[1,64], index: 17, kind: input, shape index: {}]
  %s18 = inlined_call_operand.vmem [shape: f32[1,64], index: 18, kind: input, shape index: {}]
  %s19 = inlined_call_operand.hbm [shape: f32[2,1,64], index: 19, kind: output, shape index: {}]
  %s20 = sld [smem:[#allocation0]]
  $region109: #{vc1_encoder_forward.1} parent=0
    _
  %s22 = ssub.s32 1, %s20
  %s23 = scalar_select 0, %s22, %s20
  $region1: #{vc1_encoder_forward.1} parent=0
    #allocation3 [shape = 'u8[1024]{0}', space=vmem, size = 0x400, scoped, tag = 'output window, operand 0']
    #allocation4 [shape = 's32[2]{0}', space=sflag, size = 0x8, scoped, tag = 'scoped memory for vc1_encoder_forward.1']
    %24 = vsyncpa [#allocation4], 0
    %s25 = scalar_lea.sflag [#allocation4], 1
    %26 = vsyncpa %s25, 0
    loop: start=0, step=1, limit=4
    $region2: #{vc1_encoder_forward.1} parent=1 // loop_pre_header
      _
    $region3: #{vc1_encoder_forward.1} parent=1 // loop_header
      %s28 = sphi 0, %s32
      %p29 = scmp.ge.s32.totalorder %s28, 4
      %s38 = sphi 0, %s40
      %s41 = sphi 0, %s38
      %s42 = sphi 0, %s41
      %s58 = sphi 0, %s42
      %s62 = sphi 0, %s62
      %s64 = sphi 0, %s62
      %s65 = sphi 0, %s64
      %s79 = sphi 0, %s65
      %s83 = sphi 0, %s83
      %s85 = sphi 0, %s83
      %s86 = sphi 0, %s85
      %s100 = sphi 0, %s86
      %s104 = sphi 0, %s104
      %s106 = sphi 0, %s104
      %s107 = sphi 0, %s106
      %s121 = sphi 0, %s107
      %s125 = sphi 0, %s125
      %s127 = sphi 0, %s125
      %s128 = sphi 0, %s127
      %s142 = sphi 0, %s128
      %s146 = sphi 0, %s146
      %s148 = sphi 0, %s146
      %s149 = sphi 0, %s148
      %s163 = sphi 0, %s149
      %s167 = sphi 0, %s167
      %s169 = sphi 0, %s167
      %s170 = sphi 0, %s169
      %s184 = sphi 0, %s170
      %s188 = sphi 0, %s188
      %s190 = sphi 0, %s188
      %s191 = sphi 0, %s190
      %s205 = sphi 0, %s191
      %s209 = sphi 0, %s209
      %s211 = sphi 0, %s209
      %s212 = sphi 0, %s211
      %s226 = sphi 0, %s212
      %s230 = sphi 0, %s230
      %s232 = sphi 0, %s230
      %s233 = sphi 0, %s232
      %s247 = sphi 0, %s233
      %s251 = sphi 0, %s251
      %s253 = sphi 0, %s251
      %s254 = sphi 0, %s253
      %s268 = sphi 0, %s254
      %s272 = sphi 0, %s272
      %s274 = sphi 0, %s272
      %s275 = sphi 0, %s274
      %s289 = sphi 0, %s275
      %s293 = sphi 0, %s293
      %s295 = sphi 0, %s293
      %s296 = sphi 0, %s295
      %s310 = sphi 0, %s296
      %s314 = sphi 0, %s314
      %s316 = sphi 0, %s314
      %s317 = sphi 0, %s316
      %s331 = sphi 0, %s317
      %s335 = sphi 0, %s335
      %s337 = sphi 0, %s335
      %s338 = sphi 0, %s337
      %s352 = sphi 0, %s338
      %s356 = sphi 0, %s356
      %s358 = sphi 0, %s356
      %s359 = sphi 0, %s358
      %s373 = sphi 0, %s359
      %s377 = sphi 0, %s377
      %s379 = sphi 0, %s377
      %s380 = sphi 0, %s379
      %s394 = sphi 0, %s380
      %s398 = sphi 0, %s398
      %s400 = sphi 0, %s398
      %s401 = sphi 0, %s400
      %s415 = sphi 0, %s401
      %s419 = sphi 0, %s419
      %s421 = sphi 0, %s419
      %s422 = sphi 0, %s421
      %s436 = sphi 0, %s422
      %s442 = sphi 0, %s444
      %s445 = sphi 0, %s442
      %s446 = sphi 0, %s445
      %s462 = sphi 0, %s446
    $region4: #{vc1_encoder_forward.1} parent=1 // loop_header_branch
      %31 = sbr.rel (%p29) target = $region8
    $region5: #{vc1_encoder_forward.1} parent=1 // loop_body
      %s33 = ssub.s32 %s28, 1
      %s34 = ssub.s32 %s28, 2
      %s35 = sadd.s32 %s28, 1
      %s36 = ssub.s32 %s28, %s35
      %p37 = scmp.eq.s32.totalorder %s36, 0
      %s39 = sadd.s32 %s38, 1
      %s40 = scalar_select %p37, %s38, %s39
      %p43 = pneg %p37
      %p44 = scmp.eq.s32.totalorder %s28, 1
      %p45 = por %p43, %p44
      %p46 = scmp.ne.s32.totalorder %s38, %s41
      %p47 = scmp.eq.s32.totalorder %s28, 0
      %p48 = por %p46, %p47
      %p49 = scmp.ne.s32.totalorder %s38, %s41
      %p50 = scmp.eq.s32.totalorder %s33, 1
      %p51 = por %p49, %p50
      %p52 = scmp.ne.s32.totalorder %s41, %s42
      %p53 = scmp.eq.s32.totalorder %s33, 0
      %p54 = por %p52, %p53
      %p55 = scmp.ne.s32.totalorder %s41, %s42
      %p56 = scmp.eq.s32.totalorder %s34, 1
      %p57 = por %p55, %p56
      %p59 = scmp.ne.s32.totalorder %s42, %s58
      %p60 = scmp.eq.s32.totalorder %s34, 0
      %p61 = por %p59, %p60
      %s63 = sadd.s32 %s62, 1
      %p66 = scmp.eq.s32.totalorder %s28, 1
      %p67 = scmp.ne.s32.totalorder %s62, %s64
      %p68 = scmp.eq.s32.totalorder %s28, 0
      %p69 = por %p67, %p68
      %p70 = scmp.ne.s32.totalorder %s62, %s64
      %p71 = scmp.eq.s32.totalorder %s33, 1
      %p72 = por %p70, %p71
      %p73 = scmp.ne.s32.totalorder %s64, %s65
      %p74 = scmp.eq.s32.totalorder %s33, 0
      %p75 = por %p73, %p74
      %p76 = scmp.ne.s32.totalorder %s64, %s65
      %p77 = scmp.eq.s32.totalorder %s34, 1
      %p78 = por %p76, %p77
      %p80 = scmp.ne.s32.totalorder %s65, %s79
      %p81 = scmp.eq.s32.totalorder %s34, 0
      %p82 = por %p80, %p81
      %s84 = sadd.s32 %s83, 1
      %p87 = scmp.eq.s32.totalorder %s28, 1
      %p88 = scmp.ne.s32.totalorder %s83, %s85
      %p89 = scmp.eq.s32.totalorder %s28, 0
      %p90 = por %p88, %p89
      %p91 = scmp.ne.s32.totalorder %s83, %s85
      %p92 = scmp.eq.s32.totalorder %s33, 1
      %p93 = por %p91, %p92
      %p94 = scmp.ne.s32.totalorder %s85, %s86
      %p95 = scmp.eq.s32.totalorder %s33, 0
      %p96 = por %p94, %p95
      %p97 = scmp.ne.s32.totalorder %s85, %s86
      %p98 = scmp.eq.s32.totalorder %s34, 1
      %p99 = por %p97, %p98
      %p101 = scmp.ne.s32.totalorder %s86, %s100
      %p102 = scmp.eq.s32.totalorder %s34, 0
      %p103 = por %p101, %p102
      %s105 = sadd.s32 %s104, 1
      %p108 = scmp.eq.s32.totalorder %s28, 1
      %p109 = scmp.ne.s32.totalorder %s104, %s106
      %p110 = scmp.eq.s32.totalorder %s28, 0
      %p111 = por %p109, %p110
      %p112 = scmp.ne.s32.totalorder %s104, %s106
      %p113 = scmp.eq.s32.totalorder %s33, 1
      %p114 = por %p112, %p113
      %p115 = scmp.ne.s32.totalorder %s106, %s107
      %p116 = scmp.eq.s32.totalorder %s33, 0
      %p117 = por %p115, %p116
      %p118 = scmp.ne.s32.totalorder %s106, %s107
      %p119 = scmp.eq.s32.totalorder %s34, 1
      %p120 = por %p118, %p119
      %p122 = scmp.ne.s32.totalorder %s107, %s121
      %p123 = scmp.eq.s32.totalorder %s34, 0
      %p124 = por %p122, %p123
      %s126 = sadd.s32 %s125, 1
      %p129 = scmp.eq.s32.totalorder %s28, 1
      %p130 = scmp.ne.s32.totalorder %s125, %s127
      %p131 = scmp.eq.s32.totalorder %s28, 0
      %p132 = por %p130, %p131
      %p133 = scmp.ne.s32.totalorder %s125, %s127
      %p134 = scmp.eq.s32.totalorder %s33, 1
      %p135 = por %p133, %p134
      %p136 = scmp.ne.s32.totalorder %s127, %s128
      %p137 = scmp.eq.s32.totalorder %s33, 0
      %p138 = por %p136, %p137
      %p139 = scmp.ne.s32.totalorder %s127, %s128
      %p140 = scmp.eq.s32.totalorder %s34, 1
      %p141 = por %p139, %p140
      %p143 = scmp.ne.s32.totalorder %s128, %s142
      %p144 = scmp.eq.s32.totalorder %s34, 0
      %p145 = por %p143, %p144
      %s147 = sadd.s32 %s146, 1
      %p150 = scmp.eq.s32.totalorder %s28, 1
      %p151 = scmp.ne.s32.totalorder %s146, %s148
      %p152 = scmp.eq.s32.totalorder %s28, 0
      %p153 = por %p151, %p152
      %p154 = scmp.ne.s32.totalorder %s146, %s148
      %p155 = scmp.eq.s32.totalorder %s33, 1
      %p156 = por %p154, %p155
      %p157 = scmp.ne.s32.totalorder %s148, %s149
      %p158 = scmp.eq.s32.totalorder %s33, 0
      %p159 = por %p157, %p158
      %p160 = scmp.ne.s32.totalorder %s148, %s149
      %p161 = scmp.eq.s32.totalorder %s34, 1
      %p162 = por %p160, %p161
      %p164 = scmp.ne.s32.totalorder %s149, %s163
      %p165 = scmp.eq.s32.totalorder %s34, 0
      %p166 = por %p164, %p165
      %s168 = sadd.s32 %s167, 1
      %p171 = scmp.eq.s32.totalorder %s28, 1
      %p172 = scmp.ne.s32.totalorder %s167, %s169
      %p173 = scmp.eq.s32.totalorder %s28, 0
      %p174 = por %p172, %p173
      %p175 = scmp.ne.s32.totalorder %s167, %s169
      %p176 = scmp.eq.s32.totalorder %s33, 1
      %p177 = por %p175, %p176
      %p178 = scmp.ne.s32.totalorder %s169, %s170
      %p179 = scmp.eq.s32.totalorder %s33, 0
      %p180 = por %p178, %p179
      %p181 = scmp.ne.s32.totalorder %s169, %s170
      %p182 = scmp.eq.s32.totalorder %s34, 1
      %p183 = por %p181, %p182
      %p185 = scmp.ne.s32.totalorder %s170, %s184
      %p186 = scmp.eq.s32.totalorder %s34, 0
      %p187 = por %p185, %p186
      %s189 = sadd.s32 %s188, 1
      %p192 = scmp.eq.s32.totalorder %s28, 1
      %p193 = scmp.ne.s32.totalorder %s188, %s190
      %p194 = scmp.eq.s32.totalorder %s28, 0
      %p195 = por %p193, %p194
      %p196 = scmp.ne.s32.totalorder %s188, %s190
      %p197 = scmp.eq.s32.totalorder %s33, 1
      %p198 = por %p196, %p197
      %p199 = scmp.ne.s32.totalorder %s190, %s191
      %p200 = scmp.eq.s32.totalorder %s33, 0
      %p201 = por %p199, %p200
      %p202 = scmp.ne.s32.totalorder %s190, %s191
      %p203 = scmp.eq.s32.totalorder %s34, 1
      %p204 = por %p202, %p203
      %p206 = scmp.ne.s32.totalorder %s191, %s205
      %p207 = scmp.eq.s32.totalorder %s34, 0
      %p208 = por %p206, %p207
      %s210 = sadd.s32 %s209, 1
      %p213 = scmp.eq.s32.totalorder %s28, 1
      %p214 = scmp.ne.s32.totalorder %s209, %s211
      %p215 = scmp.eq.s32.totalorder %s28, 0
      %p216 = por %p214, %p215
      %p217 = scmp.ne.s32.totalorder %s209, %s211
      %p218 = scmp.eq.s32.totalorder %s33, 1
      %p219 = por %p217, %p218
      %p220 = scmp.ne.s32.totalorder %s211, %s212
      %p221 = scmp.eq.s32.totalorder %s33, 0
      %p222 = por %p220, %p221
      %p223 = scmp.ne.s32.totalorder %s211, %s212
      %p224 = scmp.eq.s32.totalorder %s34, 1
      %p225 = por %p223, %p224
      %p227 = scmp.ne.s32.totalorder %s212, %s226
      %p228 = scmp.eq.s32.totalorder %s34, 0
      %p229 = por %p227, %p228
      %s231 = sadd.s32 %s230, 1
      %p234 = scmp.eq.s32.totalorder %s28, 1
      %p235 = scmp.ne.s32.totalorder %s230, %s232
      %p236 = scmp.eq.s32.totalorder %s28, 0
      %p237 = por %p235, %p236
      %p238 = scmp.ne.s32.totalorder %s230, %s232
      %p239 = scmp.eq.s32.totalorder %s33, 1
      %p240 = por %p238, %p239
      %p241 = scmp.ne.s32.totalorder %s232, %s233
      %p242 = scmp.eq.s32.totalorder %s33, 0
      %p243 = por %p241, %p242
      %p244 = scmp.ne.s32.totalorder %s232, %s233
      %p245 = scmp.eq.s32.totalorder %s34, 1
      %p246 = por %p244, %p245
      %p248 = scmp.ne.s32.totalorder %s233, %s247
      %p249 = scmp.eq.s32.totalorder %s34, 0
      %p250 = por %p248, %p249
      %s252 = sadd.s32 %s251, 1
      %p255 = scmp.eq.s32.totalorder %s28, 1
      %p256 = scmp.ne.s32.totalorder %s251, %s253
      %p257 = scmp.eq.s32.totalorder %s28, 0
      %p258 = por %p256, %p257
      %p259 = scmp.ne.s32.totalorder %s251, %s253
      %p260 = scmp.eq.s32.totalorder %s33, 1
      %p261 = por %p259, %p260
      %p262 = scmp.ne.s32.totalorder %s253, %s254
      %p263 = scmp.eq.s32.totalorder %s33, 0
      %p264 = por %p262, %p263
      %p265 = scmp.ne.s32.totalorder %s253, %s254
      %p266 = scmp.eq.s32.totalorder %s34, 1
      %p267 = por %p265, %p266
      %p269 = scmp.ne.s32.totalorder %s254, %s268
      %p270 = scmp.eq.s32.totalorder %s34, 0
      %p271 = por %p269, %p270
      %s273 = sadd.s32 %s272, 1
      %p276 = scmp.eq.s32.totalorder %s28, 1
      %p277 = scmp.ne.s32.totalorder %s272, %s274
      %p278 = scmp.eq.s32.totalorder %s28, 0
      %p279 = por %p277, %p278
      %p280 = scmp.ne.s32.totalorder %s272, %s274
      %p281 = scmp.eq.s32.totalorder %s33, 1
      %p282 = por %p280, %p281
      %p283 = scmp.ne.s32.totalorder %s274, %s275
      %p284 = scmp.eq.s32.totalorder %s33, 0
      %p285 = por %p283, %p284
      %p286 = scmp.ne.s32.totalorder %s274, %s275
      %p287 = scmp.eq.s32.totalorder %s34, 1
      %p288 = por %p286, %p287
      %p290 = scmp.ne.s32.totalorder %s275, %s289
      %p291 = scmp.eq.s32.totalorder %s34, 0
      %p292 = por %p290, %p291
      %s294 = sadd.s32 %s293, 1
      %p297 = scmp.eq.s32.totalorder %s28, 1
      %p298 = scmp.ne.s32.totalorder %s293, %s295
      %p299 = scmp.eq.s32.totalorder %s28, 0
      %p300 = por %p298, %p299
      %p301 = scmp.ne.s32.totalorder %s293, %s295
      %p302 = scmp.eq.s32.totalorder %s33, 1
      %p303 = por %p301, %p302
      %p304 = scmp.ne.s32.totalorder %s295, %s296
      %p305 = scmp.eq.s32.totalorder %s33, 0
      %p306 = por %p304, %p305
      %p307 = scmp.ne.s32.totalorder %s295, %s296
      %p308 = scmp.eq.s32.totalorder %s34, 1
      %p309 = por %p307, %p308
      %p311 = scmp.ne.s32.totalorder %s296, %s310
      %p312 = scmp.eq.s32.totalorder %s34, 0
      %p313 = por %p311, %p312
      %s315 = sadd.s32 %s314, 1
      %p318 = scmp.eq.s32.totalorder %s28, 1
      %p319 = scmp.ne.s32.totalorder %s314, %s316
      %p320 = scmp.eq.s32.totalorder %s28, 0
      %p321 = por %p319, %p320
      %p322 = scmp.ne.s32.totalorder %s314, %s316
      %p323 = scmp.eq.s32.totalorder %s33, 1
      %p324 = por %p322, %p323
      %p325 = scmp.ne.s32.totalorder %s316, %s317
      %p326 = scmp.eq.s32.totalorder %s33, 0
      %p327 = por %p325, %p326
      %p328 = scmp.ne.s32.totalorder %s316, %s317
      %p329 = scmp.eq.s32.totalorder %s34, 1
      %p330 = por %p328, %p329
      %p332 = scmp.ne.s32.totalorder %s317, %s331
      %p333 = scmp.eq.s32.totalorder %s34, 0
      %p334 = por %p332, %p333
      %s336 = sadd.s32 %s335, 1
      %p339 = scmp.eq.s32.totalorder %s28, 1
      %p340 = scmp.ne.s32.totalorder %s335, %s337
      %p341 = scmp.eq.s32.totalorder %s28, 0
      %p342 = por %p340, %p341
      %p343 = scmp.ne.s32.totalorder %s335, %s337
      %p344 = scmp.eq.s32.totalorder %s33, 1
      %p345 = por %p343, %p344
      %p346 = scmp.ne.s32.totalorder %s337, %s338
      %p347 = scmp.eq.s32.totalorder %s33, 0
      %p348 = por %p346, %p347
      %p349 = scmp.ne.s32.totalorder %s337, %s338
      %p350 = scmp.eq.s32.totalorder %s34, 1
      %p351 = por %p349, %p350
      %p353 = scmp.ne.s32.totalorder %s338, %s352
      %p354 = scmp.eq.s32.totalorder %s34, 0
      %p355 = por %p353, %p354
      %s357 = sadd.s32 %s356, 1
      %p360 = scmp.eq.s32.totalorder %s28, 1
      %p361 = scmp.ne.s32.totalorder %s356, %s358
      %p362 = scmp.eq.s32.totalorder %s28, 0
      %p363 = por %p361, %p362
      %p364 = scmp.ne.s32.totalorder %s356, %s358
      %p365 = scmp.eq.s32.totalorder %s33, 1
      %p366 = por %p364, %p365
      %p367 = scmp.ne.s32.totalorder %s358, %s359
      %p368 = scmp.eq.s32.totalorder %s33, 0
      %p369 = por %p367, %p368
      %p370 = scmp.ne.s32.totalorder %s358, %s359
      %p371 = scmp.eq.s32.totalorder %s34, 1
      %p372 = por %p370, %p371
      %p374 = scmp.ne.s32.totalorder %s359, %s373
      %p375 = scmp.eq.s32.totalorder %s34, 0
      %p376 = por %p374, %p375
      %s378 = sadd.s32 %s377, 1
      %p381 = scmp.eq.s32.totalorder %s28, 1
      %p382 = scmp.ne.s32.totalorder %s377, %s379
      %p383 = scmp.eq.s32.totalorder %s28, 0
      %p384 = por %p382, %p383
      %p385 = scmp.ne.s32.totalorder %s377, %s379
      %p386 = scmp.eq.s32.totalorder %s33, 1
      %p387 = por %p385, %p386
      %p388 = scmp.ne.s32.totalorder %s379, %s380
      %p389 = scmp.eq.s32.totalorder %s33, 0
      %p390 = por %p388, %p389
      %p391 = scmp.ne.s32.totalorder %s379, %s380
      %p392 = scmp.eq.s32.totalorder %s34, 1
      %p393 = por %p391, %p392
      %p395 = scmp.ne.s32.totalorder %s380, %s394
      %p396 = scmp.eq.s32.totalorder %s34, 0
      %p397 = por %p395, %p396
      %s399 = sadd.s32 %s398, 1
      %p402 = scmp.eq.s32.totalorder %s28, 1
      %p403 = scmp.ne.s32.totalorder %s398, %s400
      %p404 = scmp.eq.s32.totalorder %s28, 0
      %p405 = por %p403, %p404
      %p406 = scmp.ne.s32.totalorder %s398, %s400
      %p407 = scmp.eq.s32.totalorder %s33, 1
      %p408 = por %p406, %p407
      %p409 = scmp.ne.s32.totalorder %s400, %s401
      %p410 = scmp.eq.s32.totalorder %s33, 0
      %p411 = por %p409, %p410
      %p412 = scmp.ne.s32.totalorder %s400, %s401
      %p413 = scmp.eq.s32.totalorder %s34, 1
      %p414 = por %p412, %p413
      %p416 = scmp.ne.s32.totalorder %s401, %s415
      %p417 = scmp.eq.s32.totalorder %s34, 0
      %p418 = por %p416, %p417
      %s420 = sadd.s32 %s419, 1
      %p423 = scmp.eq.s32.totalorder %s28, 1
      %p424 = scmp.ne.s32.totalorder %s419, %s421
      %p425 = scmp.eq.s32.totalorder %s28, 0
      %p426 = por %p424, %p425
      %p427 = scmp.ne.s32.totalorder %s419, %s421
      %p428 = scmp.eq.s32.totalorder %s33, 1
      %p429 = por %p427, %p428
      %p430 = scmp.ne.s32.totalorder %s421, %s422
      %p431 = scmp.eq.s32.totalorder %s33, 0
      %p432 = por %p430, %p431
      %p433 = scmp.ne.s32.totalorder %s421, %s422
      %p434 = scmp.eq.s32.totalorder %s34, 1
      %p435 = por %p433, %p434
      %p437 = scmp.ne.s32.totalorder %s422, %s436
      %p438 = scmp.eq.s32.totalorder %s34, 0
      %p439 = por %p437, %p438
      %s440 = ssub.s32 %s28, %s35
      %p441 = scmp.eq.s32.totalorder %s440, 0
      %s443 = sadd.s32 %s442, 1
      %s444 = scalar_select %p441, %s442, %s443
      %p447 = pneg %p441
      %p448 = scmp.eq.s32.totalorder %s28, 1
      %p449 = por %p447, %p448
      %p450 = scmp.ne.s32.totalorder %s442, %s445
      %p451 = scmp.eq.s32.totalorder %s28, 0
      %p452 = por %p450, %p451
      %p453 = scmp.ne.s32.totalorder %s442, %s445
      %p454 = scmp.eq.s32.totalorder %s33, 1
      %p455 = por %p453, %p454
      %p456 = scmp.ne.s32.totalorder %s445, %s446
      %p457 = scmp.eq.s32.totalorder %s33, 0
      %p458 = por %p456, %p457
      %p459 = scmp.ne.s32.totalorder %s445, %s446
      %p460 = scmp.eq.s32.totalorder %s34, 1
      %p461 = por %p459, %p460
      %p463 = scmp.ne.s32.totalorder %s446, %s462
      %p464 = scmp.eq.s32.totalorder %s34, 0
      %p465 = por %p463, %p464
      %p466 = scmp.le.s32.totalorder 1, %s28
      %p467 = scmp.lt.s32.totalorder %s28, 3
      %p468 = pnand %p466, %p467
      %p469 = pneg %p468
      // Predicated region
      $region9: #{vc1_encoder_forward.1} parent=5 // pred_check
        _
      $region10: #{vc1_encoder_forward.1} parent=5 // pred_check_branch
        %471 = sbr.rel (%p468) target = $region12
      $region11: #{vc1_encoder_forward.1} parent=5 // pred_region
        %s472 = ssub.s32 %s28, 1
        // Predicated region
        $region13: #{vc1_encoder_forward.1} parent=11 // pred_check
          %p473 = pneg %p75
        $region14: #{vc1_encoder_forward.1} parent=11 // pred_check_branch
          %475 = sbr.rel (%p473) target = $region16
        $region15: #{vc1_encoder_forward.1} parent=11 // pred_region
          _
        $region16: #{vc1_encoder_forward.1} parent=11 // pred_fallthru
          _
        // Predicated region
        $region17: #{vc1_encoder_forward.1} parent=11 // pred_check
          %p476 = pneg %p96
        $region18: #{vc1_encoder_forward.1} parent=11 // pred_check_branch
          %478 = sbr.rel (%p476) target = $region20
        $region19: #{vc1_encoder_forward.1} parent=11 // pred_region
          _
        $region20: #{vc1_encoder_forward.1} parent=11 // pred_fallthru
          _
        // Predicated region
        $region21: #{vc1_encoder_forward.1} parent=11 // pred_check
          %p479 = pneg %p117
        $region22: #{vc1_encoder_forward.1} parent=11 // pred_check_branch
          %481 = sbr.rel (%p479) target = $region24
        $region23: #{vc1_encoder_forward.1} parent=11 // pred_region
          _
        $region24: #{vc1_encoder_forward.1} parent=11 // pred_fallthru
          _
        // Predicated region
        $region25: #{vc1_encoder_forward.1} parent=11 // pred_check
          %p482 = pneg %p138
        $region26: #{vc1_encoder_forward.1} parent=11 // pred_check_branch
          %484 = sbr.rel (%p482) target = $region28
        $region27: #{vc1_encoder_forward.1} parent=11 // pred_region
          _
        $region28: #{vc1_encoder_forward.1} parent=11 // pred_fallthru
          _
        // Predicated region
        $region29: #{vc1_encoder_forward.1} parent=11 // pred_check
          %p485 = pneg %p159
        $region30: #{vc1_encoder_forward.1} parent=11 // pred_check_branch
          %487 = sbr.rel (%p485) target = $region32
        $region31: #{vc1_encoder_forward.1} parent=11 // pred_region
          _
        $region32: #{vc1_encoder_forward.1} parent=11 // pred_fallthru
          _
        // Predicated region
        $region33: #{vc1_encoder_forward.1} parent=11 // pred_check
          %p488 = pneg %p180
        $region34: #{vc1_encoder_forward.1} parent=11 // pred_check_branch
          %490 = sbr.rel (%p488) target = $region36
        $region35: #{vc1_encoder_forward.1} parent=11 // pred_region
          _
        $region36: #{vc1_encoder_forward.1} parent=11 // pred_fallthru
          _
        // Predicated region
        $region37: #{vc1_encoder_forward.1} parent=11 // pred_check
          %p491 = pneg %p201
        $region38: #{vc1_encoder_forward.1} parent=11 // pred_check_branch
          %493 = sbr.rel (%p491) target = $region40
        $region39: #{vc1_encoder_forward.1} parent=11 // pred_region
          _
        $region40: #{vc1_encoder_forward.1} parent=11 // pred_fallthru
          _
        // Predicated region
        $region41: #{vc1_encoder_forward.1} parent=11 // pred_check
          %p494 = pneg %p222
        $region42: #{vc1_encoder_forward.1} parent=11 // pred_check_branch
          %496 = sbr.rel (%p494) target = $region44
        $region43: #{vc1_encoder_forward.1} parent=11 // pred_region
          _
        $region44: #{vc1_encoder_forward.1} parent=11 // pred_fallthru
          _
        // Predicated region
        $region45: #{vc1_encoder_forward.1} parent=11 // pred_check
          %p497 = pneg %p243
        $region46: #{vc1_encoder_forward.1} parent=11 // pred_check_branch
          %499 = sbr.rel (%p497) target = $region48
        $region47: #{vc1_encoder_forward.1} parent=11 // pred_region
          _
        $region48: #{vc1_encoder_forward.1} parent=11 // pred_fallthru
          _
        // Predicated region
        $region49: #{vc1_encoder_forward.1} parent=11 // pred_check
          %p500 = pneg %p264
        $region50: #{vc1_encoder_forward.1} parent=11 // pred_check_branch
          %502 = sbr.rel (%p500) target = $region52
        $region51: #{vc1_encoder_forward.1} parent=11 // pred_region
          _
        $region52: #{vc1_encoder_forward.1} parent=11 // pred_fallthru
          _
        // Predicated region
        $region53: #{vc1_encoder_forward.1} parent=11 // pred_check
          %p503 = pneg %p285
        $region54: #{vc1_encoder_forward.1} parent=11 // pred_check_branch
          %505 = sbr.rel (%p503) target = $region56
        $region55: #{vc1_encoder_forward.1} parent=11 // pred_region
          _
        $region56: #{vc1_encoder_forward.1} parent=11 // pred_fallthru
          _
        // Predicated region
        $region57: #{vc1_encoder_forward.1} parent=11 // pred_check
          %p506 = pneg %p306
        $region58: #{vc1_encoder_forward.1} parent=11 // pred_check_branch
          %508 = sbr.rel (%p506) target = $region60
        $region59: #{vc1_encoder_forward.1} parent=11 // pred_region
          _
        $region60: #{vc1_encoder_forward.1} parent=11 // pred_fallthru
          _
        // Predicated region
        $region61: #{vc1_encoder_forward.1} parent=11 // pred_check
          %p509 = pneg %p327
        $region62: #{vc1_encoder_forward.1} parent=11 // pred_check_branch
          %511 = sbr.rel (%p509) target = $region64
        $region63: #{vc1_encoder_forward.1} parent=11 // pred_region
          _
        $region64: #{vc1_encoder_forward.1} parent=11 // pred_fallthru
          _
        // Predicated region
        $region65: #{vc1_encoder_forward.1} parent=11 // pred_check
          %p512 = pneg %p348
        $region66: #{vc1_encoder_forward.1} parent=11 // pred_check_branch
          %514 = sbr.rel (%p512) target = $region68
        $region67: #{vc1_encoder_forward.1} parent=11 // pred_region
          _
        $region68: #{vc1_encoder_forward.1} parent=11 // pred_fallthru
          _
        // Predicated region
        $region69: #{vc1_encoder_forward.1} parent=11 // pred_check
          %p515 = pneg %p369
        $region70: #{vc1_encoder_forward.1} parent=11 // pred_check_branch
          %517 = sbr.rel (%p515) target = $region72
        $region71: #{vc1_encoder_forward.1} parent=11 // pred_region
          _
        $region72: #{vc1_encoder_forward.1} parent=11 // pred_fallthru
          _
        // Predicated region
        $region73: #{vc1_encoder_forward.1} parent=11 // pred_check
          %p518 = pneg %p390
        $region74: #{vc1_encoder_forward.1} parent=11 // pred_check_branch
          %520 = sbr.rel (%p518) target = $region76
        $region75: #{vc1_encoder_forward.1} parent=11 // pred_region
          _
        $region76: #{vc1_encoder_forward.1} parent=11 // pred_fallthru
          _
        // Predicated region
        $region77: #{vc1_encoder_forward.1} parent=11 // pred_check
          %p521 = pneg %p411
        $region78: #{vc1_encoder_forward.1} parent=11 // pred_check_branch
          %523 = sbr.rel (%p521) target = $region80
        $region79: #{vc1_encoder_forward.1} parent=11 // pred_region
          _
        $region80: #{vc1_encoder_forward.1} parent=11 // pred_fallthru
          _
        // Predicated region
        $region81: #{vc1_encoder_forward.1} parent=11 // pred_check
          %p524 = pneg %p432
        $region82: #{vc1_encoder_forward.1} parent=11 // pred_check_branch
          %526 = sbr.rel (%p524) target = $region84
        $region83: #{vc1_encoder_forward.1} parent=11 // pred_region
          _
        $region84: #{vc1_encoder_forward.1} parent=11 // pred_fallthru
          _
      $region12: #{vc1_encoder_forward.1} parent=5 // pred_fallthru
        _
      %p527 = scmp.lt.s32.totalorder %s28, 2
      // Predicated region
      $region85: #{vc1_encoder_forward.1} parent=5 // pred_check
        %p528 = pneg %p527
      $region86: #{vc1_encoder_forward.1} parent=5 // pred_check_branch
        %530 = sbr.rel (%p528) target = $region88
      $region87: #{vc1_encoder_forward.1} parent=5 // pred_region
        // Predicated region
        $region89: #{vc1_encoder_forward.1} parent=87 // pred_check
          %p531 = pneg %p48
        $region90: #{vc1_encoder_forward.1} parent=87 // pred_check_branch
          %533 = sbr.rel (%p531) target = $region92
        $region91: #{vc1_encoder_forward.1} parent=87 // pred_region
          %p534 = scmp.lt.s32.totalorder %s28, 1
          %s535 = scalar_select %p534, %s28, 1
          %s536 = smul.addr %s535, 2
          %s537 = smul.addr %s536, 4
          %s538 = scalar_lea.vmem %s0, %s537
        $region92: #{vc1_encoder_forward.1} parent=87 // pred_fallthru
          _
      $region88: #{vc1_encoder_forward.1} parent=5 // pred_fallthru
        _
      %p539 = scmp.le.s32.totalorder 1, %s28
      %p540 = scmp.lt.s32.totalorder %s28, 3
      %p541 = pnand %p539, %p540
      %p542 = pneg %p541
      // Predicated region
      $region93: #{vc1_encoder_forward.1} parent=5 // pred_check
        _
      $region94: #{vc1_encoder_forward.1} parent=5 // pred_check_branch
        %544 = sbr.rel (%p541) target = $region96
      $region95: #{vc1_encoder_forward.1} parent=5 // pred_region
        %s545 = ssub.s32 %s28, 1
        %p546 = scmp.lt.s32.totalorder %s33, 1
        %s547 = scalar_select %p546, %s33, 1
        %s548 = smul.addr %s547, 2
        %s549 = smul.addr %s548, 4
        %s550 = scalar_lea.vmem %s0, %s549
        %p551 = pneg %p54
        %p552 = pneg %p51
        %p553 = pneg %p75
        %p554 = pneg %p72
        %p555 = pneg %p96
        %p556 = pneg %p93
        %p557 = pneg %p117
        %p558 = pneg %p114
        %p559 = pneg %p138
        %p560 = pneg %p135
        %p561 = pneg %p159
        %p562 = pneg %p156
        %p563 = pneg %p180
        %p564 = pneg %p177
        %p565 = pneg %p201
        %p566 = pneg %p198
        %p567 = pneg %p222
        %p568 = pneg %p219
        %p569 = pneg %p243
        %p570 = pneg %p240
        %p571 = pneg %p264
        %p572 = pneg %p261
        %p573 = pneg %p285
        %p574 = pneg %p282
        %p575 = pneg %p306
        %p576 = pneg %p303
        %p577 = pneg %p327
        %p578 = pneg %p324
        %p579 = pneg %p348
        %p580 = pneg %p345
        %p581 = pneg %p369
        %p582 = pneg %p366
        %p583 = pneg %p390
        %p584 = pneg %p387
        %p585 = pneg %p411
        %p586 = pneg %p408
        %p587 = pneg %p432
        %p588 = pneg %p429
        %p589 = pneg %p458
        %p590 = pneg %p455
        %s591 = sand.u32 %s445, 1
        %s592 = scalar_lea.sflag [#allocation4], %s591
        %s593 = sand.u32 %s445, 1
        %s594 = scalar_lea.vmem [#allocation3], %s593
        %p595 = scmp.lt.s32.totalorder %s33, 1
        %s596 = scalar_select %p595, %s33, 1
        %s597 = smul.addr %s596, 2
        %s598 = smul.addr %s597, 4
        %s599 = scalar_lea.vmem %s0, %s598
        %v601 = vld [vmem:[%s599] sm:$0xff]
        %v602 = vld [vmem:[%s1] sm:$0xf]
        %v603 = vld [vmem:[%s1 + $0x4] sm:$0xf]
        %v604 = vld [vmem:[%s1 + $0x8] sm:$0xf]
        %v605 = vld [vmem:[%s1 + $0xc] sm:$0xf]
        %v606 = vld [vmem:[%s1 + $0x10] sm:$0xf]
        %v607 = vld [vmem:[%s1 + $0x14] sm:$0xf]
        %v608 = vld [vmem:[%s1 + $0x18] sm:$0xf]
        %v609 = vld [vmem:[%s1 + $0x1c] sm:$0xf]
        %v610 = vld [vmem:[%s1 + $0x20] sm:$0xf]
        %v611 = vld [vmem:[%s1 + $0x24] sm:$0xf]
        %v612 = vld [vmem:[%s1 + $0x28] sm:$0xf]
        %v613 = vld [vmem:[%s1 + $0x2c] sm:$0xf]
        %v614 = vld [vmem:[%s1 + $0x30] sm:$0xf]
        %v615 = vld [vmem:[%s1 + $0x34] sm:$0xf]
        %v616 = vld [vmem:[%s1 + $0x38] sm:$0xf]
        %v617 = vld [vmem:[%s1 + $0x3c] sm:$0xf]
        %v618 = vld [vmem:[%s1 + $0x40] sm:$0xf]
        %v619 = vld [vmem:[%s1 + $0x44] sm:$0xf]
        %v620 = vld [vmem:[%s1 + $0x48] sm:$0xf]
        %v621 = vld [vmem:[%s1 + $0x4c] sm:$0xf]
        %v622 = vld [vmem:[%s1 + $0x50] sm:$0xf]
        %v623 = vld [vmem:[%s1 + $0x54] sm:$0xf]
        %v624 = vld [vmem:[%s1 + $0x58] sm:$0xf]
        %v625 = vld [vmem:[%s1 + $0x5c] sm:$0xf]
        %v627 = vcombine.high %v601, %v601
        %v629 = vpack.c.bf16 %v601, %v601
        %v630 = vpack.c.bf16 %v627, %v627
        %v631 = vld [vmem:[%s2] sm:$0x1]
        %v633 = vlaneseq
        %v634 = vshrl.u32 %v633, 7
        %v635 = vsub.s32 0, %v634
        %v636 = vrot.slane %v631, %v635
        %v662 = vunpack.c.l.b16 %v602
        %v663 = vunpack.c.l.b16 %v603
        %v664 = vunpack.c.l.b16 %v604
        %v665 = vunpack.c.l.b16 %v605
        %v666 = vunpack.c.l.b16 %v606
        %v667 = vunpack.c.l.b16 %v607
        %v668 = vunpack.c.l.b16 %v608
        %v669 = vunpack.c.l.b16 %v609
        %v670 = vunpack.c.l.b16 %v610
        %v671 = vunpack.c.l.b16 %v611
        %v672 = vunpack.c.l.b16 %v612
        %v673 = vunpack.c.l.b16 %v613
        %v674 = vunpack.c.l.b16 %v614
        %v675 = vunpack.c.l.b16 %v615
        %v676 = vunpack.c.l.b16 %v616
        %v677 = vunpack.c.l.b16 %v617
        %v678 = vunpack.c.l.b16 %v618
        %v679 = vunpack.c.l.b16 %v619
        %v680 = vunpack.c.l.b16 %v620
        %v681 = vunpack.c.l.b16 %v621
        %v682 = vunpack.c.l.b16 %v622
        %v683 = vunpack.c.l.b16 %v623
        %v684 = vunpack.c.l.b16 %v624
        %v685 = vunpack.c.l.b16 %v625
        %v686 = vpack.c.b16 %v663, %v662
        %v687 = vpack.c.b16 %v665, %v664
        %v688 = vpack.c.b16 %v667, %v666
        %v689 = vpack.c.b16 %v669, %v668
        %v690 = vpack.c.b16 %v671, %v670
        %v691 = vpack.c.b16 %v673, %v672
        %v692 = vpack.c.b16 %v675, %v674
        %v693 = vpack.c.b16 %v677, %v676
        %v694 = vpack.c.b16 %v679, %v678
        %v695 = vpack.c.b16 %v681, %v680
        %v696 = vpack.c.b16 %v683, %v682
        %v697 = vpack.c.b16 %v685, %v684
        %vm710 = vcmask 523264
        %v712 = vsel %vm710, %v630, 0
        %714 = vmatprep.subr.bf16.mxu0 0
        %715 = vmatpush1.bf16.msra.mxu0 %v693
        %716 = vmatprep.subr.bf16.mxu0 0
        %717 = vmatpush1.bf16.msra.mxu0 %v692
        %718 = vmatprep.subr.bf16.mxu0 0
        %719 = vmatpush1.bf16.msra.mxu0 %v691
        %720 = vmatprep.subr.bf16.mxu0 0
        %721 = vmatpush1.bf16.msra.mxu0 %v690
        %722 = vmatprep.subr.bf16.mxu0 0
        %723 = vmatpush1.bf16.msra.mxu0 %v689
        %724 = vmatprep.subr.bf16.mxu0 0
        %725 = vmatpush1.bf16.msra.mxu0 %v688
        %726 = vmatprep.subr.bf16.mxu0 0
        %727 = vmatpush1.bf16.msra.mxu0 %v687
        %728 = vmatprep.subr.bf16.mxu0 0
        %729 = vmatpush1.bf16.msra.mxu0 %v686
        %730 = vmatprep.subr.bf16.mxu0 0
        %731 = vmatpush2.bf16.msra.mxu0 0
        %732 = vmatprep.subr.bf16.mxu0 0
        %733 = vmatpush2.bf16.msra.mxu0 0
        %734 = vmatprep.subr.bf16.mxu0 0
        %735 = vmatpush2.bf16.msra.mxu0 0
        %736 = vmatprep.subr.bf16.mxu0 0
        %737 = vmatpush2.bf16.msra.mxu0 0
        %738 = vmatprep.subr.bf16.mxu0 0
        %739 = vmatpush2.bf16.msra.mxu0 %v697
        %740 = vmatprep.subr.bf16.mxu0 0
        %741 = vmatpush2.bf16.msra.mxu0 %v696
        %742 = vmatprep.subr.bf16.mxu0 0
        %743 = vmatpush2.bf16.msra.mxu0 %v695
        %744 = vmatprep.subr.bf16.mxu0 0
        %745 = vmatpush2.bf16.msra.mxu0 %v694
        %746 = vmatprep.mubr.bf16.mxu0 %v712
        %747 = vmatmul.mubr.bf16.gmra.mxu0 %v629
        %v748 = vpop.f32.mrf.mxu0
        %v749 = vadd.f32 %v636, %v748
        %v750 = vpop.f32.mrf.mxu0
        %v751 = vpop.f32.mrf.mxu0
        %v752 = vpop.f32.mrf.mxu0
        %753 = vdwg.mxu0
        %v754 = vld [vmem:[%s3] sm:$0x1]
        %vm755 = vcmask 516096
        %756 = vst.msk [vmem:[#allocation2] sm:$0x1] %vm755, %v754
        %vm757 = vcmask 519168
        %758 = vst.msk [vmem:[#allocation2 + $0x1] sm:$0xf] %vm757, %v749
        %v759 = vld [vmem:[#allocation2] sm:$0x1f]
        %v760 = vld [vmem:[%s4] sm:$0x1f]
        %v761 = vadd.f32 %v759, %v760
        %v762 = vld [vmem:[%s5] sm:$0x1]
        %v763 = vld [vmem:[%s6] sm:$0x1]
        %vm764 = vcmask 520192
        %v765 = vsel %vm764, %v761, 0.0
        %766 = vadd.xlane.f32.xlu0 %v765
        %v767 = vpop.xlane.xlu0 %766
        %v768 = vrcp.pop 64.0
        %v769 = vmul.f32 %v767, %v768
        %v770 = vsub.f32 %v761, %v769
        %v771 = vmul.f32 %v770, %v770
        %v772 = vsel %vm764, %v771, 0.0
        %773 = vadd.xlane.f32.xlu0 %v772
        %v774 = vpop.xlane.xlu0 %773
        %v775 = vmul.f32 %v774, %v768
        %v776 = vadd.f32 %v775, 1e-06
        %v777 = vrsqrt.pop %v776
        %v778 = vmul.f32 %v770, %v777
        %v780 = vlaneseq
        %v781 = vshrl.u32 %v780, 7
        %v782 = vsub.s32 0, %v781
        %v783 = vrot.slane %v762, %v782
        %v785 = vmul.f32 %v778, %v783
        %v787 = vlaneseq
        %v788 = vshrl.u32 %v787, 7
        %v789 = vsub.s32 0, %v788
        %v790 = vrot.slane %v763, %v789
        %v792 = vadd.f32 %v785, %v790
        %v793 = vld [vmem:[%s7] sm:$0xff]
        %v794 = vld [vmem:[%s7 + $0x8] sm:$0xff]
        %v795 = vld [vmem:[%s7 + $0x10] sm:$0xff]
        %v796 = vld [vmem:[%s7 + $0x18] sm:$0xff]
        %v797 = vld [vmem:[%s7 + $0x20] sm:$0xff]
        %v798 = vld [vmem:[%s7 + $0x28] sm:$0xff]
        %v799 = vld [vmem:[%s7 + $0x30] sm:$0xff]
        %v800 = vld [vmem:[%s7 + $0x38] sm:$0xff]
        %v801 = vpack.c.bf16 %v792, %v792
        %v802 = vld [vmem:[%s8] sm:$0x3]
        %v804 = vlaneseq
        %v805 = vshrl.u32 %v804, 7
        %v806 = vsub.s32 0, %v805
        %v807 = vrot.slane %v802, %v806
        %v808 = vlaneseq
        %v809 = vshrl.u32 %v808, 7
        %v810 = vsub.s32 1, %v809
        %v811 = vrot.slane %v802, %v810
        %v822 = vunpack.c.l.b16 %v793
        %v823 = vunpack.c.h.b16 %v793
        %v824 = vunpack.c.l.b16 %v794
        %v825 = vunpack.c.h.b16 %v794
        %v826 = vunpack.c.l.b16 %v795
        %v827 = vunpack.c.h.b16 %v795
        %v828 = vunpack.c.l.b16 %v796
        %v829 = vunpack.c.h.b16 %v796
        %v830 = vunpack.c.l.b16 %v797
        %v831 = vunpack.c.h.b16 %v797
        %v832 = vunpack.c.l.b16 %v798
        %v833 = vunpack.c.h.b16 %v798
        %v834 = vunpack.c.l.b16 %v799
        %v835 = vunpack.c.h.b16 %v799
        %v836 = vunpack.c.l.b16 %v800
        %v837 = vunpack.c.h.b16 %v800
        %v838 = vpack.c.b16 %v824, %v822
        %v839 = vpack.c.b16 %v825, %v823
        %v840 = vpack.c.b16 %v828, %v826
        %v841 = vpack.c.b16 %v829, %v827
        %v842 = vpack.c.b16 %v832, %v830
        %v843 = vpack.c.b16 %v833, %v831
        %v844 = vpack.c.b16 %v836, %v834
        %v845 = vpack.c.b16 %v837, %v835
        %v855 = vsel %vm710, %v801, 0
        %857 = vmatprep.subr.bf16.mxu0 0
        %858 = vmatpush1.bf16.msra.mxu0 0
        %859 = vmatprep.subr.bf16.mxu0 0
        %860 = vmatpush1.bf16.msra.mxu0 0
        %861 = vmatprep.subr.bf16.mxu0 0
        %862 = vmatpush1.bf16.msra.mxu0 0
        %863 = vmatprep.subr.bf16.mxu0 0
        %864 = vmatpush1.bf16.msra.mxu0 0
        %865 = vmatprep.subr.bf16.mxu0 %v845
        %866 = vmatpush1.bf16.msra.mxu0 %v844
        %867 = vmatprep.subr.bf16.mxu0 %v843
        %868 = vmatpush1.bf16.msra.mxu0 %v842
        %869 = vmatprep.subr.bf16.mxu0 %v841
        %870 = vmatpush1.bf16.msra.mxu0 %v840
        %871 = vmatprep.subr.bf16.mxu0 %v839
        %872 = vmatpush1.bf16.msra.mxu0 %v838
        %873 = vmatprep.subr.bf16.mxu0 0
        %874 = vmatpush2.bf16.msra.mxu0 0
        %875 = vmatprep.subr.bf16.mxu0 0
        %876 = vmatpush2.bf16.msra.mxu0 0
        %877 = vmatprep.subr.bf16.mxu0 0
        %878 = vmatpush2.bf16.msra.mxu0 0
        %879 = vmatprep.subr.bf16.mxu0 0
        %880 = vmatpush2.bf16.msra.mxu0 0
        %881 = vmatprep.subr.bf16.mxu0 0
        %882 = vmatpush2.bf16.msra.mxu0 0
        %883 = vmatprep.subr.bf16.mxu0 0
        %884 = vmatpush2.bf16.msra.mxu0 0
        %885 = vmatprep.subr.bf16.mxu0 0
        %886 = vmatpush2.bf16.msra.mxu0 0
        %887 = vmatprep.subr.bf16.mxu0 0
        %888 = vmatpush2.bf16.msra.mxu0 0
        %889 = vmatprep.mubr.bf16.mxu0 0
        %890 = vmatmul.mubr.bf16.gmra.mxu0 %v855
        %v891 = vpop.f32.mrf.mxu0
        %v892 = vadd.f32 %v807, %v891
        %v893 = vpop.f32.mrf.mxu0
        %v894 = vadd.f32 %v811, %v893
        %v895 = vpop.f32.mrf.mxu0
        %v896 = vpop.f32.mrf.mxu0
        %897 = vdwg.mxu0
        %v898 = vmul.f32 %v892, 0.25
        %v899 = vpack.c.bf16 %v898, %v898
        %v900 = vpack.c.bf16 %v892, %v892
        %902 = vrot.lane.b32.xlu0 %v900, 64
        %v903 = vpop.permute.xlu0 %902
        %vm904 = vcmask 130048
        %v906 = vsel %vm904, %v899, 0
        %v909 = vsel %vm904, %v903, 0
        %911 = vmatprep.subr.bf16.mxu0 0
        %912 = vmatpush1.bf16.xpose.msra.mxu0 0
        %913 = vmatprep.subr.bf16.mxu0 0
        %914 = vmatpush1.bf16.xpose.msra.mxu0 0
        %915 = vmatprep.subr.bf16.mxu0 0
        %916 = vmatpush1.bf16.xpose.msra.mxu0 0
        %917 = vmatprep.subr.bf16.mxu0 0
        %918 = vmatpush1.bf16.xpose.msra.mxu0 0
        %919 = vmatprep.subr.bf16.mxu0 0
        %920 = vmatpush1.bf16.xpose.msra.mxu0 0
        %921 = vmatprep.subr.bf16.mxu0 0
        %922 = vmatpush1.bf16.xpose.msra.mxu0 0
        %923 = vmatprep.subr.bf16.mxu0 0
        %924 = vmatpush1.bf16.xpose.msra.mxu0 0
        %925 = vmatprep.subr.bf16.mxu0 0
        %926 = vmatpush1.bf16.xpose.msra.mxu0 %v909
        %927 = vmatprep.subr.bf16.mxu0 0
        %928 = vmatpush2.bf16.xpose.msra.mxu0 0
        %929 = vmatprep.subr.bf16.mxu0 0
        %930 = vmatpush2.bf16.xpose.msra.mxu0 0
        %931 = vmatprep.subr.bf16.mxu0 0
        %932 = vmatpush2.bf16.xpose.msra.mxu0 0
        %933 = vmatprep.subr.bf16.mxu0 0
        %934 = vmatpush2.bf16.xpose.msra.mxu0 0
        %935 = vmatprep.subr.bf16.mxu0 0
        %936 = vmatpush2.bf16.xpose.msra.mxu0 0
        %937 = vmatprep.subr.bf16.mxu0 0
        %938 = vmatpush2.bf16.xpose.msra.mxu0 0
        %939 = vmatprep.subr.bf16.mxu0 0
        %940 = vmatpush2.bf16.xpose.msra.mxu0 0
        %941 = vmatprep.subr.bf16.mxu0 0
        %942 = vmatpush2.bf16.xpose.msra.mxu0 0
        %943 = vmatprep.mubr.bf16.mxu0 0
        %944 = vmatmul.mubr.bf16.gmra.mxu0 %v906
        %v945 = vpop.f32.mrf.mxu0
        %v946 = vadd.f32 0.0, %v945
        %v947 = vpop.f32.mrf.mxu0
        %v948 = vpop.f32.mrf.mxu0
        %v949 = vpop.f32.mrf.mxu0
        %950 = vdwg.mxu0
        %vm951 = vcmask 36864
        %v952 = vsel %vm951, %v946, -inf
        %953 = vmax.xlane.f32.xlu0 %v952
        %v954 = vpop.xlane.xlu0 %953
        %v955 = vsub.f32 %v946, %v954
        %v956 = vmul.f32 %v955, 1.442695
        %v957 = vpow.pop %v956
        %v958 = vsel %vm951, %v957, 0.0
        %959 = vadd.xlane.f32.xlu0 %v958
        %v960 = vpop.xlane.xlu0 %959
        %v961 = vrcp.pop %v960
        %v962 = vmul.f32 %v957, %v961
        %v963 = vpack.c.bf16 %v962, %v962
        %v964 = vpack.c.bf16 %v894, %v894
        %vm965 = vcmask 39936
        %v967 = vsel %vm965, %v963, 0
        %vm969 = vcmask 1041408
        %vm970 = vcmask 1042432
        %v971 = vsel %vm969, 4294967295, 65535
        %v972 = vsel %vm970, %v971, 0
        %v974 = vand.u32 %v964, %v972
        %976 = vmatprep.subr.bf16.mxu0 0
        %977 = vmatpush1.bf16.msra.mxu0 0
        %978 = vmatprep.subr.bf16.mxu0 0
        %979 = vmatpush1.bf16.msra.mxu0 0
        %980 = vmatprep.subr.bf16.mxu0 0
        %981 = vmatpush1.bf16.msra.mxu0 0
        %982 = vmatprep.subr.bf16.mxu0 0
        %983 = vmatpush1.bf16.msra.mxu0 0
        %984 = vmatprep.subr.bf16.mxu0 0
        %985 = vmatpush1.bf16.msra.mxu0 0
        %986 = vmatprep.subr.bf16.mxu0 0
        %987 = vmatpush1.bf16.msra.mxu0 0
        %988 = vmatprep.subr.bf16.mxu0 0
        %989 = vmatpush1.bf16.msra.mxu0 0
        %990 = vmatprep.subr.bf16.mxu0 0
        %991 = vmatpush1.bf16.msra.mxu0 %v974
        %992 = vmatprep.subr.bf16.mxu0 0
        %993 = vmatpush2.bf16.msra.mxu0 0
        %994 = vmatprep.subr.bf16.mxu0 0
        %995 = vmatpush2.bf16.msra.mxu0 0
        %996 = vmatprep.subr.bf16.mxu0 0
        %997 = vmatpush2.bf16.msra.mxu0 0
        %998 = vmatprep.subr.bf16.mxu0 0
        %999 = vmatpush2.bf16.msra.mxu0 0
        %1000 = vmatprep.subr.bf16.mxu0 0
        %1001 = vmatpush2.bf16.msra.mxu0 0
        %1002 = vmatprep.subr.bf16.mxu0 0
        %1003 = vmatpush2.bf16.msra.mxu0 0
        %1004 = vmatprep.subr.bf16.mxu0 0
        %1005 = vmatpush2.bf16.msra.mxu0 0
        %1006 = vmatprep.subr.bf16.mxu0 0
        %1007 = vmatpush2.bf16.msra.mxu0 0
        %1008 = vmatprep.mubr.bf16.mxu0 0
        %1009 = vmatmul.mubr.bf16.gmra.mxu0 %v967
        %v1010 = vpop.f32.mrf.mxu0
        %v1011 = vadd.f32 0.0, %v1010
        %v1012 = vpop.f32.mrf.mxu0
        %v1013 = vpop.f32.mrf.mxu0
        %v1014 = vpop.f32.mrf.mxu0
        %1015 = vdwg.mxu0
        %v1016 = vld [vmem:[%s9] sm:$0xf]
        %v1017 = vld [vmem:[%s9 + $0x4] sm:$0xf]
        %v1018 = vpack.c.bf16 %v1011, %v1011
        %1020 = vrot.lane.b32.xlu0 %v899, 112
        %v1021 = vpop.permute.xlu0 %1020
        %1022 = vrot.lane.b32.xlu0 %v900, 48
        %v1023 = vpop.permute.xlu0 %1022
        %v1025 = vsel %vm904, %v1021, 0
        %v1028 = vsel %vm904, %v1023, 0
        %1030 = vmatprep.subr.bf16.mxu0 0
        %1031 = vmatpush1.bf16.xpose.msra.mxu0 0
        %1032 = vmatprep.subr.bf16.mxu0 0
        %1033 = vmatpush1.bf16.xpose.msra.mxu0 0
        %1034 = vmatprep.subr.bf16.mxu0 0
        %1035 = vmatpush1.bf16.xpose.msra.mxu0 0
        %1036 = vmatprep.subr.bf16.mxu0 0
        %1037 = vmatpush1.bf16.xpose.msra.mxu0 0
        %1038 = vmatprep.subr.bf16.mxu0 0
        %1039 = vmatpush1.bf16.xpose.msra.mxu0 0
        %1040 = vmatprep.subr.bf16.mxu0 0
        %1041 = vmatpush1.bf16.xpose.msra.mxu0 0
        %1042 = vmatprep.subr.bf16.mxu0 0
        %1043 = vmatpush1.bf16.xpose.msra.mxu0 0
        %1044 = vmatprep.subr.bf16.mxu0 0
        %1045 = vmatpush1.bf16.xpose.msra.mxu0 %v1028
        %1046 = vmatprep.subr.bf16.mxu0 0
        %1047 = vmatpush2.bf16.xpose.msra.mxu0 0
        %1048 = vmatprep.subr.bf16.mxu0 0
        %1049 = vmatpush2.bf16.xpose.msra.mxu0 0
        %1050 = vmatprep.subr.bf16.mxu0 0
        %1051 = vmatpush2.bf16.xpose.msra.mxu0 0
        %1052 = vmatprep.subr.bf16.mxu0 0
        %1053 = vmatpush2.bf16.xpose.msra.mxu0 0
        %1054 = vmatprep.subr.bf16.mxu0 0
        %1055 = vmatpush2.bf16.xpose.msra.mxu0 0
        %1056 = vmatprep.subr.bf16.mxu0 0
        %1057 = vmatpush2.bf16.xpose.msra.mxu0 0
        %1058 = vmatprep.subr.bf16.mxu0 0
        %1059 = vmatpush2.bf16.xpose.msra.mxu0 0
        %1060 = vmatprep.subr.bf16.mxu0 0
        %1061 = vmatpush2.bf16.xpose.msra.mxu0 0
        %1062 = vmatprep.mubr.bf16.mxu0 0
        %1063 = vmatmul.mubr.bf16.gmra.mxu0 %v1025
        %v1064 = vpop.f32.mrf.mxu0
        %v1065 = vadd.f32 0.0, %v1064
        %v1066 = vpop.f32.mrf.mxu0
        %v1067 = vpop.f32.mrf.mxu0
        %v1068 = vpop.f32.mrf.mxu0
        %1069 = vdwg.mxu0
        %v1070 = vsel %vm951, %v1065, -inf
        %1071 = vmax.xlane.f32.xlu0 %v1070
        %v1072 = vpop.xlane.xlu0 %1071
        %v1073 = vsub.f32 %v1065, %v1072
        %v1074 = vmul.f32 %v1073, 1.442695
        %v1075 = vpow.pop %v1074
        %v1076 = vsel %vm951, %v1075, 0.0
        %1077 = vadd.xlane.f32.xlu0 %v1076
        %v1078 = vpop.xlane.xlu0 %1077
        %v1079 = vrcp.pop %v1078
        %v1080 = vmul.f32 %v1075, %v1079
        %v1081 = vpack.c.bf16 %v1080, %v1080
        %1083 = vrot.lane.b32.xlu0 %v964, 112
        %v1084 = vpop.permute.xlu0 %1083
        %v1086 = vsel %vm965, %v1081, 0
        %v1089 = vand.u32 %v1084, %v972
        %1091 = vmatprep.subr.bf16.mxu0 0
        %1092 = vmatpush1.bf16.msra.mxu0 0
        %1093 = vmatprep.subr.bf16.mxu0 0
        %1094 = vmatpush1.bf16.msra.mxu0 0
        %1095 = vmatprep.subr.bf16.mxu0 0
        %1096 = vmatpush1.bf16.msra.mxu0 0
        %1097 = vmatprep.subr.bf16.mxu0 0
        %1098 = vmatpush1.bf16.msra.mxu0 0
        %1099 = vmatprep.subr.bf16.mxu0 0
        %1100 = vmatpush1.bf16.msra.mxu0 0
        %1101 = vmatprep.subr.bf16.mxu0 0
        %1102 = vmatpush1.bf16.msra.mxu0 0
        %1103 = vmatprep.subr.bf16.mxu0 0
        %1104 = vmatpush1.bf16.msra.mxu0 0
        %1105 = vmatprep.subr.bf16.mxu0 0
        %1106 = vmatpush1.bf16.msra.mxu0 %v1089
        %1107 = vmatprep.subr.bf16.mxu0 0
        %1108 = vmatpush2.bf16.msra.mxu0 0
        %1109 = vmatprep.subr.bf16.mxu0 0
        %1110 = vmatpush2.bf16.msra.mxu0 0
        %1111 = vmatprep.subr.bf16.mxu0 0
        %1112 = vmatpush2.bf16.msra.mxu0 0
        %1113 = vmatprep.subr.bf16.mxu0 0
        %1114 = vmatpush2.bf16.msra.mxu0 0
        %1115 = vmatprep.subr.bf16.mxu0 0
        %1116 = vmatpush2.bf16.msra.mxu0 0
        %1117 = vmatprep.subr.bf16.mxu0 0
        %1118 = vmatpush2.bf16.msra.mxu0 0
        %1119 = vmatprep.subr.bf16.mxu0 0
        %1120 = vmatpush2.bf16.msra.mxu0 0
        %1121 = vmatprep.subr.bf16.mxu0 0
        %1122 = vmatpush2.bf16.msra.mxu0 0
        %1123 = vmatprep.mubr.bf16.mxu0 0
        %1124 = vmatmul.mubr.bf16.gmra.mxu0 %v1086
        %v1125 = vpop.f32.mrf.mxu0
        %v1126 = vadd.f32 0.0, %v1125
        %v1127 = vpop.f32.mrf.mxu0
        %v1128 = vpop.f32.mrf.mxu0
        %v1129 = vpop.f32.mrf.mxu0
        %1130 = vdwg.mxu0
        %v1131 = vld [vmem:[%s9 + $0x8] sm:$0xf]
        %v1132 = vld [vmem:[%s9 + $0xc] sm:$0xf]
        %v1133 = vpack.c.bf16 %v1126, %v1126
        %v1136 = vunpack.c.l.b16 %v1131
        %v1137 = vunpack.c.l.b16 %v1132
        %v1138 = vpack.c.b16 %v1137, %v1136
        %v1141 = vsel %vm904, %v1133, 0
        %1143 = vmatprep.subr.bf16.mxu0 0
        %1144 = vmatpush1.bf16.msra.mxu0 0
        %1145 = vmatprep.subr.bf16.mxu0 0
        %1146 = vmatpush1.bf16.msra.mxu0 0
        %1147 = vmatprep.subr.bf16.mxu0 0
        %1148 = vmatpush1.bf16.msra.mxu0 0
        %1149 = vmatprep.subr.bf16.mxu0 0
        %1150 = vmatpush1.bf16.msra.mxu0 0
        %1151 = vmatprep.subr.bf16.mxu0 0
        %1152 = vmatpush1.bf16.msra.mxu0 0
        %1153 = vmatprep.subr.bf16.mxu0 0
        %1154 = vmatpush1.bf16.msra.mxu0 0
        %1155 = vmatprep.subr.bf16.mxu0 0
        %1156 = vmatpush1.bf16.msra.mxu0 0
        %1157 = vmatprep.subr.bf16.mxu0 0
        %1158 = vmatpush1.bf16.msra.mxu0 %v1138
        %1159 = vmatprep.subr.bf16.mxu0 0
        %1160 = vmatpush2.bf16.msra.mxu0 0
        %1161 = vmatprep.subr.bf16.mxu0 0
        %1162 = vmatpush2.bf16.msra.mxu0 0
        %1163 = vmatprep.subr.bf16.mxu0 0
        %1164 = vmatpush2.bf16.msra.mxu0 0
        %1165 = vmatprep.subr.bf16.mxu0 0
        %1166 = vmatpush2.bf16.msra.mxu0 0
        %1167 = vmatprep.subr.bf16.mxu0 0
        %1168 = vmatpush2.bf16.msra.mxu0 0
        %1169 = vmatprep.subr.bf16.mxu0 0
        %1170 = vmatpush2.bf16.msra.mxu0 0
        %1171 = vmatprep.subr.bf16.mxu0 0
        %1172 = vmatpush2.bf16.msra.mxu0 0
        %1173 = vmatprep.subr.bf16.mxu0 0
        %1174 = vmatpush2.bf16.msra.mxu0 0
        %1175 = vmatprep.mubr.bf16.mxu0 0
        %1176 = vmatmul.mubr.bf16.gmra.mxu0 %v1141
        %v1177 = vpop.f32.mrf.mxu0
        %v1178 = vadd.f32 0.0, %v1177
        %v1179 = vpop.f32.mrf.mxu0
        %v1180 = vpop.f32.mrf.mxu0
        %v1181 = vpop.f32.mrf.mxu0
        %1182 = vdwg.mxu0
        %v1185 = vunpack.c.l.b16 %v1016
        %v1186 = vunpack.c.l.b16 %v1017
        %v1187 = vpack.c.b16 %v1186, %v1185
        %v1190 = vsel %vm904, %v1018, 0
        %1192 = vmatprep.subr.bf16.mxu0 0
        %1193 = vmatpush1.bf16.msra.mxu0 0
        %1194 = vmatprep.subr.bf16.mxu0 0
        %1195 = vmatpush1.bf16.msra.mxu0 0
        %1196 = vmatprep.subr.bf16.mxu0 0
        %1197 = vmatpush1.bf16.msra.mxu0 0
        %1198 = vmatprep.subr.bf16.mxu0 0
        %1199 = vmatpush1.bf16.msra.mxu0 0
        %1200 = vmatprep.subr.bf16.mxu0 0
        %1201 = vmatpush1.bf16.msra.mxu0 0
        %1202 = vmatprep.subr.bf16.mxu0 0
        %1203 = vmatpush1.bf16.msra.mxu0 0
        %1204 = vmatprep.subr.bf16.mxu0 0
        %1205 = vmatpush1.bf16.msra.mxu0 0
        %1206 = vmatprep.subr.bf16.mxu0 0
        %1207 = vmatpush1.bf16.msra.mxu0 %v1187
        %1208 = vmatprep.subr.bf16.mxu0 0
        %1209 = vmatpush2.bf16.msra.mxu0 0
        %1210 = vmatprep.subr.bf16.mxu0 0
        %1211 = vmatpush2.bf16.msra.mxu0 0
        %1212 = vmatprep.subr.bf16.mxu0 0
        %1213 = vmatpush2.bf16.msra.mxu0 0
        %1214 = vmatprep.subr.bf16.mxu0 0
        %1215 = vmatpush2.bf16.msra.mxu0 0
        %1216 = vmatprep.subr.bf16.mxu0 0
        %1217 = vmatpush2.bf16.msra.mxu0 0
        %1218 = vmatprep.subr.bf16.mxu0 0
        %1219 = vmatpush2.bf16.msra.mxu0 0
        %1220 = vmatprep.subr.bf16.mxu0 0
        %1221 = vmatpush2.bf16.msra.mxu0 0
        %1222 = vmatprep.subr.bf16.mxu0 0
        %1223 = vmatpush2.bf16.msra.mxu0 0
        %1224 = vmatprep.mubr.bf16.mxu0 0
        %1225 = vmatmul.mubr.bf16.gmra.mxu0 %v1190
        %v1226 = vpop.f32.mrf.mxu0
        %v1227 = vadd.f32 %v1178, %v1226
        %v1228 = vpop.f32.mrf.mxu0
        %v1229 = vpop.f32.mrf.mxu0
        %v1230 = vpop.f32.mrf.mxu0
        %1231 = vdwg.mxu0
        %1232 = vrot.lane.b32.xlu0 %v899, 96
        %v1233 = vpop.permute.xlu0 %1232
        %1234 = vrot.lane.b32.xlu0 %v900, 32
        %v1235 = vpop.permute.xlu0 %1234
        %v1237 = vsel %vm904, %v1233, 0
        %v1240 = vsel %vm904, %v1235, 0
        %1242 = vmatprep.subr.bf16.mxu0 0
        %1243 = vmatpush1.bf16.xpose.msra.mxu0 0
        %1244 = vmatprep.subr.bf16.mxu0 0
        %1245 = vmatpush1.bf16.xpose.msra.mxu0 0
        %1246 = vmatprep.subr.bf16.mxu0 0
        %1247 = vmatpush1.bf16.xpose.msra.mxu0 0
        %1248 = vmatprep.subr.bf16.mxu0 0
        %1249 = vmatpush1.bf16.xpose.msra.mxu0 0
        %1250 = vmatprep.subr.bf16.mxu0 0
        %1251 = vmatpush1.bf16.xpose.msra.mxu0 0
        %1252 = vmatprep.subr.bf16.mxu0 0
        %1253 = vmatpush1.bf16.xpose.msra.mxu0 0
        %1254 = vmatprep.subr.bf16.mxu0 0
        %1255 = vmatpush1.bf16.xpose.msra.mxu0 0
        %1256 = vmatprep.subr.bf16.mxu0 0
        %1257 = vmatpush1.bf16.xpose.msra.mxu0 %v1240
        %1258 = vmatprep.subr.bf16.mxu0 0
        %1259 = vmatpush2.bf16.xpose.msra.mxu0 0
        %1260 = vmatprep.subr.bf16.mxu0 0
        %1261 = vmatpush2.bf16.xpose.msra.mxu0 0
        %1262 = vmatprep.subr.bf16.mxu0 0
        %1263 = vmatpush2.bf16.xpose.msra.mxu0 0
        %1264 = vmatprep.subr.bf16.mxu0 0
        %1265 = vmatpush2.bf16.xpose.msra.mxu0 0
        %1266 = vmatprep.subr.bf16.mxu0 0
        %1267 = vmatpush2.bf16.xpose.msra.mxu0 0
        %1268 = vmatprep.subr.bf16.mxu0 0
        %1269 = vmatpush2.bf16.xpose.msra.mxu0 0
        %1270 = vmatprep.subr.bf16.mxu0 0
        %1271 = vmatpush2.bf16.xpose.msra.mxu0 0
        %1272 = vmatprep.subr.bf16.mxu0 0
        %1273 = vmatpush2.bf16.xpose.msra.mxu0 0
        %1274 = vmatprep.mubr.bf16.mxu0 0
        %1275 = vmatmul.mubr.bf16.gmra.mxu0 %v1237
        %v1276 = vpop.f32.mrf.mxu0
        %v1277 = vadd.f32 0.0, %v1276
        %v1278 = vpop.f32.mrf.mxu0
        %v1279 = vpop.f32.mrf.mxu0
        %v1280 = vpop.f32.mrf.mxu0
        %1281 = vdwg.mxu0
        %v1282 = vsel %vm951, %v1277, -inf
        %1283 = vmax.xlane.f32.xlu0 %v1282
        %v1284 = vpop.xlane.xlu0 %1283
        %v1285 = vsub.f32 %v1277, %v1284
        %v1286 = vmul.f32 %v1285, 1.442695
        %v1287 = vpow.pop %v1286
        %v1288 = vsel %vm951, %v1287, 0.0
        %1289 = vadd.xlane.f32.xlu0 %v1288
        %v1290 = vpop.xlane.xlu0 %1289
        %v1291 = vrcp.pop %v1290
        %v1292 = vmul.f32 %v1287, %v1291
        %v1293 = vpack.c.bf16 %v1292, %v1292
        %1294 = vrot.lane.b32.xlu0 %v964, 96
        %v1295 = vpop.permute.xlu0 %1294
        %v1297 = vsel %vm965, %v1293, 0
        %v1300 = vand.u32 %v1295, %v972
        %1302 = vmatprep.subr.bf16.mxu0 0
        %1303 = vmatpush1.bf16.msra.mxu0 0
        %1304 = vmatprep.subr.bf16.mxu0 0
        %1305 = vmatpush1.bf16.msra.mxu0 0
        %1306 = vmatprep.subr.bf16.mxu0 0
        %1307 = vmatpush1.bf16.msra.mxu0 0
        %1308 = vmatprep.subr.bf16.mxu0 0
        %1309 = vmatpush1.bf16.msra.mxu0 0
        %1310 = vmatprep.subr.bf16.mxu0 0
        %1311 = vmatpush1.bf16.msra.mxu0 0
        %1312 = vmatprep.subr.bf16.mxu0 0
        %1313 = vmatpush1.bf16.msra.mxu0 0
        %1314 = vmatprep.subr.bf16.mxu0 0
        %1315 = vmatpush1.bf16.msra.mxu0 0
        %1316 = vmatprep.subr.bf16.mxu0 0
        %1317 = vmatpush1.bf16.msra.mxu0 %v1300
        %1318 = vmatprep.subr.bf16.mxu0 0
        %1319 = vmatpush2.bf16.msra.mxu0 0
        %1320 = vmatprep.subr.bf16.mxu0 0
        %1321 = vmatpush2.bf16.msra.mxu0 0
        %1322 = vmatprep.subr.bf16.mxu0 0
        %1323 = vmatpush2.bf16.msra.mxu0 0
        %1324 = vmatprep.subr.bf16.mxu0 0
        %1325 = vmatpush2.bf16.msra.mxu0 0
        %1326 = vmatprep.subr.bf16.mxu0 0
        %1327 = vmatpush2.bf16.msra.mxu0 0
        %1328 = vmatprep.subr.bf16.mxu0 0
        %1329 = vmatpush2.bf16.msra.mxu0 0
        %1330 = vmatprep.subr.bf16.mxu0 0
        %1331 = vmatpush2.bf16.msra.mxu0 0
        %1332 = vmatprep.subr.bf16.mxu0 0
        %1333 = vmatpush2.bf16.msra.mxu0 0
        %1334 = vmatprep.mubr.bf16.mxu0 0
        %1335 = vmatmul.mubr.bf16.gmra.mxu0 %v1297
        %v1336 = vpop.f32.mrf.mxu0
        %v1337 = vadd.f32 0.0, %v1336
        %v1338 = vpop.f32.mrf.mxu0
        %v1339 = vpop.f32.mrf.mxu0
        %v1340 = vpop.f32.mrf.mxu0
        %1341 = vdwg.mxu0
        %v1342 = vld [vmem:[%s9 + $0x10] sm:$0xf]
        %v1343 = vld [vmem:[%s9 + $0x14] sm:$0xf]
        %v1344 = vpack.c.bf16 %v1337, %v1337
        %v1347 = vunpack.c.l.b16 %v1342
        %v1348 = vunpack.c.l.b16 %v1343
        %v1349 = vpack.c.b16 %v1348, %v1347
        %v1352 = vsel %vm904, %v1344, 0
        %1354 = vmatprep.subr.bf16.mxu0 0
        %1355 = vmatpush1.bf16.msra.mxu0 0
        %1356 = vmatprep.subr.bf16.mxu0 0
        %1357 = vmatpush1.bf16.msra.mxu0 0
        %1358 = vmatprep.subr.bf16.mxu0 0
        %1359 = vmatpush1.bf16.msra.mxu0 0
        %1360 = vmatprep.subr.bf16.mxu0 0
        %1361 = vmatpush1.bf16.msra.mxu0 0
        %1362 = vmatprep.subr.bf16.mxu0 0
        %1363 = vmatpush1.bf16.msra.mxu0 0
        %1364 = vmatprep.subr.bf16.mxu0 0
        %1365 = vmatpush1.bf16.msra.mxu0 0
        %1366 = vmatprep.subr.bf16.mxu0 0
        %1367 = vmatpush1.bf16.msra.mxu0 0
        %1368 = vmatprep.subr.bf16.mxu0 0
        %1369 = vmatpush1.bf16.msra.mxu0 %v1349
        %1370 = vmatprep.subr.bf16.mxu0 0
        %1371 = vmatpush2.bf16.msra.mxu0 0
        %1372 = vmatprep.subr.bf16.mxu0 0
        %1373 = vmatpush2.bf16.msra.mxu0 0
        %1374 = vmatprep.subr.bf16.mxu0 0
        %1375 = vmatpush2.bf16.msra.mxu0 0
        %1376 = vmatprep.subr.bf16.mxu0 0
        %1377 = vmatpush2.bf16.msra.mxu0 0
        %1378 = vmatprep.subr.bf16.mxu0 0
        %1379 = vmatpush2.bf16.msra.mxu0 0
        %1380 = vmatprep.subr.bf16.mxu0 0
        %1381 = vmatpush2.bf16.msra.mxu0 0
        %1382 = vmatprep.subr.bf16.mxu0 0
        %1383 = vmatpush2.bf16.msra.mxu0 0
        %1384 = vmatprep.subr.bf16.mxu0 0
        %1385 = vmatpush2.bf16.msra.mxu0 0
        %1386 = vmatprep.mubr.bf16.mxu0 0
        %1387 = vmatmul.mubr.bf16.gmra.mxu0 %v1352
        %v1388 = vpop.f32.mrf.mxu0
        %v1389 = vadd.f32 0.0, %v1388
        %v1390 = vpop.f32.mrf.mxu0
        %v1391 = vpop.f32.mrf.mxu0
        %v1392 = vpop.f32.mrf.mxu0
        %1393 = vdwg.mxu0
        %v1394 = vadd.f32 %v1227, %v1389
        %1395 = vrot.lane.b32.xlu0 %v899, 80
        %v1396 = vpop.permute.xlu0 %1395
        %1397 = vrot.lane.b32.xlu0 %v900, 16
        %v1398 = vpop.permute.xlu0 %1397
        %v1400 = vsel %vm904, %v1396, 0
        %v1403 = vsel %vm904, %v1398, 0
        %1405 = vmatprep.subr.bf16.mxu0 0
        %1406 = vmatpush1.bf16.xpose.msra.mxu0 0
        %1407 = vmatprep.subr.bf16.mxu0 0
        %1408 = vmatpush1.bf16.xpose.msra.mxu0 0
        %1409 = vmatprep.subr.bf16.mxu0 0
        %1410 = vmatpush1.bf16.xpose.msra.mxu0 0
        %1411 = vmatprep.subr.bf16.mxu0 0
        %1412 = vmatpush1.bf16.xpose.msra.mxu0 0
        %1413 = vmatprep.subr.bf16.mxu0 0
        %1414 = vmatpush1.bf16.xpose.msra.mxu0 0
        %1415 = vmatprep.subr.bf16.mxu0 0
        %1416 = vmatpush1.bf16.xpose.msra.mxu0 0
        %1417 = vmatprep.subr.bf16.mxu0 0
        %1418 = vmatpush1.bf16.xpose.msra.mxu0 0
        %1419 = vmatprep.subr.bf16.mxu0 0
        %1420 = vmatpush1.bf16.xpose.msra.mxu0 %v1403
        %1421 = vmatprep.subr.bf16.mxu0 0
        %1422 = vmatpush2.bf16.xpose.msra.mxu0 0
        %1423 = vmatprep.subr.bf16.mxu0 0
        %1424 = vmatpush2.bf16.xpose.msra.mxu0 0
        %1425 = vmatprep.subr.bf16.mxu0 0
        %1426 = vmatpush2.bf16.xpose.msra.mxu0 0
        %1427 = vmatprep.subr.bf16.mxu0 0
        %1428 = vmatpush2.bf16.xpose.msra.mxu0 0
        %1429 = vmatprep.subr.bf16.mxu0 0
        %1430 = vmatpush2.bf16.xpose.msra.mxu0 0
        %1431 = vmatprep.subr.bf16.mxu0 0
        %1432 = vmatpush2.bf16.xpose.msra.mxu0 0
        %1433 = vmatprep.subr.bf16.mxu0 0
        %1434 = vmatpush2.bf16.xpose.msra.mxu0 0
        %1435 = vmatprep.subr.bf16.mxu0 0
        %1436 = vmatpush2.bf16.xpose.msra.mxu0 0
        %1437 = vmatprep.mubr.bf16.mxu0 0
        %1438 = vmatmul.mubr.bf16.gmra.mxu0 %v1400
        %v1439 = vpop.f32.mrf.mxu0
        %v1440 = vadd.f32 0.0, %v1439
        %v1441 = vpop.f32.mrf.mxu0
        %v1442 = vpop.f32.mrf.mxu0
        %v1443 = vpop.f32.mrf.mxu0
        %1444 = vdwg.mxu0
        %v1445 = vsel %vm951, %v1440, -inf
        %1446 = vmax.xlane.f32.xlu0 %v1445
        %v1447 = vpop.xlane.xlu0 %1446
        %v1448 = vsub.f32 %v1440, %v1447
        %v1449 = vmul.f32 %v1448, 1.442695
        %v1450 = vpow.pop %v1449
        %v1451 = vsel %vm951, %v1450, 0.0
        %1452 = vadd.xlane.f32.xlu0 %v1451
        %v1453 = vpop.xlane.xlu0 %1452
        %v1454 = vrcp.pop %v1453
        %v1455 = vmul.f32 %v1450, %v1454
        %v1456 = vpack.c.bf16 %v1455, %v1455
        %1457 = vrot.lane.b32.xlu0 %v964, 80
        %v1458 = vpop.permute.xlu0 %1457
        %v1460 = vsel %vm965, %v1456, 0
        %v1463 = vand.u32 %v1458, %v972
        %1465 = vmatprep.subr.bf16.mxu0 0
        %1466 = vmatpush1.bf16.msra.mxu0 0
        %1467 = vmatprep.subr.bf16.mxu0 0
        %1468 = vmatpush1.bf16.msra.mxu0 0
        %1469 = vmatprep.subr.bf16.mxu0 0
        %1470 = vmatpush1.bf16.msra.mxu0 0
        %1471 = vmatprep.subr.bf16.mxu0 0
        %1472 = vmatpush1.bf16.msra.mxu0 0
        %1473 = vmatprep.subr.bf16.mxu0 0
        %1474 = vmatpush1.bf16.msra.mxu0 0
        %1475 = vmatprep.subr.bf16.mxu0 0
        %1476 = vmatpush1.bf16.msra.mxu0 0
        %1477 = vmatprep.subr.bf16.mxu0 0
        %1478 = vmatpush1.bf16.msra.mxu0 0
        %1479 = vmatprep.subr.bf16.mxu0 0
        %1480 = vmatpush1.bf16.msra.mxu0 %v1463
        %1481 = vmatprep.subr.bf16.mxu0 0
        %1482 = vmatpush2.bf16.msra.mxu0 0
        %1483 = vmatprep.subr.bf16.mxu0 0
        %1484 = vmatpush2.bf16.msra.mxu0 0
        %1485 = vmatprep.subr.bf16.mxu0 0
        %1486 = vmatpush2.bf16.msra.mxu0 0
        %1487 = vmatprep.subr.bf16.mxu0 0
        %1488 = vmatpush2.bf16.msra.mxu0 0
        %1489 = vmatprep.subr.bf16.mxu0 0
        %1490 = vmatpush2.bf16.msra.mxu0 0
        %1491 = vmatprep.subr.bf16.mxu0 0
        %1492 = vmatpush2.bf16.msra.mxu0 0
        %1493 = vmatprep.subr.bf16.mxu0 0
        %1494 = vmatpush2.bf16.msra.mxu0 0
        %1495 = vmatprep.subr.bf16.mxu0 0
        %1496 = vmatpush2.bf16.msra.mxu0 0
        %1497 = vmatprep.mubr.bf16.mxu0 0
        %1498 = vmatmul.mubr.bf16.gmra.mxu0 %v1460
        %v1499 = vpop.f32.mrf.mxu0
        %v1500 = vadd.f32 0.0, %v1499
        %v1501 = vpop.f32.mrf.mxu0
        %v1502 = vpop.f32.mrf.mxu0
        %v1503 = vpop.f32.mrf.mxu0
        %1504 = vdwg.mxu0
        %v1505 = vld [vmem:[%s9 + $0x18] sm:$0xf]
        %v1506 = vld [vmem:[%s9 + $0x1c] sm:$0xf]
        %v1507 = vpack.c.bf16 %v1500, %v1500
        %v1510 = vunpack.c.l.b16 %v1505
        %v1511 = vunpack.c.l.b16 %v1506
        %v1512 = vpack.c.b16 %v1511, %v1510
        %v1515 = vsel %vm904, %v1507, 0
        %1517 = vmatprep.subr.bf16.mxu0 0
        %1518 = vmatpush1.bf16.msra.mxu0 0
        %1519 = vmatprep.subr.bf16.mxu0 0
        %1520 = vmatpush1.bf16.msra.mxu0 0
        %1521 = vmatprep.subr.bf16.mxu0 0
        %1522 = vmatpush1.bf16.msra.mxu0 0
        %1523 = vmatprep.subr.bf16.mxu0 0
        %1524 = vmatpush1.bf16.msra.mxu0 0
        %1525 = vmatprep.subr.bf16.mxu0 0
        %1526 = vmatpush1.bf16.msra.mxu0 0
        %1527 = vmatprep.subr.bf16.mxu0 0
        %1528 = vmatpush1.bf16.msra.mxu0 0
        %1529 = vmatprep.subr.bf16.mxu0 0
        %1530 = vmatpush1.bf16.msra.mxu0 0
        %1531 = vmatprep.subr.bf16.mxu0 0
        %1532 = vmatpush1.bf16.msra.mxu0 %v1512
        %1533 = vmatprep.subr.bf16.mxu0 0
        %1534 = vmatpush2.bf16.msra.mxu0 0
        %1535 = vmatprep.subr.bf16.mxu0 0
        %1536 = vmatpush2.bf16.msra.mxu0 0
        %1537 = vmatprep.subr.bf16.mxu0 0
        %1538 = vmatpush2.bf16.msra.mxu0 0
        %1539 = vmatprep.subr.bf16.mxu0 0
        %1540 = vmatpush2.bf16.msra.mxu0 0
        %1541 = vmatprep.subr.bf16.mxu0 0
        %1542 = vmatpush2.bf16.msra.mxu0 0
        %1543 = vmatprep.subr.bf16.mxu0 0
        %1544 = vmatpush2.bf16.msra.mxu0 0
        %1545 = vmatprep.subr.bf16.mxu0 0
        %1546 = vmatpush2.bf16.msra.mxu0 0
        %1547 = vmatprep.subr.bf16.mxu0 0
        %1548 = vmatpush2.bf16.msra.mxu0 0
        %1549 = vmatprep.mubr.bf16.mxu0 0
        %1550 = vmatmul.mubr.bf16.gmra.mxu0 %v1515
        %v1551 = vpop.f32.mrf.mxu0
        %v1552 = vadd.f32 0.0, %v1551
        %v1553 = vpop.f32.mrf.mxu0
        %v1554 = vpop.f32.mrf.mxu0
        %v1555 = vpop.f32.mrf.mxu0
        %1556 = vdwg.mxu0
        %v1557 = vadd.f32 %v1394, %v1552
        %v1558 = vadd.f32 %v761, %v1557
        %v1559 = vld [vmem:[%s10] sm:$0x1]
        %v1561 = vlaneseq
        %v1562 = vshrl.u32 %v1561, 7
        %v1563 = vsub.s32 0, %v1562
        %v1564 = vrot.slane %v1559, %v1563
        %v1566 = vadd.f32 %v1558, %v1564
        %v1567 = vld [vmem:[%s11] sm:$0x1]
        %v1568 = vld [vmem:[%s12] sm:$0x1]
        %v1569 = vsel %vm764, %v1566, 0.0
        %1570 = vadd.xlane.f32.xlu0 %v1569
        %v1571 = vpop.xlane.xlu0 %1570
        %v1572 = vmul.f32 %v1571, %v768
        %v1573 = vsub.f32 %v1566, %v1572
        %v1574 = vmul.f32 %v1573, %v1573
        %v1575 = vsel %vm764, %v1574, 0.0
        %1576 = vadd.xlane.f32.xlu0 %v1575
        %v1577 = vpop.xlane.xlu0 %1576
        %v1578 = vmul.f32 %v1577, %v768
        %v1579 = vadd.f32 %v1578, 1e-06
        %v1580 = vrsqrt.pop %v1579
        %v1581 = vmul.f32 %v1573, %v1580
        %v1583 = vlaneseq
        %v1584 = vshrl.u32 %v1583, 7
        %v1585 = vsub.s32 0, %v1584
        %v1586 = vrot.slane %v1567, %v1585
        %v1588 = vmul.f32 %v1581, %v1586
        %v1590 = vlaneseq
        %v1591 = vshrl.u32 %v1590, 7
        %v1592 = vsub.s32 0, %v1591
        %v1593 = vrot.slane %v1568, %v1592
        %v1595 = vadd.f32 %v1588, %v1593
        %v1596 = vld [vmem:[%s13] sm:$0xff]
        %v1597 = vld [vmem:[%s13 + $0x8] sm:$0xff]
        %v1598 = vld [vmem:[%s13 + $0x10] sm:$0xff]
        %v1599 = vld [vmem:[%s13 + $0x18] sm:$0xff]
        %v1600 = vld [vmem:[%s13 + $0x20] sm:$0xff]
        %v1601 = vld [vmem:[%s13 + $0x28] sm:$0xff]
        %v1602 = vld [vmem:[%s13 + $0x30] sm:$0xff]
        %v1603 = vld [vmem:[%s13 + $0x38] sm:$0xff]
        %v1604 = vpack.c.bf16 %v1595, %v1595
        %v1605 = vld [vmem:[%s14] sm:$0x3]
        %v1607 = vlaneseq
        %v1608 = vshrl.u32 %v1607, 7
        %v1609 = vsub.s32 0, %v1608
        %v1610 = vrot.slane %v1605, %v1609
        %v1611 = vlaneseq
        %v1612 = vshrl.u32 %v1611, 7
        %v1613 = vsub.s32 1, %v1612
        %v1614 = vrot.slane %v1605, %v1613
        %v1625 = vunpack.c.l.b16 %v1596
        %v1626 = vunpack.c.h.b16 %v1596
        %v1627 = vunpack.c.l.b16 %v1597
        %v1628 = vunpack.c.h.b16 %v1597
        %v1629 = vunpack.c.l.b16 %v1598
        %v1630 = vunpack.c.h.b16 %v1598
        %v1631 = vunpack.c.l.b16 %v1599
        %v1632 = vunpack.c.h.b16 %v1599
        %v1633 = vunpack.c.l.b16 %v1600
        %v1634 = vunpack.c.h.b16 %v1600
        %v1635 = vunpack.c.l.b16 %v1601
        %v1636 = vunpack.c.h.b16 %v1601
        %v1637 = vunpack.c.l.b16 %v1602
        %v1638 = vunpack.c.h.b16 %v1602
        %v1639 = vunpack.c.l.b16 %v1603
        %v1640 = vunpack.c.h.b16 %v1603
        %v1641 = vpack.c.b16 %v1627, %v1625
        %v1642 = vpack.c.b16 %v1628, %v1626
        %v1643 = vpack.c.b16 %v1631, %v1629
        %v1644 = vpack.c.b16 %v1632, %v1630
        %v1645 = vpack.c.b16 %v1635, %v1633
        %v1646 = vpack.c.b16 %v1636, %v1634
        %v1647 = vpack.c.b16 %v1639, %v1637
        %v1648 = vpack.c.b16 %v1640, %v1638
        %v1658 = vsel %vm710, %v1604, 0
        %1660 = vmatprep.subr.bf16.mxu0 0
        %1661 = vmatpush1.bf16.msra.mxu0 0
        %1662 = vmatprep.subr.bf16.mxu0 0
        %1663 = vmatpush1.bf16.msra.mxu0 0
        %1664 = vmatprep.subr.bf16.mxu0 0
        %1665 = vmatpush1.bf16.msra.mxu0 0
        %1666 = vmatprep.subr.bf16.mxu0 0
        %1667 = vmatpush1.bf16.msra.mxu0 0
        %1668 = vmatprep.subr.bf16.mxu0 %v1648
        %1669 = vmatpush1.bf16.msra.mxu0 %v1647
        %1670 = vmatprep.subr.bf16.mxu0 %v1646
        %1671 = vmatpush1.bf16.msra.mxu0 %v1645
        %1672 = vmatprep.subr.bf16.mxu0 %v1644
        %1673 = vmatpush1.bf16.msra.mxu0 %v1643
        %1674 = vmatprep.subr.bf16.mxu0 %v1642
        %1675 = vmatpush1.bf16.msra.mxu0 %v1641
        %1676 = vmatprep.subr.bf16.mxu0 0
        %1677 = vmatpush2.bf16.msra.mxu0 0
        %1678 = vmatprep.subr.bf16.mxu0 0
        %1679 = vmatpush2.bf16.msra.mxu0 0
        %1680 = vmatprep.subr.bf16.mxu0 0
        %1681 = vmatpush2.bf16.msra.mxu0 0
        %1682 = vmatprep.subr.bf16.mxu0 0
        %1683 = vmatpush2.bf16.msra.mxu0 0
        %1684 = vmatprep.subr.bf16.mxu0 0
        %1685 = vmatpush2.bf16.msra.mxu0 0
        %1686 = vmatprep.subr.bf16.mxu0 0
        %1687 = vmatpush2.bf16.msra.mxu0 0
        %1688 = vmatprep.subr.bf16.mxu0 0
        %1689 = vmatpush2.bf16.msra.mxu0 0
        %1690 = vmatprep.subr.bf16.mxu0 0
        %1691 = vmatpush2.bf16.msra.mxu0 0
        %1692 = vmatprep.mubr.bf16.mxu0 0
        %1693 = vmatmul.mubr.bf16.gmra.mxu0 %v1658
        %v1694 = vpop.f32.mrf.mxu0
        %v1695 = vadd.f32 %v1610, %v1694
        %v1696 = vpop.f32.mrf.mxu0
        %v1697 = vadd.f32 %v1614, %v1696
        %v1698 = vpop.f32.mrf.mxu0
        %v1699 = vpop.f32.mrf.mxu0
        %1700 = vdwg.mxu0
        %v1701 = vmul.f32 %v1695, %v1695
        %v1702 = vmul.f32 %v1697, %v1697
        %v1703 = vmul.f32 %v1695, %v1701
        %v1704 = vmul.f32 %v1697, %v1702
        %v1705 = vmul.f32 %v1703, 0.044715
        %v1706 = vmul.f32 %v1704, 0.044715
        %v1707 = vadd.f32 %v1695, %v1705
        %v1708 = vadd.f32 %v1697, %v1706
        %v1709 = vmul.f32 %v1707, 0.7978846
        %v1710 = vmul.f32 %v1708, 0.7978846
        %v1711 = vtanh.pop %v1709
        %v1712 = vtanh.pop %v1710
        %v1713 = vadd.f32 %v1711, 1.0
        %v1714 = vadd.f32 %v1712, 1.0
        %v1715 = vmul.f32 %v1713, 0.5
        %v1716 = vmul.f32 %v1714, 0.5
        %v1717 = vmul.f32 %v1695, %v1715
        %v1718 = vmul.f32 %v1697, %v1716
        %v1719 = vld [vmem:[%s15] sm:$0xf]
        %v1720 = vld [vmem:[%s15 + $0x4] sm:$0xf]
        %v1721 = vld [vmem:[%s15 + $0x8] sm:$0xf]
        %v1722 = vld [vmem:[%s15 + $0xc] sm:$0xf]
        %v1723 = vld [vmem:[%s15 + $0x10] sm:$0xf]
        %v1724 = vld [vmem:[%s15 + $0x14] sm:$0xf]
        %v1725 = vld [vmem:[%s15 + $0x18] sm:$0xf]
        %v1726 = vld [vmem:[%s15 + $0x1c] sm:$0xf]
        %v1727 = vld [vmem:[%s15 + $0x20] sm:$0xf]
        %v1728 = vld [vmem:[%s15 + $0x24] sm:$0xf]
        %v1729 = vld [vmem:[%s15 + $0x28] sm:$0xf]
        %v1730 = vld [vmem:[%s15 + $0x2c] sm:$0xf]
        %v1731 = vld [vmem:[%s15 + $0x30] sm:$0xf]
        %v1732 = vld [vmem:[%s15 + $0x34] sm:$0xf]
        %v1733 = vld [vmem:[%s15 + $0x38] sm:$0xf]
        %v1734 = vld [vmem:[%s15 + $0x3c] sm:$0xf]
        %v1735 = vld [vmem:[%s15 + $0x40] sm:$0xf]
        %v1736 = vld [vmem:[%s15 + $0x44] sm:$0xf]
        %v1737 = vld [vmem:[%s15 + $0x48] sm:$0xf]
        %v1738 = vld [vmem:[%s15 + $0x4c] sm:$0xf]
        %v1739 = vld [vmem:[%s15 + $0x50] sm:$0xf]
        %v1740 = vld [vmem:[%s15 + $0x54] sm:$0xf]
        %v1741 = vld [vmem:[%s15 + $0x58] sm:$0xf]
        %v1742 = vld [vmem:[%s15 + $0x5c] sm:$0xf]
        %v1743 = vld [vmem:[%s15 + $0x60] sm:$0xf]
        %v1744 = vld [vmem:[%s15 + $0x64] sm:$0xf]
        %v1745 = vld [vmem:[%s15 + $0x68] sm:$0xf]
        %v1746 = vld [vmem:[%s15 + $0x6c] sm:$0xf]
        %v1747 = vld [vmem:[%s15 + $0x70] sm:$0xf]
        %v1748 = vld [vmem:[%s15 + $0x74] sm:$0xf]
        %v1749 = vld [vmem:[%s15 + $0x78] sm:$0xf]
        %v1750 = vld [vmem:[%s15 + $0x7c] sm:$0xf]
        %v1751 = vpack.c.bf16 %v1717, %v1717
        %v1752 = vpack.c.bf16 %v1718, %v1718
        %v1785 = vunpack.c.l.b16 %v1719
        %v1786 = vunpack.c.l.b16 %v1720
        %v1787 = vunpack.c.l.b16 %v1721
        %v1788 = vunpack.c.l.b16 %v1722
        %v1789 = vunpack.c.l.b16 %v1723
        %v1790 = vunpack.c.l.b16 %v1724
        %v1791 = vunpack.c.l.b16 %v1725
        %v1792 = vunpack.c.l.b16 %v1726
        %v1793 = vunpack.c.l.b16 %v1727
        %v1794 = vunpack.c.l.b16 %v1728
        %v1795 = vunpack.c.l.b16 %v1729
        %v1796 = vunpack.c.l.b16 %v1730
        %v1797 = vunpack.c.l.b16 %v1731
        %v1798 = vunpack.c.l.b16 %v1732
        %v1799 = vunpack.c.l.b16 %v1733
        %v1800 = vunpack.c.l.b16 %v1734
        %v1801 = vunpack.c.l.b16 %v1735
        %v1802 = vunpack.c.l.b16 %v1736
        %v1803 = vunpack.c.l.b16 %v1737
        %v1804 = vunpack.c.l.b16 %v1738
        %v1805 = vunpack.c.l.b16 %v1739
        %v1806 = vunpack.c.l.b16 %v1740
        %v1807 = vunpack.c.l.b16 %v1741
        %v1808 = vunpack.c.l.b16 %v1742
        %v1809 = vunpack.c.l.b16 %v1743
        %v1810 = vunpack.c.l.b16 %v1744
        %v1811 = vunpack.c.l.b16 %v1745
        %v1812 = vunpack.c.l.b16 %v1746
        %v1813 = vunpack.c.l.b16 %v1747
        %v1814 = vunpack.c.l.b16 %v1748
        %v1815 = vunpack.c.l.b16 %v1749
        %v1816 = vunpack.c.l.b16 %v1750
        %v1817 = vpack.c.b16 %v1786, %v1785
        %v1818 = vpack.c.b16 %v1788, %v1787
        %v1819 = vpack.c.b16 %v1790, %v1789
        %v1820 = vpack.c.b16 %v1792, %v1791
        %v1821 = vpack.c.b16 %v1794, %v1793
        %v1822 = vpack.c.b16 %v1796, %v1795
        %v1823 = vpack.c.b16 %v1798, %v1797
        %v1824 = vpack.c.b16 %v1800, %v1799
        %v1825 = vpack.c.b16 %v1802, %v1801
        %v1826 = vpack.c.b16 %v1804, %v1803
        %v1827 = vpack.c.b16 %v1806, %v1805
        %v1828 = vpack.c.b16 %v1808, %v1807
        %v1829 = vpack.c.b16 %v1810, %v1809
        %v1830 = vpack.c.b16 %v1812, %v1811
        %v1831 = vpack.c.b16 %v1814, %v1813
        %v1832 = vpack.c.b16 %v1816, %v1815
        %1849 = vmatprep.subr.bf16.mxu0 0
        %1850 = vmatpush1.bf16.msra.mxu0 %v1824
        %1851 = vmatprep.subr.bf16.mxu0 0
        %1852 = vmatpush1.bf16.msra.mxu0 %v1823
        %1853 = vmatprep.subr.bf16.mxu0 0
        %1854 = vmatpush1.bf16.msra.mxu0 %v1822
        %1855 = vmatprep.subr.bf16.mxu0 0
        %1856 = vmatpush1.bf16.msra.mxu0 %v1821
        %1857 = vmatprep.subr.bf16.mxu0 0
        %1858 = vmatpush1.bf16.msra.mxu0 %v1820
        %1859 = vmatprep.subr.bf16.mxu0 0
        %1860 = vmatpush1.bf16.msra.mxu0 %v1819
        %1861 = vmatprep.subr.bf16.mxu0 0
        %1862 = vmatpush1.bf16.msra.mxu0 %v1818
        %1863 = vmatprep.subr.bf16.mxu0 0
        %1864 = vmatpush1.bf16.msra.mxu0 %v1817
        %1865 = vmatprep.subr.bf16.mxu0 0
        %1866 = vmatpush2.bf16.msra.mxu0 %v1832
        %1867 = vmatprep.subr.bf16.mxu0 0
        %1868 = vmatpush2.bf16.msra.mxu0 %v1831
        %1869 = vmatprep.subr.bf16.mxu0 0
        %1870 = vmatpush2.bf16.msra.mxu0 %v1830
        %1871 = vmatprep.subr.bf16.mxu0 0
        %1872 = vmatpush2.bf16.msra.mxu0 %v1829
        %1873 = vmatprep.subr.bf16.mxu0 0
        %1874 = vmatpush2.bf16.msra.mxu0 %v1828
        %1875 = vmatprep.subr.bf16.mxu0 0
        %1876 = vmatpush2.bf16.msra.mxu0 %v1827
        %1877 = vmatprep.subr.bf16.mxu0 0
        %1878 = vmatpush2.bf16.msra.mxu0 %v1826
        %1879 = vmatprep.subr.bf16.mxu0 0
        %1880 = vmatpush2.bf16.msra.mxu0 %v1825
        %1881 = vmatprep.mubr.bf16.mxu0 %v1752
        %1882 = vmatmul.mubr.bf16.gmra.mxu0 %v1751
        %v1883 = vpop.f32.mrf.mxu0
        %v1884 = vadd.f32 0.0, %v1883
        %v1885 = vpop.f32.mrf.mxu0
        %v1886 = vpop.f32.mrf.mxu0
        %v1887 = vpop.f32.mrf.mxu0
        %1888 = vdwg.mxu0
        %v1889 = vadd.f32 %v1566, %v1884
        %v1890 = vld [vmem:[%s16] sm:$0x1]
        %v1892 = vlaneseq
        %v1893 = vshrl.u32 %v1892, 7
        %v1894 = vsub.s32 0, %v1893
        %v1895 = vrot.slane %v1890, %v1894
        %v1897 = vadd.f32 %v1889, %v1895
        %s1898 = scalar_lea.vmem %s5, 1
        %v1899 = vld [vmem:[%s1898] sm:$0x1]
        %s1900 = scalar_lea.vmem %s6, 1
        %v1901 = vld [vmem:[%s1900] sm:$0x1]
        %v1902 = vsel %vm764, %v1897, 0.0
        %1903 = vadd.xlane.f32.xlu0 %v1902
        %v1904 = vpop.xlane.xlu0 %1903
        %v1905 = vmul.f32 %v1904, %v768
        %v1906 = vsub.f32 %v1897, %v1905
        %v1907 = vmul.f32 %v1906, %v1906
        %v1908 = vsel %vm764, %v1907, 0.0
        %1909 = vadd.xlane.f32.xlu0 %v1908
        %v1910 = vpop.xlane.xlu0 %1909
        %v1911 = vmul.f32 %v1910, %v768
        %v1912 = vadd.f32 %v1911, 1e-06
        %v1913 = vrsqrt.pop %v1912
        %v1914 = vmul.f32 %v1906, %v1913
        %v1916 = vlaneseq
        %v1917 = vshrl.u32 %v1916, 7
        %v1918 = vsub.s32 0, %v1917
        %v1919 = vrot.slane %v1899, %v1918
        %v1921 = vmul.f32 %v1914, %v1919
        %v1923 = vlaneseq
        %v1924 = vshrl.u32 %v1923, 7
        %v1925 = vsub.s32 0, %v1924
        %v1926 = vrot.slane %v1901, %v1925
        %v1928 = vadd.f32 %v1921, %v1926
        %s1929 = scalar_lea.vmem %s7, 64
        %v1930 = vld [vmem:[%s1929] sm:$0xff]
        %v1931 = vld [vmem:[%s1929 + $0x8] sm:$0xff]
        %v1932 = vld [vmem:[%s1929 + $0x10] sm:$0xff]
        %v1933 = vld [vmem:[%s1929 + $0x18] sm:$0xff]
        %v1934 = vld [vmem:[%s1929 + $0x20] sm:$0xff]
        %v1935 = vld [vmem:[%s1929 + $0x28] sm:$0xff]
        %v1936 = vld [vmem:[%s1929 + $0x30] sm:$0xff]
        %v1937 = vld [vmem:[%s1929 + $0x38] sm:$0xff]
        %v1938 = vpack.c.bf16 %v1928, %v1928
        %s1939 = scalar_lea.vmem %s8, 2
        %v1940 = vld [vmem:[%s1939] sm:$0x3]
        %v1942 = vlaneseq
        %v1943 = vshrl.u32 %v1942, 7
        %v1944 = vsub.s32 0, %v1943
        %v1945 = vrot.slane %v1940, %v1944
        %v1946 = vlaneseq
        %v1947 = vshrl.u32 %v1946, 7
        %v1948 = vsub.s32 1, %v1947
        %v1949 = vrot.slane %v1940, %v1948
        %v1960 = vunpack.c.l.b16 %v1930
        %v1961 = vunpack.c.h.b16 %v1930
        %v1962 = vunpack.c.l.b16 %v1931
        %v1963 = vunpack.c.h.b16 %v1931
        %v1964 = vunpack.c.l.b16 %v1932
        %v1965 = vunpack.c.h.b16 %v1932
        %v1966 = vunpack.c.l.b16 %v1933
        %v1967 = vunpack.c.h.b16 %v1933
        %v1968 = vunpack.c.l.b16 %v1934
        %v1969 = vunpack.c.h.b16 %v1934
        %v1970 = vunpack.c.l.b16 %v1935
        %v1971 = vunpack.c.h.b16 %v1935
        %v1972 = vunpack.c.l.b16 %v1936
        %v1973 = vunpack.c.h.b16 %v1936
        %v1974 = vunpack.c.l.b16 %v1937
        %v1975 = vunpack.c.h.b16 %v1937
        %v1976 = vpack.c.b16 %v1962, %v1960
        %v1977 = vpack.c.b16 %v1963, %v1961
        %v1978 = vpack.c.b16 %v1966, %v1964
        %v1979 = vpack.c.b16 %v1967, %v1965
        %v1980 = vpack.c.b16 %v1970, %v1968
        %v1981 = vpack.c.b16 %v1971, %v1969
        %v1982 = vpack.c.b16 %v1974, %v1972
        %v1983 = vpack.c.b16 %v1975, %v1973
        %v1993 = vsel %vm710, %v1938, 0
        %1995 = vmatprep.subr.bf16.mxu0 0
        %1996 = vmatpush1.bf16.msra.mxu0 0
        %1997 = vmatprep.subr.bf16.mxu0 0
        %1998 = vmatpush1.bf16.msra.mxu0 0
        %1999 = vmatprep.subr.bf16.mxu0 0
        %2000 = vmatpush1.bf16.msra.mxu0 0
        %2001 = vmatprep.subr.bf16.mxu0 0
        %2002 = vmatpush1.bf16.msra.mxu0 0
        %2003 = vmatprep.subr.bf16.mxu0 %v1983
        %2004 = vmatpush1.bf16.msra.mxu0 %v1982
        %2005 = vmatprep.subr.bf16.mxu0 %v1981
        %2006 = vmatpush1.bf16.msra.mxu0 %v1980
        %2007 = vmatprep.subr.bf16.mxu0 %v1979
        %2008 = vmatpush1.bf16.msra.mxu0 %v1978
        %2009 = vmatprep.subr.bf16.mxu0 %v1977
        %2010 = vmatpush1.bf16.msra.mxu0 %v1976
        %2011 = vmatprep.subr.bf16.mxu0 0
        %2012 = vmatpush2.bf16.msra.mxu0 0
        %2013 = vmatprep.subr.bf16.mxu0 0
        %2014 = vmatpush2.bf16.msra.mxu0 0
        %2015 = vmatprep.subr.bf16.mxu0 0
        %2016 = vmatpush2.bf16.msra.mxu0 0
        %2017 = vmatprep.subr.bf16.mxu0 0
        %2018 = vmatpush2.bf16.msra.mxu0 0
        %2019 = vmatprep.subr.bf16.mxu0 0
        %2020 = vmatpush2.bf16.msra.mxu0 0
        %2021 = vmatprep.subr.bf16.mxu0 0
        %2022 = vmatpush2.bf16.msra.mxu0 0
        %2023 = vmatprep.subr.bf16.mxu0 0
        %2024 = vmatpush2.bf16.msra.mxu0 0
        %2025 = vmatprep.subr.bf16.mxu0 0
        %2026 = vmatpush2.bf16.msra.mxu0 0
        %2027 = vmatprep.mubr.bf16.mxu0 0
        %2028 = vmatmul.mubr.bf16.gmra.mxu0 %v1993
        %v2029 = vpop.f32.mrf.mxu0
        %v2030 = vadd.f32 %v1945, %v2029
        %v2031 = vpop.f32.mrf.mxu0
        %v2032 = vadd.f32 %v1949, %v2031
        %v2033 = vpop.f32.mrf.mxu0
        %v2034 = vpop.f32.mrf.mxu0
        %2035 = vdwg.mxu0
        %v2036 = vmul.f32 %v2030, 0.25
        %v2037 = vpack.c.bf16 %v2036, %v2036
        %v2038 = vpack.c.bf16 %v2030, %v2030
        %2040 = vrot.lane.b32.xlu0 %v2038, 64
        %v2041 = vpop.permute.xlu0 %2040
        %v2043 = vsel %vm904, %v2037, 0
        %v2046 = vsel %vm904, %v2041, 0
        %2048 = vmatprep.subr.bf16.mxu0 0
        %2049 = vmatpush1.bf16.xpose.msra.mxu0 0
        %2050 = vmatprep.subr.bf16.mxu0 0
        %2051 = vmatpush1.bf16.xpose.msra.mxu0 0
        %2052 = vmatprep.subr.bf16.mxu0 0
        %2053 = vmatpush1.bf16.xpose.msra.mxu0 0
        %2054 = vmatprep.subr.bf16.mxu0 0
        %2055 = vmatpush1.bf16.xpose.msra.mxu0 0
        %2056 = vmatprep.subr.bf16.mxu0 0
        %2057 = vmatpush1.bf16.xpose.msra.mxu0 0
        %2058 = vmatprep.subr.bf16.mxu0 0
        %2059 = vmatpush1.bf16.xpose.msra.mxu0 0
        %2060 = vmatprep.subr.bf16.mxu0 0
        %2061 = vmatpush1.bf16.xpose.msra.mxu0 0
        %2062 = vmatprep.subr.bf16.mxu0 0
        %2063 = vmatpush1.bf16.xpose.msra.mxu0 %v2046
        %2064 = vmatprep.subr.bf16.mxu0 0
        %2065 = vmatpush2.bf16.xpose.msra.mxu0 0
        %2066 = vmatprep.subr.bf16.mxu0 0
        %2067 = vmatpush2.bf16.xpose.msra.mxu0 0
        %2068 = vmatprep.subr.bf16.mxu0 0
        %2069 = vmatpush2.bf16.xpose.msra.mxu0 0
        %2070 = vmatprep.subr.bf16.mxu0 0
        %2071 = vmatpush2.bf16.xpose.msra.mxu0 0
        %2072 = vmatprep.subr.bf16.mxu0 0
        %2073 = vmatpush2.bf16.xpose.msra.mxu0 0
        %2074 = vmatprep.subr.bf16.mxu0 0
        %2075 = vmatpush2.bf16.xpose.msra.mxu0 0
        %2076 = vmatprep.subr.bf16.mxu0 0
        %2077 = vmatpush2.bf16.xpose.msra.mxu0 0
        %2078 = vmatprep.subr.bf16.mxu0 0
        %2079 = vmatpush2.bf16.xpose.msra.mxu0 0
        %2080 = vmatprep.mubr.bf16.mxu0 0
        %2081 = vmatmul.mubr.bf16.gmra.mxu0 %v2043
        %v2082 = vpop.f32.mrf.mxu0
        %v2083 = vadd.f32 0.0, %v2082
        %v2084 = vpop.f32.mrf.mxu0
        %v2085 = vpop.f32.mrf.mxu0
        %v2086 = vpop.f32.mrf.mxu0
        %2087 = vdwg.mxu0
        %v2088 = vsel %vm951, %v2083, -inf
        %2089 = vmax.xlane.f32.xlu0 %v2088
        %v2090 = vpop.xlane.xlu0 %2089
        %v2091 = vsub.f32 %v2083, %v2090
        %v2092 = vmul.f32 %v2091, 1.442695
        %v2093 = vpow.pop %v2092
        %v2094 = vsel %vm951, %v2093, 0.0
        %2095 = vadd.xlane.f32.xlu0 %v2094
        %v2096 = vpop.xlane.xlu0 %2095
        %v2097 = vrcp.pop %v2096
        %v2098 = vmul.f32 %v2093, %v2097
        %v2099 = vpack.c.bf16 %v2098, %v2098
        %v2100 = vpack.c.bf16 %v2032, %v2032
        %v2102 = vsel %vm965, %v2099, 0
        %v2105 = vand.u32 %v2100, %v972
        %2107 = vmatprep.subr.bf16.mxu0 0
        %2108 = vmatpush1.bf16.msra.mxu0 0
        %2109 = vmatprep.subr.bf16.mxu0 0
        %2110 = vmatpush1.bf16.msra.mxu0 0
        %2111 = vmatprep.subr.bf16.mxu0 0
        %2112 = vmatpush1.bf16.msra.mxu0 0
        %2113 = vmatprep.subr.bf16.mxu0 0
        %2114 = vmatpush1.bf16.msra.mxu0 0
        %2115 = vmatprep.subr.bf16.mxu0 0
        %2116 = vmatpush1.bf16.msra.mxu0 0
        %2117 = vmatprep.subr.bf16.mxu0 0
        %2118 = vmatpush1.bf16.msra.mxu0 0
        %2119 = vmatprep.subr.bf16.mxu0 0
        %2120 = vmatpush1.bf16.msra.mxu0 0
        %2121 = vmatprep.subr.bf16.mxu0 0
        %2122 = vmatpush1.bf16.msra.mxu0 %v2105
        %2123 = vmatprep.subr.bf16.mxu0 0
        %2124 = vmatpush2.bf16.msra.mxu0 0
        %2125 = vmatprep.subr.bf16.mxu0 0
        %2126 = vmatpush2.bf16.msra.mxu0 0
        %2127 = vmatprep.subr.bf16.mxu0 0
        %2128 = vmatpush2.bf16.msra.mxu0 0
        %2129 = vmatprep.subr.bf16.mxu0 0
        %2130 = vmatpush2.bf16.msra.mxu0 0
        %2131 = vmatprep.subr.bf16.mxu0 0
        %2132 = vmatpush2.bf16.msra.mxu0 0
        %2133 = vmatprep.subr.bf16.mxu0 0
        %2134 = vmatpush2.bf16.msra.mxu0 0
        %2135 = vmatprep.subr.bf16.mxu0 0
        %2136 = vmatpush2.bf16.msra.mxu0 0
        %2137 = vmatprep.subr.bf16.mxu0 0
        %2138 = vmatpush2.bf16.msra.mxu0 0
        %2139 = vmatprep.mubr.bf16.mxu0 0
        %2140 = vmatmul.mubr.bf16.gmra.mxu0 %v2102
        %v2141 = vpop.f32.mrf.mxu0
        %v2142 = vadd.f32 0.0, %v2141
        %v2143 = vpop.f32.mrf.mxu0
        %v2144 = vpop.f32.mrf.mxu0
        %v2145 = vpop.f32.mrf.mxu0
        %2146 = vdwg.mxu0
        %s2147 = scalar_lea.vmem %s9, 32
        %v2148 = vld [vmem:[%s2147] sm:$0xf]
        %v2149 = vld [vmem:[%s2147 + $0x4] sm:$0xf]
        %v2150 = vpack.c.bf16 %v2142, %v2142
        %2152 = vrot.lane.b32.xlu0 %v2037, 112
        %v2153 = vpop.permute.xlu0 %2152
        %2154 = vrot.lane.b32.xlu0 %v2038, 48
        %v2155 = vpop.permute.xlu0 %2154
        %v2157 = vsel %vm904, %v2153, 0
        %v2160 = vsel %vm904, %v2155, 0
        %2162 = vmatprep.subr.bf16.mxu0 0
        %2163 = vmatpush1.bf16.xpose.msra.mxu0 0
        %2164 = vmatprep.subr.bf16.mxu0 0
        %2165 = vmatpush1.bf16.xpose.msra.mxu0 0
        %2166 = vmatprep.subr.bf16.mxu0 0
        %2167 = vmatpush1.bf16.xpose.msra.mxu0 0
        %2168 = vmatprep.subr.bf16.mxu0 0
        %2169 = vmatpush1.bf16.xpose.msra.mxu0 0
        %2170 = vmatprep.subr.bf16.mxu0 0
        %2171 = vmatpush1.bf16.xpose.msra.mxu0 0
        %2172 = vmatprep.subr.bf16.mxu0 0
        %2173 = vmatpush1.bf16.xpose.msra.mxu0 0
        %2174 = vmatprep.subr.bf16.mxu0 0
        %2175 = vmatpush1.bf16.xpose.msra.mxu0 0
        %2176 = vmatprep.subr.bf16.mxu0 0
        %2177 = vmatpush1.bf16.xpose.msra.mxu0 %v2160
        %2178 = vmatprep.subr.bf16.mxu0 0
        %2179 = vmatpush2.bf16.xpose.msra.mxu0 0
        %2180 = vmatprep.subr.bf16.mxu0 0
        %2181 = vmatpush2.bf16.xpose.msra.mxu0 0
        %2182 = vmatprep.subr.bf16.mxu0 0
        %2183 = vmatpush2.bf16.xpose.msra.mxu0 0
        %2184 = vmatprep.subr.bf16.mxu0 0
        %2185 = vmatpush2.bf16.xpose.msra.mxu0 0
        %2186 = vmatprep.subr.bf16.mxu0 0
        %2187 = vmatpush2.bf16.xpose.msra.mxu0 0
        %2188 = vmatprep.subr.bf16.mxu0 0
        %2189 = vmatpush2.bf16.xpose.msra.mxu0 0
        %2190 = vmatprep.subr.bf16.mxu0 0
        %2191 = vmatpush2.bf16.xpose.msra.mxu0 0
        %2192 = vmatprep.subr.bf16.mxu0 0
        %2193 = vmatpush2.bf16.xpose.msra.mxu0 0
        %2194 = vmatprep.mubr.bf16.mxu0 0
        %2195 = vmatmul.mubr.bf16.gmra.mxu0 %v2157
        %v2196 = vpop.f32.mrf.mxu0
        %v2197 = vadd.f32 0.0, %v2196
        %v2198 = vpop.f32.mrf.mxu0
        %v2199 = vpop.f32.mrf.mxu0
        %v2200 = vpop.f32.mrf.mxu0
        %2201 = vdwg.mxu0
        %v2202 = vsel %vm951, %v2197, -inf
        %2203 = vmax.xlane.f32.xlu0 %v2202
        %v2204 = vpop.xlane.xlu0 %2203
        %v2205 = vsub.f32 %v2197, %v2204
        %v2206 = vmul.f32 %v2205, 1.442695
        %v2207 = vpow.pop %v2206
        %v2208 = vsel %vm951, %v2207, 0.0
        %2209 = vadd.xlane.f32.xlu0 %v2208
        %v2210 = vpop.xlane.xlu0 %2209
        %v2211 = vrcp.pop %v2210
        %v2212 = vmul.f32 %v2207, %v2211
        %v2213 = vpack.c.bf16 %v2212, %v2212
        %2215 = vrot.lane.b32.xlu0 %v2100, 112
        %v2216 = vpop.permute.xlu0 %2215
        %v2218 = vsel %vm965, %v2213, 0
        %v2221 = vand.u32 %v2216, %v972
        %2223 = vmatprep.subr.bf16.mxu0 0
        %2224 = vmatpush1.bf16.msra.mxu0 0
        %2225 = vmatprep.subr.bf16.mxu0 0
        %2226 = vmatpush1.bf16.msra.mxu0 0
        %2227 = vmatprep.subr.bf16.mxu0 0
        %2228 = vmatpush1.bf16.msra.mxu0 0
        %2229 = vmatprep.subr.bf16.mxu0 0
        %2230 = vmatpush1.bf16.msra.mxu0 0
        %2231 = vmatprep.subr.bf16.mxu0 0
        %2232 = vmatpush1.bf16.msra.mxu0 0
        %2233 = vmatprep.subr.bf16.mxu0 0
        %2234 = vmatpush1.bf16.msra.mxu0 0
        %2235 = vmatprep.subr.bf16.mxu0 0
        %2236 = vmatpush1.bf16.msra.mxu0 0
        %2237 = vmatprep.subr.bf16.mxu0 0
        %2238 = vmatpush1.bf16.msra.mxu0 %v2221
        %2239 = vmatprep.subr.bf16.mxu0 0
        %2240 = vmatpush2.bf16.msra.mxu0 0
        %2241 = vmatprep.subr.bf16.mxu0 0
        %2242 = vmatpush2.bf16.msra.mxu0 0
        %2243 = vmatprep.subr.bf16.mxu0 0
        %2244 = vmatpush2.bf16.msra.mxu0 0
        %2245 = vmatprep.subr.bf16.mxu0 0
        %2246 = vmatpush2.bf16.msra.mxu0 0
        %2247 = vmatprep.subr.bf16.mxu0 0
        %2248 = vmatpush2.bf16.msra.mxu0 0
        %2249 = vmatprep.subr.bf16.mxu0 0
        %2250 = vmatpush2.bf16.msra.mxu0 0
        %2251 = vmatprep.subr.bf16.mxu0 0
        %2252 = vmatpush2.bf16.msra.mxu0 0
        %2253 = vmatprep.subr.bf16.mxu0 0
        %2254 = vmatpush2.bf16.msra.mxu0 0
        %2255 = vmatprep.mubr.bf16.mxu0 0
        %2256 = vmatmul.mubr.bf16.gmra.mxu0 %v2218
        %v2257 = vpop.f32.mrf.mxu0
        %v2258 = vadd.f32 0.0, %v2257
        %v2259 = vpop.f32.mrf.mxu0
        %v2260 = vpop.f32.mrf.mxu0
        %v2261 = vpop.f32.mrf.mxu0
        %2262 = vdwg.mxu0
        %v2263 = vld [vmem:[%s2147 + $0x8] sm:$0xf]
        %v2264 = vld [vmem:[%s2147 + $0xc] sm:$0xf]
        %v2265 = vpack.c.bf16 %v2258, %v2258
        %v2268 = vunpack.c.l.b16 %v2263
        %v2269 = vunpack.c.l.b16 %v2264
        %v2270 = vpack.c.b16 %v2269, %v2268
        %v2273 = vsel %vm904, %v2265, 0
        %2275 = vmatprep.subr.bf16.mxu0 0
        %2276 = vmatpush1.bf16.msra.mxu0 0
        %2277 = vmatprep.subr.bf16.mxu0 0
        %2278 = vmatpush1.bf16.msra.mxu0 0
        %2279 = vmatprep.subr.bf16.mxu0 0
        %2280 = vmatpush1.bf16.msra.mxu0 0
        %2281 = vmatprep.subr.bf16.mxu0 0
        %2282 = vmatpush1.bf16.msra.mxu0 0
        %2283 = vmatprep.subr.bf16.mxu0 0
        %2284 = vmatpush1.bf16.msra.mxu0 0
        %2285 = vmatprep.subr.bf16.mxu0 0
        %2286 = vmatpush1.bf16.msra.mxu0 0
        %2287 = vmatprep.subr.bf16.mxu0 0
        %2288 = vmatpush1.bf16.msra.mxu0 0
        %2289 = vmatprep.subr.bf16.mxu0 0
        %2290 = vmatpush1.bf16.msra.mxu0 %v2270
        %2291 = vmatprep.subr.bf16.mxu0 0
        %2292 = vmatpush2.bf16.msra.mxu0 0
        %2293 = vmatprep.subr.bf16.mxu0 0
        %2294 = vmatpush2.bf16.msra.mxu0 0
        %2295 = vmatprep.subr.bf16.mxu0 0
        %2296 = vmatpush2.bf16.msra.mxu0 0
        %2297 = vmatprep.subr.bf16.mxu0 0
        %2298 = vmatpush2.bf16.msra.mxu0 0
        %2299 = vmatprep.subr.bf16.mxu0 0
        %2300 = vmatpush2.bf16.msra.mxu0 0
        %2301 = vmatprep.subr.bf16.mxu0 0
        %2302 = vmatpush2.bf16.msra.mxu0 0
        %2303 = vmatprep.subr.bf16.mxu0 0
        %2304 = vmatpush2.bf16.msra.mxu0 0
        %2305 = vmatprep.subr.bf16.mxu0 0
        %2306 = vmatpush2.bf16.msra.mxu0 0
        %2307 = vmatprep.mubr.bf16.mxu0 0
        %2308 = vmatmul.mubr.bf16.gmra.mxu0 %v2273
        %v2309 = vpop.f32.mrf.mxu0
        %v2310 = vadd.f32 0.0, %v2309
        %v2311 = vpop.f32.mrf.mxu0
        %v2312 = vpop.f32.mrf.mxu0
        %v2313 = vpop.f32.mrf.mxu0
        %2314 = vdwg.mxu0
        %v2317 = vunpack.c.l.b16 %v2148
        %v2318 = vunpack.c.l.b16 %v2149
        %v2319 = vpack.c.b16 %v2318, %v2317
        %v2322 = vsel %vm904, %v2150, 0
        %2324 = vmatprep.subr.bf16.mxu0 0
        %2325 = vmatpush1.bf16.msra.mxu0 0
        %2326 = vmatprep.subr.bf16.mxu0 0
        %2327 = vmatpush1.bf16.msra.mxu0 0
        %2328 = vmatprep.subr.bf16.mxu0 0
        %2329 = vmatpush1.bf16.msra.mxu0 0
        %2330 = vmatprep.subr.bf16.mxu0 0
        %2331 = vmatpush1.bf16.msra.mxu0 0
        %2332 = vmatprep.subr.bf16.mxu0 0
        %2333 = vmatpush1.bf16.msra.mxu0 0
        %2334 = vmatprep.subr.bf16.mxu0 0
        %2335 = vmatpush1.bf16.msra.mxu0 0
        %2336 = vmatprep.subr.bf16.mxu0 0
        %2337 = vmatpush1.bf16.msra.mxu0 0
        %2338 = vmatprep.subr.bf16.mxu0 0
        %2339 = vmatpush1.bf16.msra.mxu0 %v2319
        %2340 = vmatprep.subr.bf16.mxu0 0
        %2341 = vmatpush2.bf16.msra.mxu0 0
        %2342 = vmatprep.subr.bf16.mxu0 0
        %2343 = vmatpush2.bf16.msra.mxu0 0
        %2344 = vmatprep.subr.bf16.mxu0 0
        %2345 = vmatpush2.bf16.msra.mxu0 0
        %2346 = vmatprep.subr.bf16.mxu0 0
        %2347 = vmatpush2.bf16.msra.mxu0 0
        %2348 = vmatprep.subr.bf16.mxu0 0
        %2349 = vmatpush2.bf16.msra.mxu0 0
        %2350 = vmatprep.subr.bf16.mxu0 0
        %2351 = vmatpush2.bf16.msra.mxu0 0
        %2352 = vmatprep.subr.bf16.mxu0 0
        %2353 = vmatpush2.bf16.msra.mxu0 0
        %2354 = vmatprep.subr.bf16.mxu0 0
        %2355 = vmatpush2.bf16.msra.mxu0 0
        %2356 = vmatprep.mubr.bf16.mxu0 0
        %2357 = vmatmul.mubr.bf16.gmra.mxu0 %v2322
        %v2358 = vpop.f32.mrf.mxu0
        %v2359 = vadd.f32 %v2310, %v2358
        %v2360 = vpop.f32.mrf.mxu0
        %v2361 = vpop.f32.mrf.mxu0
        %v2362 = vpop.f32.mrf.mxu0
        %2363 = vdwg.mxu0
        %2364 = vrot.lane.b32.xlu0 %v2037, 96
        %v2365 = vpop.permute.xlu0 %2364
        %2366 = vrot.lane.b32.xlu0 %v2038, 32
        %v2367 = vpop.permute.xlu0 %2366
        %v2369 = vsel %vm904, %v2365, 0
        %v2372 = vsel %vm904, %v2367, 0
        %2374 = vmatprep.subr.bf16.mxu0 0
        %2375 = vmatpush1.bf16.xpose.msra.mxu0 0
        %2376 = vmatprep.subr.bf16.mxu0 0
        %2377 = vmatpush1.bf16.xpose.msra.mxu0 0
        %2378 = vmatprep.subr.bf16.mxu0 0
        %2379 = vmatpush1.bf16.xpose.msra.mxu0 0
        %2380 = vmatprep.subr.bf16.mxu0 0
        %2381 = vmatpush1.bf16.xpose.msra.mxu0 0
        %2382 = vmatprep.subr.bf16.mxu0 0
        %2383 = vmatpush1.bf16.xpose.msra.mxu0 0
        %2384 = vmatprep.subr.bf16.mxu0 0
        %2385 = vmatpush1.bf16.xpose.msra.mxu0 0
        %2386 = vmatprep.subr.bf16.mxu0 0
        %2387 = vmatpush1.bf16.xpose.msra.mxu0 0
        %2388 = vmatprep.subr.bf16.mxu0 0
        %2389 = vmatpush1.bf16.xpose.msra.mxu0 %v2372
        %2390 = vmatprep.subr.bf16.mxu0 0
        %2391 = vmatpush2.bf16.xpose.msra.mxu0 0
        %2392 = vmatprep.subr.bf16.mxu0 0
        %2393 = vmatpush2.bf16.xpose.msra.mxu0 0
        %2394 = vmatprep.subr.bf16.mxu0 0
        %2395 = vmatpush2.bf16.xpose.msra.mxu0 0
        %2396 = vmatprep.subr.bf16.mxu0 0
        %2397 = vmatpush2.bf16.xpose.msra.mxu0 0
        %2398 = vmatprep.subr.bf16.mxu0 0
        %2399 = vmatpush2.bf16.xpose.msra.mxu0 0
        %2400 = vmatprep.subr.bf16.mxu0 0
        %2401 = vmatpush2.bf16.xpose.msra.mxu0 0
        %2402 = vmatprep.subr.bf16.mxu0 0
        %2403 = vmatpush2.bf16.xpose.msra.mxu0 0
        %2404 = vmatprep.subr.bf16.mxu0 0
        %2405 = vmatpush2.bf16.xpose.msra.mxu0 0
        %2406 = vmatprep.mubr.bf16.mxu0 0
        %2407 = vmatmul.mubr.bf16.gmra.mxu0 %v2369
        %v2408 = vpop.f32.mrf.mxu0
        %v2409 = vadd.f32 0.0, %v2408
        %v2410 = vpop.f32.mrf.mxu0
        %v2411 = vpop.f32.mrf.mxu0
        %v2412 = vpop.f32.mrf.mxu0
        %2413 = vdwg.mxu0
        %v2414 = vsel %vm951, %v2409, -inf
        %2415 = vmax.xlane.f32.xlu0 %v2414
        %v2416 = vpop.xlane.xlu0 %2415
        %v2417 = vsub.f32 %v2409, %v2416
        %v2418 = vmul.f32 %v2417, 1.442695
        %v2419 = vpow.pop %v2418
        %v2420 = vsel %vm951, %v2419, 0.0
        %2421 = vadd.xlane.f32.xlu0 %v2420
        %v2422 = vpop.xlane.xlu0 %2421
        %v2423 = vrcp.pop %v2422
        %v2424 = vmul.f32 %v2419, %v2423
        %v2425 = vpack.c.bf16 %v2424, %v2424
        %2426 = vrot.lane.b32.xlu0 %v2100, 96
        %v2427 = vpop.permute.xlu0 %2426
        %v2429 = vsel %vm965, %v2425, 0
        %v2432 = vand.u32 %v2427, %v972
        %2434 = vmatprep.subr.bf16.mxu0 0
        %2435 = vmatpush1.bf16.msra.mxu0 0
        %2436 = vmatprep.subr.bf16.mxu0 0
        %2437 = vmatpush1.bf16.msra.mxu0 0
        %2438 = vmatprep.subr.bf16.mxu0 0
        %2439 = vmatpush1.bf16.msra.mxu0 0
        %2440 = vmatprep.subr.bf16.mxu0 0
        %2441 = vmatpush1.bf16.msra.mxu0 0
        %2442 = vmatprep.subr.bf16.mxu0 0
        %2443 = vmatpush1.bf16.msra.mxu0 0
        %2444 = vmatprep.subr.bf16.mxu0 0
        %2445 = vmatpush1.bf16.msra.mxu0 0
        %2446 = vmatprep.subr.bf16.mxu0 0
        %2447 = vmatpush1.bf16.msra.mxu0 0
        %2448 = vmatprep.subr.bf16.mxu0 0
        %2449 = vmatpush1.bf16.msra.mxu0 %v2432
        %2450 = vmatprep.subr.bf16.mxu0 0
        %2451 = vmatpush2.bf16.msra.mxu0 0
        %2452 = vmatprep.subr.bf16.mxu0 0
        %2453 = vmatpush2.bf16.msra.mxu0 0
        %2454 = vmatprep.subr.bf16.mxu0 0
        %2455 = vmatpush2.bf16.msra.mxu0 0
        %2456 = vmatprep.subr.bf16.mxu0 0
        %2457 = vmatpush2.bf16.msra.mxu0 0
        %2458 = vmatprep.subr.bf16.mxu0 0
        %2459 = vmatpush2.bf16.msra.mxu0 0
        %2460 = vmatprep.subr.bf16.mxu0 0
        %2461 = vmatpush2.bf16.msra.mxu0 0
        %2462 = vmatprep.subr.bf16.mxu0 0
        %2463 = vmatpush2.bf16.msra.mxu0 0
        %2464 = vmatprep.subr.bf16.mxu0 0
        %2465 = vmatpush2.bf16.msra.mxu0 0
        %2466 = vmatprep.mubr.bf16.mxu0 0
        %2467 = vmatmul.mubr.bf16.gmra.mxu0 %v2429
        %v2468 = vpop.f32.mrf.mxu0
        %v2469 = vadd.f32 0.0, %v2468
        %v2470 = vpop.f32.mrf.mxu0
        %v2471 = vpop.f32.mrf.mxu0
        %v2472 = vpop.f32.mrf.mxu0
        %2473 = vdwg.mxu0
        %v2474 = vld [vmem:[%s2147 + $0x10] sm:$0xf]
        %v2475 = vld [vmem:[%s2147 + $0x14] sm:$0xf]
        %v2476 = vpack.c.bf16 %v2469, %v2469
        %v2479 = vunpack.c.l.b16 %v2474
        %v2480 = vunpack.c.l.b16 %v2475
        %v2481 = vpack.c.b16 %v2480, %v2479
        %v2484 = vsel %vm904, %v2476, 0
        %2486 = vmatprep.subr.bf16.mxu0 0
        %2487 = vmatpush1.bf16.msra.mxu0 0
        %2488 = vmatprep.subr.bf16.mxu0 0
        %2489 = vmatpush1.bf16.msra.mxu0 0
        %2490 = vmatprep.subr.bf16.mxu0 0
        %2491 = vmatpush1.bf16.msra.mxu0 0
        %2492 = vmatprep.subr.bf16.mxu0 0
        %2493 = vmatpush1.bf16.msra.mxu0 0
        %2494 = vmatprep.subr.bf16.mxu0 0
        %2495 = vmatpush1.bf16.msra.mxu0 0
        %2496 = vmatprep.subr.bf16.mxu0 0
        %2497 = vmatpush1.bf16.msra.mxu0 0
        %2498 = vmatprep.subr.bf16.mxu0 0
        %2499 = vmatpush1.bf16.msra.mxu0 0
        %2500 = vmatprep.subr.bf16.mxu0 0
        %2501 = vmatpush1.bf16.msra.mxu0 %v2481
        %2502 = vmatprep.subr.bf16.mxu0 0
        %2503 = vmatpush2.bf16.msra.mxu0 0
        %2504 = vmatprep.subr.bf16.mxu0 0
        %2505 = vmatpush2.bf16.msra.mxu0 0
        %2506 = vmatprep.subr.bf16.mxu0 0
        %2507 = vmatpush2.bf16.msra.mxu0 0
        %2508 = vmatprep.subr.bf16.mxu0 0
        %2509 = vmatpush2.bf16.msra.mxu0 0
        %2510 = vmatprep.subr.bf16.mxu0 0
        %2511 = vmatpush2.bf16.msra.mxu0 0
        %2512 = vmatprep.subr.bf16.mxu0 0
        %2513 = vmatpush2.bf16.msra.mxu0 0
        %2514 = vmatprep.subr.bf16.mxu0 0
        %2515 = vmatpush2.bf16.msra.mxu0 0
        %2516 = vmatprep.subr.bf16.mxu0 0
        %2517 = vmatpush2.bf16.msra.mxu0 0
        %2518 = vmatprep.mubr.bf16.mxu0 0
        %2519 = vmatmul.mubr.bf16.gmra.mxu0 %v2484
        %v2520 = vpop.f32.mrf.mxu0
        %v2521 = vadd.f32 0.0, %v2520
        %v2522 = vpop.f32.mrf.mxu0
        %v2523 = vpop.f32.mrf.mxu0
        %v2524 = vpop.f32.mrf.mxu0
        %2525 = vdwg.mxu0
        %v2526 = vadd.f32 %v2359, %v2521
        %2527 = vrot.lane.b32.xlu0 %v2037, 80
        %v2528 = vpop.permute.xlu0 %2527
        %2529 = vrot.lane.b32.xlu0 %v2038, 16
        %v2530 = vpop.permute.xlu0 %2529
        %v2532 = vsel %vm904, %v2528, 0
        %v2535 = vsel %vm904, %v2530, 0
        %2537 = vmatprep.subr.bf16.mxu0 0
        %2538 = vmatpush1.bf16.xpose.msra.mxu0 0
        %2539 = vmatprep.subr.bf16.mxu0 0
        %2540 = vmatpush1.bf16.xpose.msra.mxu0 0
        %2541 = vmatprep.subr.bf16.mxu0 0
        %2542 = vmatpush1.bf16.xpose.msra.mxu0 0
        %2543 = vmatprep.subr.bf16.mxu0 0
        %2544 = vmatpush1.bf16.xpose.msra.mxu0 0
        %2545 = vmatprep.subr.bf16.mxu0 0
        %2546 = vmatpush1.bf16.xpose.msra.mxu0 0
        %2547 = vmatprep.subr.bf16.mxu0 0
        %2548 = vmatpush1.bf16.xpose.msra.mxu0 0
        %2549 = vmatprep.subr.bf16.mxu0 0
        %2550 = vmatpush1.bf16.xpose.msra.mxu0 0
        %2551 = vmatprep.subr.bf16.mxu0 0
        %2552 = vmatpush1.bf16.xpose.msra.mxu0 %v2535
        %2553 = vmatprep.subr.bf16.mxu0 0
        %2554 = vmatpush2.bf16.xpose.msra.mxu0 0
        %2555 = vmatprep.subr.bf16.mxu0 0
        %2556 = vmatpush2.bf16.xpose.msra.mxu0 0
        %2557 = vmatprep.subr.bf16.mxu0 0
        %2558 = vmatpush2.bf16.xpose.msra.mxu0 0
        %2559 = vmatprep.subr.bf16.mxu0 0
        %2560 = vmatpush2.bf16.xpose.msra.mxu0 0
        %2561 = vmatprep.subr.bf16.mxu0 0
        %2562 = vmatpush2.bf16.xpose.msra.mxu0 0
        %2563 = vmatprep.subr.bf16.mxu0 0
        %2564 = vmatpush2.bf16.xpose.msra.mxu0 0
        %2565 = vmatprep.subr.bf16.mxu0 0
        %2566 = vmatpush2.bf16.xpose.msra.mxu0 0
        %2567 = vmatprep.subr.bf16.mxu0 0
        %2568 = vmatpush2.bf16.xpose.msra.mxu0 0
        %2569 = vmatprep.mubr.bf16.mxu0 0
        %2570 = vmatmul.mubr.bf16.gmra.mxu0 %v2532
        %v2571 = vpop.f32.mrf.mxu0
        %v2572 = vadd.f32 0.0, %v2571
        %v2573 = vpop.f32.mrf.mxu0
        %v2574 = vpop.f32.mrf.mxu0
        %v2575 = vpop.f32.mrf.mxu0
        %2576 = vdwg.mxu0
        %v2577 = vsel %vm951, %v2572, -inf
        %2578 = vmax.xlane.f32.xlu0 %v2577
        %v2579 = vpop.xlane.xlu0 %2578
        %v2580 = vsub.f32 %v2572, %v2579
        %v2581 = vmul.f32 %v2580, 1.442695
        %v2582 = vpow.pop %v2581
        %v2583 = vsel %vm951, %v2582, 0.0
        %2584 = vadd.xlane.f32.xlu0 %v2583
        %v2585 = vpop.xlane.xlu0 %2584
        %v2586 = vrcp.pop %v2585
        %v2587 = vmul.f32 %v2582, %v2586
        %v2588 = vpack.c.bf16 %v2587, %v2587
        %2589 = vrot.lane.b32.xlu0 %v2100, 80
        %v2590 = vpop.permute.xlu0 %2589
        %v2592 = vsel %vm965, %v2588, 0
        %v2595 = vand.u32 %v2590, %v972
        %2597 = vmatprep.subr.bf16.mxu0 0
        %2598 = vmatpush1.bf16.msra.mxu0 0
        %2599 = vmatprep.subr.bf16.mxu0 0
        %2600 = vmatpush1.bf16.msra.mxu0 0
        %2601 = vmatprep.subr.bf16.mxu0 0
        %2602 = vmatpush1.bf16.msra.mxu0 0
        %2603 = vmatprep.subr.bf16.mxu0 0
        %2604 = vmatpush1.bf16.msra.mxu0 0
        %2605 = vmatprep.subr.bf16.mxu0 0
        %2606 = vmatpush1.bf16.msra.mxu0 0
        %2607 = vmatprep.subr.bf16.mxu0 0
        %2608 = vmatpush1.bf16.msra.mxu0 0
        %2609 = vmatprep.subr.bf16.mxu0 0
        %2610 = vmatpush1.bf16.msra.mxu0 0
        %2611 = vmatprep.subr.bf16.mxu0 0
        %2612 = vmatpush1.bf16.msra.mxu0 %v2595
        %2613 = vmatprep.subr.bf16.mxu0 0
        %2614 = vmatpush2.bf16.msra.mxu0 0
        %2615 = vmatprep.subr.bf16.mxu0 0
        %2616 = vmatpush2.bf16.msra.mxu0 0
        %2617 = vmatprep.subr.bf16.mxu0 0
        %2618 = vmatpush2.bf16.msra.mxu0 0
        %2619 = vmatprep.subr.bf16.mxu0 0
        %2620 = vmatpush2.bf16.msra.mxu0 0
        %2621 = vmatprep.subr.bf16.mxu0 0
        %2622 = vmatpush2.bf16.msra.mxu0 0
        %2623 = vmatprep.subr.bf16.mxu0 0
        %2624 = vmatpush2.bf16.msra.mxu0 0
        %2625 = vmatprep.subr.bf16.mxu0 0
        %2626 = vmatpush2.bf16.msra.mxu0 0
        %2627 = vmatprep.subr.bf16.mxu0 0
        %2628 = vmatpush2.bf16.msra.mxu0 0
        %2629 = vmatprep.mubr.bf16.mxu0 0
        %2630 = vmatmul.mubr.bf16.gmra.mxu0 %v2592
        %v2631 = vpop.f32.mrf.mxu0
        %v2632 = vadd.f32 0.0, %v2631
        %v2633 = vpop.f32.mrf.mxu0
        %v2634 = vpop.f32.mrf.mxu0
        %v2635 = vpop.f32.mrf.mxu0
        %2636 = vdwg.mxu0
        %v2637 = vld [vmem:[%s2147 + $0x18] sm:$0xf]
        %v2638 = vld [vmem:[%s2147 + $0x1c] sm:$0xf]
        %v2639 = vpack.c.bf16 %v2632, %v2632
        %v2642 = vunpack.c.l.b16 %v2637
        %v2643 = vunpack.c.l.b16 %v2638
        %v2644 = vpack.c.b16 %v2643, %v2642
        %v2647 = vsel %vm904, %v2639, 0
        %2649 = vmatprep.subr.bf16.mxu0 0
        %2650 = vmatpush1.bf16.msra.mxu0 0
        %2651 = vmatprep.subr.bf16.mxu0 0
        %2652 = vmatpush1.bf16.msra.mxu0 0
        %2653 = vmatprep.subr.bf16.mxu0 0
        %2654 = vmatpush1.bf16.msra.mxu0 0
        %2655 = vmatprep.subr.bf16.mxu0 0
        %2656 = vmatpush1.bf16.msra.mxu0 0
        %2657 = vmatprep.subr.bf16.mxu0 0
        %2658 = vmatpush1.bf16.msra.mxu0 0
        %2659 = vmatprep.subr.bf16.mxu0 0
        %2660 = vmatpush1.bf16.msra.mxu0 0
        %2661 = vmatprep.subr.bf16.mxu0 0
        %2662 = vmatpush1.bf16.msra.mxu0 0
        %2663 = vmatprep.subr.bf16.mxu0 0
        %2664 = vmatpush1.bf16.msra.mxu0 %v2644
        %2665 = vmatprep.subr.bf16.mxu0 0
        %2666 = vmatpush2.bf16.msra.mxu0 0
        %2667 = vmatprep.subr.bf16.mxu0 0
        %2668 = vmatpush2.bf16.msra.mxu0 0
        %2669 = vmatprep.subr.bf16.mxu0 0
        %2670 = vmatpush2.bf16.msra.mxu0 0
        %2671 = vmatprep.subr.bf16.mxu0 0
        %2672 = vmatpush2.bf16.msra.mxu0 0
        %2673 = vmatprep.subr.bf16.mxu0 0
        %2674 = vmatpush2.bf16.msra.mxu0 0
        %2675 = vmatprep.subr.bf16.mxu0 0
        %2676 = vmatpush2.bf16.msra.mxu0 0
        %2677 = vmatprep.subr.bf16.mxu0 0
        %2678 = vmatpush2.bf16.msra.mxu0 0
        %2679 = vmatprep.subr.bf16.mxu0 0
        %2680 = vmatpush2.bf16.msra.mxu0 0
        %2681 = vmatprep.mubr.bf16.mxu0 0
        %2682 = vmatmul.mubr.bf16.gmra.mxu0 %v2647
        %v2683 = vpop.f32.mrf.mxu0
        %v2684 = vadd.f32 0.0, %v2683
        %v2685 = vpop.f32.mrf.mxu0
        %v2686 = vpop.f32.mrf.mxu0
        %v2687 = vpop.f32.mrf.mxu0
        %2688 = vdwg.mxu0
        %v2689 = vadd.f32 %v2526, %v2684
        %v2690 = vadd.f32 %v1897, %v2689
        %s2691 = scalar_lea.vmem %s10, 1
        %v2692 = vld [vmem:[%s2691] sm:$0x1]
        %v2694 = vlaneseq
        %v2695 = vshrl.u32 %v2694, 7
        %v2696 = vsub.s32 0, %v2695
        %v2697 = vrot.slane %v2692, %v2696
        %v2699 = vadd.f32 %v2690, %v2697
        %s2700 = scalar_lea.vmem %s11, 1
        %v2701 = vld [vmem:[%s2700] sm:$0x1]
        %s2702 = scalar_lea.vmem %s12, 1
        %v2703 = vld [vmem:[%s2702] sm:$0x1]
        %v2704 = vsel %vm764, %v2699, 0.0
        %2705 = vadd.xlane.f32.xlu0 %v2704
        %v2706 = vpop.xlane.xlu0 %2705
        %v2707 = vmul.f32 %v2706, %v768
        %v2708 = vsub.f32 %v2699, %v2707
        %v2709 = vmul.f32 %v2708, %v2708
        %v2710 = vsel %vm764, %v2709, 0.0
        %2711 = vadd.xlane.f32.xlu0 %v2710
        %v2712 = vpop.xlane.xlu0 %2711
        %v2713 = vmul.f32 %v2712, %v768
        %v2714 = vadd.f32 %v2713, 1e-06
        %v2715 = vrsqrt.pop %v2714
        %v2716 = vmul.f32 %v2708, %v2715
        %v2718 = vlaneseq
        %v2719 = vshrl.u32 %v2718, 7
        %v2720 = vsub.s32 0, %v2719
        %v2721 = vrot.slane %v2701, %v2720
        %v2723 = vmul.f32 %v2716, %v2721
        %v2725 = vlaneseq
        %v2726 = vshrl.u32 %v2725, 7
        %v2727 = vsub.s32 0, %v2726
        %v2728 = vrot.slane %v2703, %v2727
        %v2730 = vadd.f32 %v2723, %v2728
        %s2731 = scalar_lea.vmem %s13, 64
        %v2732 = vld [vmem:[%s2731] sm:$0xff]
        %v2733 = vld [vmem:[%s2731 + $0x8] sm:$0xff]
        %v2734 = vld [vmem:[%s2731 + $0x10] sm:$0xff]
        %v2735 = vld [vmem:[%s2731 + $0x18] sm:$0xff]
        %v2736 = vld [vmem:[%s2731 + $0x20] sm:$0xff]
        %v2737 = vld [vmem:[%s2731 + $0x28] sm:$0xff]
        %v2738 = vld [vmem:[%s2731 + $0x30] sm:$0xff]
        %v2739 = vld [vmem:[%s2731 + $0x38] sm:$0xff]
        %v2740 = vpack.c.bf16 %v2730, %v2730
        %s2741 = scalar_lea.vmem %s14, 2
        %v2742 = vld [vmem:[%s2741] sm:$0x3]
        %v2744 = vlaneseq
        %v2745 = vshrl.u32 %v2744, 7
        %v2746 = vsub.s32 0, %v2745
        %v2747 = vrot.slane %v2742, %v2746
        %v2748 = vlaneseq
        %v2749 = vshrl.u32 %v2748, 7
        %v2750 = vsub.s32 1, %v2749
        %v2751 = vrot.slane %v2742, %v2750
        %v2762 = vunpack.c.l.b16 %v2732
        %v2763 = vunpack.c.h.b16 %v2732
        %v2764 = vunpack.c.l.b16 %v2733
        %v2765 = vunpack.c.h.b16 %v2733
        %v2766 = vunpack.c.l.b16 %v2734
        %v2767 = vunpack.c.h.b16 %v2734
        %v2768 = vunpack.c.l.b16 %v2735
        %v2769 = vunpack.c.h.b16 %v2735
        %v2770 = vunpack.c.l.b16 %v2736
        %v2771 = vunpack.c.h.b16 %v2736
        %v2772 = vunpack.c.l.b16 %v2737
        %v2773 = vunpack.c.h.b16 %v2737
        %v2774 = vunpack.c.l.b16 %v2738
        %v2775 = vunpack.c.h.b16 %v2738
        %v2776 = vunpack.c.l.b16 %v2739
        %v2777 = vunpack.c.h.b16 %v2739
        %v2778 = vpack.c.b16 %v2764, %v2762
        %v2779 = vpack.c.b16 %v2765, %v2763
        %v2780 = vpack.c.b16 %v2768, %v2766
        %v2781 = vpack.c.b16 %v2769, %v2767
        %v2782 = vpack.c.b16 %v2772, %v2770
        %v2783 = vpack.c.b16 %v2773, %v2771
        %v2784 = vpack.c.b16 %v2776, %v2774
        %v2785 = vpack.c.b16 %v2777, %v2775
        %v2795 = vsel %vm710, %v2740, 0
        %2797 = vmatprep.subr.bf16.mxu0 0
        %2798 = vmatpush1.bf16.msra.mxu0 0
        %2799 = vmatprep.subr.bf16.mxu0 0
        %2800 = vmatpush1.bf16.msra.mxu0 0
        %2801 = vmatprep.subr.bf16.mxu0 0
        %2802 = vmatpush1.bf16.msra.mxu0 0
        %2803 = vmatprep.subr.bf16.mxu0 0
        %2804 = vmatpush1.bf16.msra.mxu0 0
        %2805 = vmatprep.subr.bf16.mxu0 %v2785
        %2806 = vmatpush1.bf16.msra.mxu0 %v2784
        %2807 = vmatprep.subr.bf16.mxu0 %v2783
        %2808 = vmatpush1.bf16.msra.mxu0 %v2782
        %2809 = vmatprep.subr.bf16.mxu0 %v2781
        %2810 = vmatpush1.bf16.msra.mxu0 %v2780
        %2811 = vmatprep.subr.bf16.mxu0 %v2779
        %2812 = vmatpush1.bf16.msra.mxu0 %v2778
        %2813 = vmatprep.subr.bf16.mxu0 0
        %2814 = vmatpush2.bf16.msra.mxu0 0
        %2815 = vmatprep.subr.bf16.mxu0 0
        %2816 = vmatpush2.bf16.msra.mxu0 0
        %2817 = vmatprep.subr.bf16.mxu0 0
        %2818 = vmatpush2.bf16.msra.mxu0 0
        %2819 = vmatprep.subr.bf16.mxu0 0
        %2820 = vmatpush2.bf16.msra.mxu0 0
        %2821 = vmatprep.subr.bf16.mxu0 0
        %2822 = vmatpush2.bf16.msra.mxu0 0
        %2823 = vmatprep.subr.bf16.mxu0 0
        %2824 = vmatpush2.bf16.msra.mxu0 0
        %2825 = vmatprep.subr.bf16.mxu0 0
        %2826 = vmatpush2.bf16.msra.mxu0 0
        %2827 = vmatprep.subr.bf16.mxu0 0
        %2828 = vmatpush2.bf16.msra.mxu0 0
        %2829 = vmatprep.mubr.bf16.mxu0 0
        %2830 = vmatmul.mubr.bf16.gmra.mxu0 %v2795
        %v2831 = vpop.f32.mrf.mxu0
        %v2832 = vadd.f32 %v2747, %v2831
        %v2833 = vpop.f32.mrf.mxu0
        %v2834 = vadd.f32 %v2751, %v2833
        %v2835 = vpop.f32.mrf.mxu0
        %v2836 = vpop.f32.mrf.mxu0
        %2837 = vdwg.mxu0
        %v2838 = vmul.f32 %v2832, %v2832
        %v2839 = vmul.f32 %v2834, %v2834
        %v2840 = vmul.f32 %v2832, %v2838
        %v2841 = vmul.f32 %v2834, %v2839
        %v2842 = vmul.f32 %v2840, 0.044715
        %v2843 = vmul.f32 %v2841, 0.044715
        %v2844 = vadd.f32 %v2832, %v2842
        %v2845 = vadd.f32 %v2834, %v2843
        %v2846 = vmul.f32 %v2844, 0.7978846
        %v2847 = vmul.f32 %v2845, 0.7978846
        %v2848 = vtanh.pop %v2846
        %v2849 = vtanh.pop %v2847
        %v2850 = vadd.f32 %v2848, 1.0
        %v2851 = vadd.f32 %v2849, 1.0
        %v2852 = vmul.f32 %v2850, 0.5
        %v2853 = vmul.f32 %v2851, 0.5
        %v2854 = vmul.f32 %v2832, %v2852
        %v2855 = vmul.f32 %v2834, %v2853
        %s2856 = scalar_lea.vmem %s15, 128
        %v2857 = vld [vmem:[%s2856] sm:$0xf]
        %v2858 = vld [vmem:[%s2856 + $0x4] sm:$0xf]
        %v2859 = vld [vmem:[%s2856 + $0x8] sm:$0xf]
        %v2860 = vld [vmem:[%s2856 + $0xc] sm:$0xf]
        %v2861 = vld [vmem:[%s2856 + $0x10] sm:$0xf]
        %v2862 = vld [vmem:[%s2856 + $0x14] sm:$0xf]
        %v2863 = vld [vmem:[%s2856 + $0x18] sm:$0xf]
        %v2864 = vld [vmem:[%s2856 + $0x1c] sm:$0xf]
        %v2865 = vld [vmem:[%s2856 + $0x20] sm:$0xf]
        %v2866 = vld [vmem:[%s2856 + $0x24] sm:$0xf]
        %v2867 = vld [vmem:[%s2856 + $0x28] sm:$0xf]
        %v2868 = vld [vmem:[%s2856 + $0x2c] sm:$0xf]
        %v2869 = vld [vmem:[%s2856 + $0x30] sm:$0xf]
        %v2870 = vld [vmem:[%s2856 + $0x34] sm:$0xf]
        %v2871 = vld [vmem:[%s2856 + $0x38] sm:$0xf]
        %v2872 = vld [vmem:[%s2856 + $0x3c] sm:$0xf]
        %v2873 = vld [vmem:[%s2856 + $0x40] sm:$0xf]
        %v2874 = vld [vmem:[%s2856 + $0x44] sm:$0xf]
        %v2875 = vld [vmem:[%s2856 + $0x48] sm:$0xf]
        %v2876 = vld [vmem:[%s2856 + $0x4c] sm:$0xf]
        %v2877 = vld [vmem:[%s2856 + $0x50] sm:$0xf]
        %v2878 = vld [vmem:[%s2856 + $0x54] sm:$0xf]
        %v2879 = vld [vmem:[%s2856 + $0x58] sm:$0xf]
        %v2880 = vld [vmem:[%s2856 + $0x5c] sm:$0xf]
        %v2881 = vld [vmem:[%s2856 + $0x60] sm:$0xf]
        %v2882 = vld [vmem:[%s2856 + $0x64] sm:$0xf]
        %v2883 = vld [vmem:[%s2856 + $0x68] sm:$0xf]
        %v2884 = vld [vmem:[%s2856 + $0x6c] sm:$0xf]
        %v2885 = vld [vmem:[%s2856 + $0x70] sm:$0xf]
        %v2886 = vld [vmem:[%s2856 + $0x74] sm:$0xf]
        %v2887 = vld [vmem:[%s2856 + $0x78] sm:$0xf]
        %v2888 = vld [vmem:[%s2856 + $0x7c] sm:$0xf]
        %v2889 = vpack.c.bf16 %v2854, %v2854
        %v2890 = vpack.c.bf16 %v2855, %v2855
        %v2923 = vunpack.c.l.b16 %v2857
        %v2924 = vunpack.c.l.b16 %v2858
        %v2925 = vunpack.c.l.b16 %v2859
        %v2926 = vunpack.c.l.b16 %v2860
        %v2927 = vunpack.c.l.b16 %v2861
        %v2928 = vunpack.c.l.b16 %v2862
        %v2929 = vunpack.c.l.b16 %v2863
        %v2930 = vunpack.c.l.b16 %v2864
        %v2931 = vunpack.c.l.b16 %v2865
        %v2932 = vunpack.c.l.b16 %v2866
        %v2933 = vunpack.c.l.b16 %v2867
        %v2934 = vunpack.c.l.b16 %v2868
        %v2935 = vunpack.c.l.b16 %v2869
        %v2936 = vunpack.c.l.b16 %v2870
        %v2937 = vunpack.c.l.b16 %v2871
        %v2938 = vunpack.c.l.b16 %v2872
        %v2939 = vunpack.c.l.b16 %v2873
        %v2940 = vunpack.c.l.b16 %v2874
        %v2941 = vunpack.c.l.b16 %v2875
        %v2942 = vunpack.c.l.b16 %v2876
        %v2943 = vunpack.c.l.b16 %v2877
        %v2944 = vunpack.c.l.b16 %v2878
        %v2945 = vunpack.c.l.b16 %v2879
        %v2946 = vunpack.c.l.b16 %v2880
        %v2947 = vunpack.c.l.b16 %v2881
        %v2948 = vunpack.c.l.b16 %v2882
        %v2949 = vunpack.c.l.b16 %v2883
        %v2950 = vunpack.c.l.b16 %v2884
        %v2951 = vunpack.c.l.b16 %v2885
        %v2952 = vunpack.c.l.b16 %v2886
        %v2953 = vunpack.c.l.b16 %v2887
        %v2954 = vunpack.c.l.b16 %v2888
        %v2955 = vpack.c.b16 %v2924, %v2923
        %v2956 = vpack.c.b16 %v2926, %v2925
        %v2957 = vpack.c.b16 %v2928, %v2927
        %v2958 = vpack.c.b16 %v2930, %v2929
        %v2959 = vpack.c.b16 %v2932, %v2931
        %v2960 = vpack.c.b16 %v2934, %v2933
        %v2961 = vpack.c.b16 %v2936, %v2935
        %v2962 = vpack.c.b16 %v2938, %v2937
        %v2963 = vpack.c.b16 %v2940, %v2939
        %v2964 = vpack.c.b16 %v2942, %v2941
        %v2965 = vpack.c.b16 %v2944, %v2943
        %v2966 = vpack.c.b16 %v2946, %v2945
        %v2967 = vpack.c.b16 %v2948, %v2947
        %v2968 = vpack.c.b16 %v2950, %v2949
        %v2969 = vpack.c.b16 %v2952, %v2951
        %v2970 = vpack.c.b16 %v2954, %v2953
        %2987 = vmatprep.subr.bf16.mxu0 0
        %2988 = vmatpush1.bf16.msra.mxu0 %v2962
        %2989 = vmatprep.subr.bf16.mxu0 0
        %2990 = vmatpush1.bf16.msra.mxu0 %v2961
        %2991 = vmatprep.subr.bf16.mxu0 0
        %2992 = vmatpush1.bf16.msra.mxu0 %v2960
        %2993 = vmatprep.subr.bf16.mxu0 0
        %2994 = vmatpush1.bf16.msra.mxu0 %v2959
        %2995 = vmatprep.subr.bf16.mxu0 0
        %2996 = vmatpush1.bf16.msra.mxu0 %v2958
        %2997 = vmatprep.subr.bf16.mxu0 0
        %2998 = vmatpush1.bf16.msra.mxu0 %v2957
        %2999 = vmatprep.subr.bf16.mxu0 0
        %3000 = vmatpush1.bf16.msra.mxu0 %v2956
        %3001 = vmatprep.subr.bf16.mxu0 0
        %3002 = vmatpush1.bf16.msra.mxu0 %v2955
        %3003 = vmatprep.subr.bf16.mxu0 0
        %3004 = vmatpush2.bf16.msra.mxu0 %v2970
        %3005 = vmatprep.subr.bf16.mxu0 0
        %3006 = vmatpush2.bf16.msra.mxu0 %v2969
        %3007 = vmatprep.subr.bf16.mxu0 0
        %3008 = vmatpush2.bf16.msra.mxu0 %v2968
        %3009 = vmatprep.subr.bf16.mxu0 0
        %3010 = vmatpush2.bf16.msra.mxu0 %v2967
        %3011 = vmatprep.subr.bf16.mxu0 0
        %3012 = vmatpush2.bf16.msra.mxu0 %v2966
        %3013 = vmatprep.subr.bf16.mxu0 0
        %3014 = vmatpush2.bf16.msra.mxu0 %v2965
        %3015 = vmatprep.subr.bf16.mxu0 0
        %3016 = vmatpush2.bf16.msra.mxu0 %v2964
        %3017 = vmatprep.subr.bf16.mxu0 0
        %3018 = vmatpush2.bf16.msra.mxu0 %v2963
        %3019 = vmatprep.mubr.bf16.mxu0 %v2890
        %3020 = vmatmul.mubr.bf16.gmra.mxu0 %v2889
        %v3021 = vpop.f32.mrf.mxu0
        %v3022 = vadd.f32 0.0, %v3021
        %v3023 = vpop.f32.mrf.mxu0
        %v3024 = vpop.f32.mrf.mxu0
        %v3025 = vpop.f32.mrf.mxu0
        %3026 = vdwg.mxu0
        %v3027 = vadd.f32 %v2699, %v3022
        %s3028 = scalar_lea.vmem %s16, 1
        %v3029 = vld [vmem:[%s3028] sm:$0x1]
        %v3031 = vlaneseq
        %v3032 = vshrl.u32 %v3031, 7
        %v3033 = vsub.s32 0, %v3032
        %v3034 = vrot.slane %v3029, %v3033
        %v3036 = vadd.f32 %v3027, %v3034
        %v3037 = vld [vmem:[%s17] sm:$0x1]
        %v3038 = vld [vmem:[%s18] sm:$0x1]
        %v3039 = vsel %vm755, %v3036, 0.0
        %3040 = vadd.xlane.f32.xlu0 %v3039
        %v3041 = vpop.xlane.xlu0 %3040
        %v3042 = vmul.f32 %v3041, %v768
        %v3043 = vsub.f32 %v3036, %v3042
        %v3044 = vmul.f32 %v3043, %v3043
        %v3045 = vsel %vm755, %v3044, 0.0
        %3046 = vadd.xlane.f32.xlu0 %v3045
        %v3047 = vpop.xlane.xlu0 %3046
        %v3048 = vmul.f32 %v3047, %v768
        %v3049 = vadd.f32 %v3048, 1e-06
        %v3050 = vrsqrt.pop %v3049
        %v3051 = vmul.f32 %v3043, %v3050
        %v3052 = vmul.f32 %v3051, %v3037
        %v3053 = vadd.f32 %v3052, %v3038
        %3054 = vst.msk [vmem:[%s594] sm:$0x1] %vm755, %v3053
        %s3055 = sand.u32 %s445, 1
        %s3056 = scalar_lea.sflag [#allocation4], %s3055
        %s3057 = sand.u32 %s445, 1
        %s3058 = scalar_lea.vmem [#allocation3], %s3057
        // Predicated region
        $region97: #{vc1_encoder_forward.1} parent=95 // pred_check
          %p3059 = pneg %p455
        $region98: #{vc1_encoder_forward.1} parent=95 // pred_check_branch
          %3061 = sbr.rel (%p3059) target = $region100
        $region99: #{vc1_encoder_forward.1} parent=95 // pred_region
          %s3063 = ssub.s32 16, 16
          %3064 = vsyncadd %s3056, %s3063
          %s3065 = smul.addr %s33, 16
          %s3066 = scalar_lea.hbm %s19, %s3065
          %s3068 = sshll.u32 %s3058, 4
          %s3069 = int_to_ptr.vmem [resolvable:$true] %s3068
          %3071 = dma.vmem_to_hbm [thread:$0]  %s3069, 16, %s3066, %s3056
        $region100: #{vc1_encoder_forward.1} parent=95 // pred_fallthru
          _
      $region96: #{vc1_encoder_forward.1} parent=5 // pred_fallthru
        _
      %p3072 = scmp.le.s32.totalorder 2, %s28
      // Predicated region
      $region101: #{vc1_encoder_forward.1} parent=5 // pred_check
        %p3073 = pneg %p3072
      $region102: #{vc1_encoder_forward.1} parent=5 // pred_check_branch
        %3075 = sbr.rel (%p3073) target = $region104
      $region103: #{vc1_encoder_forward.1} parent=5 // pred_region
        %s3076 = ssub.s32 %s28, 2
        // Predicated region
        $region105: #{vc1_encoder_forward.1} parent=103 // pred_check
          %p3077 = pneg %p461
        $region106: #{vc1_encoder_forward.1} parent=103 // pred_check_branch
          %3079 = sbr.rel (%p3077) target = $region108
        $region107: #{vc1_encoder_forward.1} parent=103 // pred_region
          %s3080 = sand.u32 %s446, 1
          %s3081 = scalar_lea.sflag [#allocation4], %s3080
          %s3082 = sand.u32 %s446, 1
          %s3083 = scalar_lea.vmem [#allocation3], %s3082
          %3084 = dma.done %s3081, 16
        $region108: #{vc1_encoder_forward.1} parent=103 // pred_fallthru
          _
      $region104: #{vc1_encoder_forward.1} parent=5 // pred_fallthru
        _
    $region6: #{vc1_encoder_forward.1} parent=1 // loop_footer
      %s32 = sadd.s32 1, %s28
    $region7: #{vc1_encoder_forward.1} parent=1 // loop_footer_branch
      %27 = sbr.rel target = $region3
    $region8: #{vc1_encoder_forward.1} parent=1 // loop_exit
      _
    %3085 = vsyncpa [#allocation4], 1
    %s3086 = scalar_lea.sflag [#allocation4], 1
    %3087 = vsyncpa %s3086, 1

</llo_original>
